<compile_context>
chip_gen: v7x
topology: tpu7x:2x2x1
jax: 0.10.0
libtpu: 0.0.40
codegen_flags: <defaults>
</compile_context>

<pallas_src>
import math

import jax
import jax.numpy as jnp
from jax.experimental import pallas as pl
from jax.experimental.pallas import tpu as pltpu


_VMEM_SPEC = pl.BlockSpec(memory_space=pltpu.MemorySpace.VMEM)


# ----------------------------- fused Pallas kernel ---------------------------

def _make_fused_kernel(n_layers, seq_len, batch, din0):
    """Fused (n_layers tanh-RNN + Linear) kernel, single invocation.

    Ref layout (all batch-first, nothing pre-transposed by the wrapper):
      inputs : x_ref   (B, T, Din)
               h0_ref  (L, B, H)
               wih_ref (L, max(Din,H), H)   layer-0 rows [Din:] are zero pad
               whh_ref (L, H, H)
               b_ref   (L, 1, H)            b_ih + b_hh, pre-summed
               fcw_ref (H, O), fcb_ref (1, O)
      outputs: out_ref (B, T, O), hid_ref (L, B, H)
    """
    L, T, B = n_layers, seq_len, batch

    def kernel(x_ref, h0_ref, wih_ref, whh_ref, b_ref, fcw_ref, fcb_ref,
               out_ref, hid_ref):

        def mm(a, w):
            # f32 MXU matmul (multi-pass); matches the HIGHEST-precision
            # reference to well under the 1e-4 tolerance at these shapes.
            return jnp.dot(a, w, preferred_element_type=jnp.float32)

        # Hoist every (tiny) parameter load out of the unrolled loops so the
        # weights live in vregs across all T + L - 1 diagonals.
        wih = [wih_ref[l] for l in range(L)]
        wih[0] = wih[0][:din0, :]                  # layer 0: valid (Din, H) rows
        whh = [whh_ref[l] for l in range(L)]
        bias = [b_ref[l] for l in range(L)]        # (1, H) each
        fcw = fcw_ref[...]                         # (H, O)
        fcb = fcb_ref[...]                         # (1, O)

        # Register-carried hidden state per layer: (B, H) values, no scratch.
        h = [h0_ref[l] for l in range(L)]

        # Wavefront: diagonal s executes steps {(l, t = s - l)}.  Every dep of
        # diagonal s is produced in diagonal s-1 (h_prev snapshot), so the
        # steps within a diagonal are independent and overlap; critical-path
        # depth is T + L - 1 dependent (matmul -> add -> tanh) stages.
        for s in range(T + L - 1):
            h_prev = list(h)                       # SSA snapshot of diagonal s-1
            for l in range(L):
                t = s - l
                if t < 0 or t >= T:
                    continue
                if l == 0:
                    # Per-batch single-row loads (leading int + size-1 window),
                    # concatenated along sublanes; off the critical path.
                    x_t = jnp.concatenate(
                        [x_ref[b, pl.ds(t, 1), :] for b in range(B)], axis=0)
                    xin = mm(x_t, wih[0])                         # (B, H)
                else:
                    xin = mm(h_prev[l - 1], wih[l])               # (B, H)
                h[l] = jnp.tanh(xin + bias[l] + mm(h_prev[l], whh[l]))
                if l == L - 1:
                    # Final Linear per step; overlaps with later diagonals.
                    o_t = mm(h[l], fcw) + fcb                     # (B, O)
                    for b in range(B):
                        out_ref[b, pl.ds(t, 1), :] = (
                            o_t[b:b + 1, :].astype(out_ref.dtype))

        for l in range(L):
            hid_ref[l] = h[l]

    return kernel


# ------------------------------ parameters ----------------------------------

def init_params(key, input_size, output_size, hidden_dim, n_layers):
    """Deterministic init mirroring PyTorch nn.RNN / nn.Linear
    (uniform(-1/sqrt(H), 1/sqrt(H))), packed into few slabs for few DMAs."""
    k = 1.0 / math.sqrt(hidden_dim)
    dmax = max(input_size, hidden_dim)
    wih = jnp.zeros((n_layers, dmax, hidden_dim), jnp.float32)
    whh = jnp.zeros((n_layers, hidden_dim, hidden_dim), jnp.float32)
    bias = jnp.zeros((n_layers, 1, hidden_dim), jnp.float32)
    for layer in range(n_layers):
        din = input_size if layer == 0 else hidden_dim
        key, k1, k2, k3, k4 = jax.random.split(key, 5)
        w_ih = jax.random.uniform(k1, (hidden_dim, din), jnp.float32, -k, k)
        w_hh = jax.random.uniform(k2, (hidden_dim, hidden_dim), jnp.float32, -k, k)
        b_ih = jax.random.uniform(k3, (hidden_dim,), jnp.float32, -k, k)
        b_hh = jax.random.uniform(k4, (hidden_dim,), jnp.float32, -k, k)
        # Kernel computes x @ W^T -> store transposed; biases pre-summed.
        wih = wih.at[layer, :din, :].set(w_ih.T)
        whh = whh.at[layer].set(w_hh.T)
        bias = bias.at[layer, 0].set(b_ih + b_hh)
    key, k5, k6 = jax.random.split(key, 3)
    fc_w = jax.random.uniform(k5, (output_size, hidden_dim), jnp.float32, -k, k)
    fc_b = jax.random.uniform(k6, (output_size,), jnp.float32, -k, k)
    return {"w_ih": wih, "w_hh": whh, "bias": bias,
            "fc_w": fc_w.T, "fc_b": fc_b[None, :]}


# ------------------------------ forward pass ---------------------------------

def network_forward(params, x, hidden=None):
    """x: (B, T, input_size) batch_first, as in the PyTorch module.
    hidden: optional (n_layers, B, H) initial state (zeros if None).
    Returns (out (B, T, output_size), hidden (n_layers, B, H))."""
    B, T, din = x.shape
    L, _, H = params["w_ih"].shape
    O = params["fc_w"].shape[1]

    x = x.astype(jnp.float32)
    if hidden is None:
        hidden = jnp.zeros((L, B, H), jnp.float32)
    hidden = hidden.astype(jnp.float32)

    out, h_out = pl.pallas_call(
        _make_fused_kernel(L, T, B, din),
        out_shape=(jax.ShapeDtypeStruct((B, T, O), jnp.float32),
                   jax.ShapeDtypeStruct((L, B, H), jnp.float32)),
        in_specs=[_VMEM_SPEC] * 7,
        out_specs=(_VMEM_SPEC, _VMEM_SPEC),
    )(x, hidden, params["w_ih"], params["w_hh"], params["bias"],
      params["fc_w"], params["fc_b"])
    return out, h_out


# ------------------------------ pure-JAX reference ---------------------------

def network_ref(params, x, hidden=None):
    B, T, din_in = x.shape
    L, _, H = params["w_ih"].shape
    if hidden is None:
        hidden = jnp.zeros((L, B, H), jnp.float32)
    hidden = hidden.astype(jnp.float32)
    hp = jax.lax.Precision.HIGHEST
    xs = jnp.transpose(x.astype(jnp.float32), (1, 0, 2))      # (T, B, Din)
    h_finals = []
    for l in range(L):
        din = din_in if l == 0 else H
        wih_t = params["w_ih"][l, :din, :]
        whh_t = params["w_hh"][l]
        b = params["bias"][l]
        h = hidden[l]
        outs = []
        for t in range(T):
            h = jnp.tanh(jnp.dot(xs[t], wih_t, precision=hp)
                         + jnp.dot(h, whh_t, precision=hp) + b)
            outs.append(h)
        xs = jnp.stack(outs, axis=0)
        h_finals.append(h)
    hidden_out = jnp.stack(h_finals, axis=0)
    out = (jnp.dot(xs.reshape(T * B, H), params["fc_w"], precision=hp)
           + params["fc_b"])
    out = out.reshape(T, B, -1).transpose(1, 0, 2)
    return out, hidden_out


# ----------------------------------- main ------------------------------------

if __name__ == "__main__":
    # Module config (small RNN regression net, consistent with the spec).
    input_size, output_size, hidden_dim, n_layers = 4, 3, 32, 2
    batch, seq = 2, 8

    key = jax.random.PRNGKey(0)
    key, pkey, xkey, hkey = jax.random.split(key, 4)
    params = init_params(pkey, input_size, output_size, hidden_dim, n_layers)
    x = jax.random.normal(xkey, (batch, seq, input_size), jnp.float32)

    fwd = jax.jit(network_forward)

    # Path 1: hidden=None (zero init), as in Network.forward(x).
    out, hidden = fwd(params, x)
    jax.block_until_ready((out, hidden))
    assert out.shape == (batch, seq, output_size)
    assert hidden.shape == (n_layers, batch, hidden_dim)

    out_r, hid_r = network_ref(params, x)
    assert jnp.allclose(out, out_r, atol=1e-4, rtol=1e-4)
    assert jnp.allclose(hidden, hid_r, atol=1e-4, rtol=1e-4)

    # Path 2: caller-provided hidden state, as in Network.forward(x, hidden).
    h0 = 0.1 * jax.random.normal(hkey, (n_layers, batch, hidden_dim), jnp.float32)
    out2, hidden2 = fwd(params, x, h0)
    jax.block_until_ready((out2, hidden2))
    out2_r, hid2_r = network_ref(params, x, h0)
    assert jnp.allclose(out2, out2_r, atol=1e-4, rtol=1e-4)
    assert jnp.allclose(hidden2, hid2_r, atol=1e-4, rtol=1e-4)

    print("KERNEL_OK")
</pallas_src>

<mosaic_0001>
module attributes {stable_mosaic.version = 11 : i64} {
  func.func @kernel(%arg0: memref<2x8x4xf32, #tpu.memory_space<vmem>>, %arg1: memref<2x2x32xf32, #tpu.memory_space<vmem>>, %arg2: memref<2x32x32xf32, #tpu.memory_space<vmem>>, %arg3: memref<2x32x32xf32, #tpu.memory_space<vmem>>, %arg4: memref<2x1x32xf32, #tpu.memory_space<vmem>>, %arg5: memref<32x3xf32, #tpu.memory_space<vmem>>, %arg6: memref<1x3xf32, #tpu.memory_space<vmem>>, %arg7: memref<2x8x3xf32, #tpu.memory_space<vmem>>, %arg8: memref<2x2x32xf32, #tpu.memory_space<vmem>>) attributes {dimension_semantics = [], scalar_prefetch = 0 : i64, scratch_operands = 0 : i64, tpu.core_type = #tpu.core_type<tc>} {
    %c0 = arith.constant 0 : index
    %c0_0 = arith.constant 0 : index
    %c0_1 = arith.constant 0 : index
    %0 = vector.load %arg2[%c0, %c0_0, %c0_1] : memref<2x32x32xf32, #tpu.memory_space<vmem>>, vector<1x32x32xf32>
    %1 = vector.shape_cast %0 : vector<1x32x32xf32> to vector<32x32xf32>
    %c1 = arith.constant 1 : index
    %c0_2 = arith.constant 0 : index
    %c0_3 = arith.constant 0 : index
    %2 = vector.load %arg2[%c1, %c0_2, %c0_3] : memref<2x32x32xf32, #tpu.memory_space<vmem>>, vector<1x32x32xf32>
    %3 = vector.shape_cast %2 : vector<1x32x32xf32> to vector<32x32xf32>
    %4 = vector.extract_strided_slice %1 {offsets = [0, 0], sizes = [4, 32], strides = [1, 1]} : vector<32x32xf32> to vector<4x32xf32>
    %c0_4 = arith.constant 0 : index
    %c0_5 = arith.constant 0 : index
    %c0_6 = arith.constant 0 : index
    %5 = vector.load %arg3[%c0_4, %c0_5, %c0_6] : memref<2x32x32xf32, #tpu.memory_space<vmem>>, vector<1x32x32xf32>
    %6 = vector.shape_cast %5 : vector<1x32x32xf32> to vector<32x32xf32>
    %c1_7 = arith.constant 1 : index
    %c0_8 = arith.constant 0 : index
    %c0_9 = arith.constant 0 : index
    %7 = vector.load %arg3[%c1_7, %c0_8, %c0_9] : memref<2x32x32xf32, #tpu.memory_space<vmem>>, vector<1x32x32xf32>
    %8 = vector.shape_cast %7 : vector<1x32x32xf32> to vector<32x32xf32>
    %c0_10 = arith.constant 0 : index
    %c0_11 = arith.constant 0 : index
    %c0_12 = arith.constant 0 : index
    %9 = vector.load %arg4[%c0_10, %c0_11, %c0_12] : memref<2x1x32xf32, #tpu.memory_space<vmem>>, vector<1x1x32xf32>
    %10 = vector.shape_cast %9 : vector<1x1x32xf32> to vector<1x32xf32>
    %c1_13 = arith.constant 1 : index
    %c0_14 = arith.constant 0 : index
    %c0_15 = arith.constant 0 : index
    %11 = vector.load %arg4[%c1_13, %c0_14, %c0_15] : memref<2x1x32xf32, #tpu.memory_space<vmem>>, vector<1x1x32xf32>
    %12 = vector.shape_cast %11 : vector<1x1x32xf32> to vector<1x32xf32>
    %c0_16 = arith.constant 0 : index
    %c0_17 = arith.constant 0 : index
    %13 = vector.load %arg5[%c0_16, %c0_17] : memref<32x3xf32, #tpu.memory_space<vmem>>, vector<32x3xf32>
    %c0_18 = arith.constant 0 : index
    %c0_19 = arith.constant 0 : index
    %14 = vector.load %arg6[%c0_18, %c0_19] : memref<1x3xf32, #tpu.memory_space<vmem>>, vector<1x3xf32>
    %c0_20 = arith.constant 0 : index
    %c0_21 = arith.constant 0 : index
    %c0_22 = arith.constant 0 : index
    %15 = vector.load %arg1[%c0_20, %c0_21, %c0_22] : memref<2x2x32xf32, #tpu.memory_space<vmem>>, vector<1x2x32xf32>
    %16 = vector.shape_cast %15 : vector<1x2x32xf32> to vector<2x32xf32>
    %c1_23 = arith.constant 1 : index
    %c0_24 = arith.constant 0 : index
    %c0_25 = arith.constant 0 : index
    %17 = vector.load %arg1[%c1_23, %c0_24, %c0_25] : memref<2x2x32xf32, #tpu.memory_space<vmem>>, vector<1x2x32xf32>
    %18 = vector.shape_cast %17 : vector<1x2x32xf32> to vector<2x32xf32>
    %c0_26 = arith.constant 0 : index
    %c0_27 = arith.constant 0 : index
    %c0_28 = arith.constant 0 : index
    %19 = vector.load %arg0[%c0_26, %c0_27, %c0_28] : memref<2x8x4xf32, #tpu.memory_space<vmem>>, vector<1x1x4xf32>
    %20 = vector.shape_cast %19 : vector<1x1x4xf32> to vector<1x4xf32>
    %c1_29 = arith.constant 1 : index
    %c0_30 = arith.constant 0 : index
    %c0_31 = arith.constant 0 : index
    %21 = vector.load %arg0[%c1_29, %c0_30, %c0_31] : memref<2x8x4xf32, #tpu.memory_space<vmem>>, vector<1x1x4xf32>
    %22 = vector.shape_cast %21 : vector<1x1x4xf32> to vector<1x4xf32>
    %23 = tpu.concatenate %20, %22 in 0 : vector<1x4xf32>, vector<1x4xf32> -> vector<2x4xf32>
    %cst = arith.constant dense<0.000000e+00> : vector<2x32xf32>
    %24 = tpu.matmul %23, %4, %cst {dimension_numbers = #tpu.dot_dimension_numbers<[1], [0], [0], [1], [0, 0, 1, 1], [], []>} : vector<2x4xf32>, vector<4x32xf32>, vector<2x32xf32> -> vector<2x32xf32>
    %25 = vector.broadcast %10 : vector<1x32xf32> to vector<2x32xf32>
    %26 = arith.addf %24, %25 : vector<2x32xf32>
    %cst_32 = arith.constant dense<0.000000e+00> : vector<2x32xf32>
    %27 = tpu.matmul %16, %6, %cst_32 {dimension_numbers = #tpu.dot_dimension_numbers<[1], [0], [0], [1], [0, 0, 1, 1], [], []>} : vector<2x32xf32>, vector<32x32xf32>, vector<2x32xf32> -> vector<2x32xf32>
    %28 = arith.addf %26, %27 : vector<2x32xf32>
    %29 = math.tanh %28 : vector<2x32xf32>
    %c0_33 = arith.constant 0 : index
    %c1_34 = arith.constant 1 : index
    %c0_35 = arith.constant 0 : index
    %30 = vector.load %arg0[%c0_33, %c1_34, %c0_35] : memref<2x8x4xf32, #tpu.memory_space<vmem>>, vector<1x1x4xf32>
    %31 = vector.shape_cast %30 : vector<1x1x4xf32> to vector<1x4xf32>
    %c1_36 = arith.constant 1 : index
    %c1_37 = arith.constant 1 : index
    %c0_38 = arith.constant 0 : index
    %32 = vector.load %arg0[%c1_36, %c1_37, %c0_38] : memref<2x8x4xf32, #tpu.memory_space<vmem>>, vector<1x1x4xf32>
    %33 = vector.shape_cast %32 : vector<1x1x4xf32> to vector<1x4xf32>
    %34 = tpu.concatenate %31, %33 in 0 : vector<1x4xf32>, vector<1x4xf32> -> vector<2x4xf32>
    %cst_39 = arith.constant dense<0.000000e+00> : vector<2x32xf32>
    %35 = tpu.matmul %34, %4, %cst_39 {dimension_numbers = #tpu.dot_dimension_numbers<[1], [0], [0], [1], [0, 0, 1, 1], [], []>} : vector<2x4xf32>, vector<4x32xf32>, vector<2x32xf32> -> vector<2x32xf32>
    %36 = vector.broadcast %10 : vector<1x32xf32> to vector<2x32xf32>
    %37 = arith.addf %35, %36 : vector<2x32xf32>
    %cst_40 = arith.constant dense<0.000000e+00> : vector<2x32xf32>
    %38 = tpu.matmul %29, %6, %cst_40 {dimension_numbers = #tpu.dot_dimension_numbers<[1], [0], [0], [1], [0, 0, 1, 1], [], []>} : vector<2x32xf32>, vector<32x32xf32>, vector<2x32xf32> -> vector<2x32xf32>
    %39 = arith.addf %37, %38 : vector<2x32xf32>
    %40 = math.tanh %39 : vector<2x32xf32>
    %cst_41 = arith.constant dense<0.000000e+00> : vector<2x32xf32>
    %41 = tpu.matmul %29, %3, %cst_41 {dimension_numbers = #tpu.dot_dimension_numbers<[1], [0], [0], [1], [0, 0, 1, 1], [], []>} : vector<2x32xf32>, vector<32x32xf32>, vector<2x32xf32> -> vector<2x32xf32>
    %42 = vector.broadcast %12 : vector<1x32xf32> to vector<2x32xf32>
    %43 = arith.addf %41, %42 : vector<2x32xf32>
    %cst_42 = arith.constant dense<0.000000e+00> : vector<2x32xf32>
    %44 = tpu.matmul %18, %8, %cst_42 {dimension_numbers = #tpu.dot_dimension_numbers<[1], [0], [0], [1], [0, 0, 1, 1], [], []>} : vector<2x32xf32>, vector<32x32xf32>, vector<2x32xf32> -> vector<2x32xf32>
    %45 = arith.addf %43, %44 : vector<2x32xf32>
    %46 = math.tanh %45 : vector<2x32xf32>
    %cst_43 = arith.constant dense<0.000000e+00> : vector<2x3xf32>
    %47 = tpu.matmul %46, %13, %cst_43 {dimension_numbers = #tpu.dot_dimension_numbers<[1], [0], [0], [1], [0, 0, 1, 1], [], []>} : vector<2x32xf32>, vector<32x3xf32>, vector<2x3xf32> -> vector<2x3xf32>
    %48 = vector.broadcast %14 : vector<1x3xf32> to vector<2x3xf32>
    %49 = arith.addf %47, %48 : vector<2x3xf32>
    %50 = vector.extract_strided_slice %49 {offsets = [0, 0], sizes = [1, 3], strides = [1, 1]} : vector<2x3xf32> to vector<1x3xf32>
    %c0_44 = arith.constant 0 : index
    %c0_45 = arith.constant 0 : index
    %c0_46 = arith.constant 0 : index
    %51 = vector.load %arg7[%c0_44, %c0_45, %c0_46] : memref<2x8x3xf32, #tpu.memory_space<vmem>>, vector<1x1x3xf32>
    %52 = vector.shape_cast %51 : vector<1x1x3xf32> to vector<1x3xf32>
    %53 = vector.shape_cast %50 : vector<1x3xf32> to vector<1x1x3xf32>
    tpu.vector_store %arg7[%c0_44, %c0_45, %c0_46], %53 {strides = array<i32>} : memref<2x8x3xf32, #tpu.memory_space<vmem>>, vector<1x1x3xf32>,
    %54 = vector.extract_strided_slice %49 {offsets = [1, 0], sizes = [1, 3], strides = [1, 1]} : vector<2x3xf32> to vector<1x3xf32>
    %c1_47 = arith.constant 1 : index
    %c0_48 = arith.constant 0 : index
    %c0_49 = arith.constant 0 : index
    %55 = vector.load %arg7[%c1_47, %c0_48, %c0_49] : memref<2x8x3xf32, #tpu.memory_space<vmem>>, vector<1x1x3xf32>
    %56 = vector.shape_cast %55 : vector<1x1x3xf32> to vector<1x3xf32>
    %57 = vector.shape_cast %54 : vector<1x3xf32> to vector<1x1x3xf32>
    tpu.vector_store %arg7[%c1_47, %c0_48, %c0_49], %57 {strides = array<i32>} : memref<2x8x3xf32, #tpu.memory_space<vmem>>, vector<1x1x3xf32>,
    %c0_50 = arith.constant 0 : index
    %c2 = arith.constant 2 : index
    %c0_51 = arith.constant 0 : index
    %58 = vector.load %arg0[%c0_50, %c2, %c0_51] : memref<2x8x4xf32, #tpu.memory_space<vmem>>, vector<1x1x4xf32>
    %59 = vector.shape_cast %58 : vector<1x1x4xf32> to vector<1x4xf32>
    %c1_52 = arith.constant 1 : index
    %c2_53 = arith.constant 2 : index
    %c0_54 = arith.constant 0 : index
    %60 = vector.load %arg0[%c1_52, %c2_53, %c0_54] : memref<2x8x4xf32, #tpu.memory_space<vmem>>, vector<1x1x4xf32>
    %61 = vector.shape_cast %60 : vector<1x1x4xf32> to vector<1x4xf32>
    %62 = tpu.concatenate %59, %61 in 0 : vector<1x4xf32>, vector<1x4xf32> -> vector<2x4xf32>
    %cst_55 = arith.constant dense<0.000000e+00> : vector<2x32xf32>
    %63 = tpu.matmul %62, %4, %cst_55 {dimension_numbers = #tpu.dot_dimension_numbers<[1], [0], [0], [1], [0, 0, 1, 1], [], []>} : vector<2x4xf32>, vector<4x32xf32>, vector<2x32xf32> -> vector<2x32xf32>
    %64 = vector.broadcast %10 : vector<1x32xf32> to vector<2x32xf32>
    %65 = arith.addf %63, %64 : vector<2x32xf32>
    %cst_56 = arith.constant dense<0.000000e+00> : vector<2x32xf32>
    %66 = tpu.matmul %40, %6, %cst_56 {dimension_numbers = #tpu.dot_dimension_numbers<[1], [0], [0], [1], [0, 0, 1, 1], [], []>} : vector<2x32xf32>, vector<32x32xf32>, vector<2x32xf32> -> vector<2x32xf32>
    %67 = arith.addf %65, %66 : vector<2x32xf32>
    %68 = math.tanh %67 : vector<2x32xf32>
    %cst_57 = arith.constant dense<0.000000e+00> : vector<2x32xf32>
    %69 = tpu.matmul %40, %3, %cst_57 {dimension_numbers = #tpu.dot_dimension_numbers<[1], [0], [0], [1], [0, 0, 1, 1], [], []>} : vector<2x32xf32>, vector<32x32xf32>, vector<2x32xf32> -> vector<2x32xf32>
    %70 = vector.broadcast %12 : vector<1x32xf32> to vector<2x32xf32>
    %71 = arith.addf %69, %70 : vector<2x32xf32>
    %cst_58 = arith.constant dense<0.000000e+00> : vector<2x32xf32>
    %72 = tpu.matmul %46, %8, %cst_58 {dimension_numbers = #tpu.dot_dimension_numbers<[1], [0], [0], [1], [0, 0, 1, 1], [], []>} : vector<2x32xf32>, vector<32x32xf32>, vector<2x32xf32> -> vector<2x32xf32>
    %73 = arith.addf %71, %72 : vector<2x32xf32>
    %74 = math.tanh %73 : vector<2x32xf32>
    %cst_59 = arith.constant dense<0.000000e+00> : vector<2x3xf32>
    %75 = tpu.matmul %74, %13, %cst_59 {dimension_numbers = #tpu.dot_dimension_numbers<[1], [0], [0], [1], [0, 0, 1, 1], [], []>} : vector<2x32xf32>, vector<32x3xf32>, vector<2x3xf32> -> vector<2x3xf32>
    %76 = vector.broadcast %14 : vector<1x3xf32> to vector<2x3xf32>
    %77 = arith.addf %75, %76 : vector<2x3xf32>
    %78 = vector.extract_strided_slice %77 {offsets = [0, 0], sizes = [1, 3], strides = [1, 1]} : vector<2x3xf32> to vector<1x3xf32>
    %c0_60 = arith.constant 0 : index
    %c1_61 = arith.constant 1 : index
    %c0_62 = arith.constant 0 : index
    %79 = vector.load %arg7[%c0_60, %c1_61, %c0_62] : memref<2x8x3xf32, #tpu.memory_space<vmem>>, vector<1x1x3xf32>
    %80 = vector.shape_cast %79 : vector<1x1x3xf32> to vector<1x3xf32>
    %81 = vector.shape_cast %78 : vector<1x3xf32> to vector<1x1x3xf32>
    tpu.vector_store %arg7[%c0_60, %c1_61, %c0_62], %81 {strides = array<i32>} : memref<2x8x3xf32, #tpu.memory_space<vmem>>, vector<1x1x3xf32>,
    %82 = vector.extract_strided_slice %77 {offsets = [1, 0], sizes = [1, 3], strides = [1, 1]} : vector<2x3xf32> to vector<1x3xf32>
    %c1_63 = arith.constant 1 : index
    %c1_64 = arith.constant 1 : index
    %c0_65 = arith.constant 0 : index
    %83 = vector.load %arg7[%c1_63, %c1_64, %c0_65] : memref<2x8x3xf32, #tpu.memory_space<vmem>>, vector<1x1x3xf32>
    %84 = vector.shape_cast %83 : vector<1x1x3xf32> to vector<1x3xf32>
    %85 = vector.shape_cast %82 : vector<1x3xf32> to vector<1x1x3xf32>
    tpu.vector_store %arg7[%c1_63, %c1_64, %c0_65], %85 {strides = array<i32>} : memref<2x8x3xf32, #tpu.memory_space<vmem>>, vector<1x1x3xf32>,
    %c0_66 = arith.constant 0 : index
    %c3 = arith.constant 3 : index
    %c0_67 = arith.constant 0 : index
    %86 = vector.load %arg0[%c0_66, %c3, %c0_67] : memref<2x8x4xf32, #tpu.memory_space<vmem>>, vector<1x1x4xf32>
    %87 = vector.shape_cast %86 : vector<1x1x4xf32> to vector<1x4xf32>
    %c1_68 = arith.constant 1 : index
    %c3_69 = arith.constant 3 : index
    %c0_70 = arith.constant 0 : index
    %88 = vector.load %arg0[%c1_68, %c3_69, %c0_70] : memref<2x8x4xf32, #tpu.memory_space<vmem>>, vector<1x1x4xf32>
    %89 = vector.shape_cast %88 : vector<1x1x4xf32> to vector<1x4xf32>
    %90 = tpu.concatenate %87, %89 in 0 : vector<1x4xf32>, vector<1x4xf32> -> vector<2x4xf32>
    %cst_71 = arith.constant dense<0.000000e+00> : vector<2x32xf32>
    %91 = tpu.matmul %90, %4, %cst_71 {dimension_numbers = #tpu.dot_dimension_numbers<[1], [0], [0], [1], [0, 0, 1, 1], [], []>} : vector<2x4xf32>, vector<4x32xf32>, vector<2x32xf32> -> vector<2x32xf32>
    %92 = vector.broadcast %10 : vector<1x32xf32> to vector<2x32xf32>
    %93 = arith.addf %91, %92 : vector<2x32xf32>
    %cst_72 = arith.constant dense<0.000000e+00> : vector<2x32xf32>
    %94 = tpu.matmul %68, %6, %cst_72 {dimension_numbers = #tpu.dot_dimension_numbers<[1], [0], [0], [1], [0, 0, 1, 1], [], []>} : vector<2x32xf32>, vector<32x32xf32>, vector<2x32xf32> -> vector<2x32xf32>
    %95 = arith.addf %93, %94 : vector<2x32xf32>
    %96 = math.tanh %95 : vector<2x32xf32>
    %cst_73 = arith.constant dense<0.000000e+00> : vector<2x32xf32>
    %97 = tpu.matmul %68, %3, %cst_73 {dimension_numbers = #tpu.dot_dimension_numbers<[1], [0], [0], [1], [0, 0, 1, 1], [], []>} : vector<2x32xf32>, vector<32x32xf32>, vector<2x32xf32> -> vector<2x32xf32>
    %98 = vector.broadcast %12 : vector<1x32xf32> to vector<2x32xf32>
    %99 = arith.addf %97, %98 : vector<2x32xf32>
    %cst_74 = arith.constant dense<0.000000e+00> : vector<2x32xf32>
    %100 = tpu.matmul %74, %8, %cst_74 {dimension_numbers = #tpu.dot_dimension_numbers<[1], [0], [0], [1], [0, 0, 1, 1], [], []>} : vector<2x32xf32>, vector<32x32xf32>, vector<2x32xf32> -> vector<2x32xf32>
    %101 = arith.addf %99, %100 : vector<2x32xf32>
    %102 = math.tanh %101 : vector<2x32xf32>
    %cst_75 = arith.constant dense<0.000000e+00> : vector<2x3xf32>
    %103 = tpu.matmul %102, %13, %cst_75 {dimension_numbers = #tpu.dot_dimension_numbers<[1], [0], [0], [1], [0, 0, 1, 1], [], []>} : vector<2x32xf32>, vector<32x3xf32>, vector<2x3xf32> -> vector<2x3xf32>
    %104 = vector.broadcast %14 : vector<1x3xf32> to vector<2x3xf32>
    %105 = arith.addf %103, %104 : vector<2x3xf32>
    %106 = vector.extract_strided_slice %105 {offsets = [0, 0], sizes = [1, 3], strides = [1, 1]} : vector<2x3xf32> to vector<1x3xf32>
    %c0_76 = arith.constant 0 : index
    %c2_77 = arith.constant 2 : index
    %c0_78 = arith.constant 0 : index
    %107 = vector.load %arg7[%c0_76, %c2_77, %c0_78] : memref<2x8x3xf32, #tpu.memory_space<vmem>>, vector<1x1x3xf32>
    %108 = vector.shape_cast %107 : vector<1x1x3xf32> to vector<1x3xf32>
    %109 = vector.shape_cast %106 : vector<1x3xf32> to vector<1x1x3xf32>
    tpu.vector_store %arg7[%c0_76, %c2_77, %c0_78], %109 {strides = array<i32>} : memref<2x8x3xf32, #tpu.memory_space<vmem>>, vector<1x1x3xf32>,
    %110 = vector.extract_strided_slice %105 {offsets = [1, 0], sizes = [1, 3], strides = [1, 1]} : vector<2x3xf32> to vector<1x3xf32>
    %c1_79 = arith.constant 1 : index
    %c2_80 = arith.constant 2 : index
    %c0_81 = arith.constant 0 : index
    %111 = vector.load %arg7[%c1_79, %c2_80, %c0_81] : memref<2x8x3xf32, #tpu.memory_space<vmem>>, vector<1x1x3xf32>
    %112 = vector.shape_cast %111 : vector<1x1x3xf32> to vector<1x3xf32>
    %113 = vector.shape_cast %110 : vector<1x3xf32> to vector<1x1x3xf32>
    tpu.vector_store %arg7[%c1_79, %c2_80, %c0_81], %113 {strides = array<i32>} : memref<2x8x3xf32, #tpu.memory_space<vmem>>, vector<1x1x3xf32>,
    %c0_82 = arith.constant 0 : index
    %c4 = arith.constant 4 : index
    %c0_83 = arith.constant 0 : index
    %114 = vector.load %arg0[%c0_82, %c4, %c0_83] : memref<2x8x4xf32, #tpu.memory_space<vmem>>, vector<1x1x4xf32>
    %115 = vector.shape_cast %114 : vector<1x1x4xf32> to vector<1x4xf32>
    %c1_84 = arith.constant 1 : index
    %c4_85 = arith.constant 4 : index
    %c0_86 = arith.constant 0 : index
    %116 = vector.load %arg0[%c1_84, %c4_85, %c0_86] : memref<2x8x4xf32, #tpu.memory_space<vmem>>, vector<1x1x4xf32>
    %117 = vector.shape_cast %116 : vector<1x1x4xf32> to vector<1x4xf32>
    %118 = tpu.concatenate %115, %117 in 0 : vector<1x4xf32>, vector<1x4xf32> -> vector<2x4xf32>
    %cst_87 = arith.constant dense<0.000000e+00> : vector<2x32xf32>
    %119 = tpu.matmul %118, %4, %cst_87 {dimension_numbers = #tpu.dot_dimension_numbers<[1], [0], [0], [1], [0, 0, 1, 1], [], []>} : vector<2x4xf32>, vector<4x32xf32>, vector<2x32xf32> -> vector<2x32xf32>
    %120 = vector.broadcast %10 : vector<1x32xf32> to vector<2x32xf32>
    %121 = arith.addf %119, %120 : vector<2x32xf32>
    %cst_88 = arith.constant dense<0.000000e+00> : vector<2x32xf32>
    %122 = tpu.matmul %96, %6, %cst_88 {dimension_numbers = #tpu.dot_dimension_numbers<[1], [0], [0], [1], [0, 0, 1, 1], [], []>} : vector<2x32xf32>, vector<32x32xf32>, vector<2x32xf32> -> vector<2x32xf32>
    %123 = arith.addf %121, %122 : vector<2x32xf32>
    %124 = math.tanh %123 : vector<2x32xf32>
    %cst_89 = arith.constant dense<0.000000e+00> : vector<2x32xf32>
    %125 = tpu.matmul %96, %3, %cst_89 {dimension_numbers = #tpu.dot_dimension_numbers<[1], [0], [0], [1], [0, 0, 1, 1], [], []>} : vector<2x32xf32>, vector<32x32xf32>, vector<2x32xf32> -> vector<2x32xf32>
    %126 = vector.broadcast %12 : vector<1x32xf32> to vector<2x32xf32>
    %127 = arith.addf %125, %126 : vector<2x32xf32>
    %cst_90 = arith.constant dense<0.000000e+00> : vector<2x32xf32>
    %128 = tpu.matmul %102, %8, %cst_90 {dimension_numbers = #tpu.dot_dimension_numbers<[1], [0], [0], [1], [0, 0, 1, 1], [], []>} : vector<2x32xf32>, vector<32x32xf32>, vector<2x32xf32> -> vector<2x32xf32>
    %129 = arith.addf %127, %128 : vector<2x32xf32>
    %130 = math.tanh %129 : vector<2x32xf32>
    %cst_91 = arith.constant dense<0.000000e+00> : vector<2x3xf32>
    %131 = tpu.matmul %130, %13, %cst_91 {dimension_numbers = #tpu.dot_dimension_numbers<[1], [0], [0], [1], [0, 0, 1, 1], [], []>} : vector<2x32xf32>, vector<32x3xf32>, vector<2x3xf32> -> vector<2x3xf32>
    %132 = vector.broadcast %14 : vector<1x3xf32> to vector<2x3xf32>
    %133 = arith.addf %131, %132 : vector<2x3xf32>
    %134 = vector.extract_strided_slice %133 {offsets = [0, 0], sizes = [1, 3], strides = [1, 1]} : vector<2x3xf32> to vector<1x3xf32>
    %c0_92 = arith.constant 0 : index
    %c3_93 = arith.constant 3 : index
    %c0_94 = arith.constant 0 : index
    %135 = vector.load %arg7[%c0_92, %c3_93, %c0_94] : memref<2x8x3xf32, #tpu.memory_space<vmem>>, vector<1x1x3xf32>
    %136 = vector.shape_cast %135 : vector<1x1x3xf32> to vector<1x3xf32>
    %137 = vector.shape_cast %134 : vector<1x3xf32> to vector<1x1x3xf32>
    tpu.vector_store %arg7[%c0_92, %c3_93, %c0_94], %137 {strides = array<i32>} : memref<2x8x3xf32, #tpu.memory_space<vmem>>, vector<1x1x3xf32>,
    %138 = vector.extract_strided_slice %133 {offsets = [1, 0], sizes = [1, 3], strides = [1, 1]} : vector<2x3xf32> to vector<1x3xf32>
    %c1_95 = arith.constant 1 : index
    %c3_96 = arith.constant 3 : index
    %c0_97 = arith.constant 0 : index
    %139 = vector.load %arg7[%c1_95, %c3_96, %c0_97] : memref<2x8x3xf32, #tpu.memory_space<vmem>>, vector<1x1x3xf32>
    %140 = vector.shape_cast %139 : vector<1x1x3xf32> to vector<1x3xf32>
    %141 = vector.shape_cast %138 : vector<1x3xf32> to vector<1x1x3xf32>
    tpu.vector_store %arg7[%c1_95, %c3_96, %c0_97], %141 {strides = array<i32>} : memref<2x8x3xf32, #tpu.memory_space<vmem>>, vector<1x1x3xf32>,
    %c0_98 = arith.constant 0 : index
    %c5 = arith.constant 5 : index
    %c0_99 = arith.constant 0 : index
    %142 = vector.load %arg0[%c0_98, %c5, %c0_99] : memref<2x8x4xf32, #tpu.memory_space<vmem>>, vector<1x1x4xf32>
    %143 = vector.shape_cast %142 : vector<1x1x4xf32> to vector<1x4xf32>
    %c1_100 = arith.constant 1 : index
    %c5_101 = arith.constant 5 : index
    %c0_102 = arith.constant 0 : index
    %144 = vector.load %arg0[%c1_100, %c5_101, %c0_102] : memref<2x8x4xf32, #tpu.memory_space<vmem>>, vector<1x1x4xf32>
    %145 = vector.shape_cast %144 : vector<1x1x4xf32> to vector<1x4xf32>
    %146 = tpu.concatenate %143, %145 in 0 : vector<1x4xf32>, vector<1x4xf32> -> vector<2x4xf32>
    %cst_103 = arith.constant dense<0.000000e+00> : vector<2x32xf32>
    %147 = tpu.matmul %146, %4, %cst_103 {dimension_numbers = #tpu.dot_dimension_numbers<[1], [0], [0], [1], [0, 0, 1, 1], [], []>} : vector<2x4xf32>, vector<4x32xf32>, vector<2x32xf32> -> vector<2x32xf32>
    %148 = vector.broadcast %10 : vector<1x32xf32> to vector<2x32xf32>
    %149 = arith.addf %147, %148 : vector<2x32xf32>
    %cst_104 = arith.constant dense<0.000000e+00> : vector<2x32xf32>
    %150 = tpu.matmul %124, %6, %cst_104 {dimension_numbers = #tpu.dot_dimension_numbers<[1], [0], [0], [1], [0, 0, 1, 1], [], []>} : vector<2x32xf32>, vector<32x32xf32>, vector<2x32xf32> -> vector<2x32xf32>
    %151 = arith.addf %149, %150 : vector<2x32xf32>
    %152 = math.tanh %151 : vector<2x32xf32>
    %cst_105 = arith.constant dense<0.000000e+00> : vector<2x32xf32>
    %153 = tpu.matmul %124, %3, %cst_105 {dimension_numbers = #tpu.dot_dimension_numbers<[1], [0], [0], [1], [0, 0, 1, 1], [], []>} : vector<2x32xf32>, vector<32x32xf32>, vector<2x32xf32> -> vector<2x32xf32>
    %154 = vector.broadcast %12 : vector<1x32xf32> to vector<2x32xf32>
    %155 = arith.addf %153, %154 : vector<2x32xf32>
    %cst_106 = arith.constant dense<0.000000e+00> : vector<2x32xf32>
    %156 = tpu.matmul %130, %8, %cst_106 {dimension_numbers = #tpu.dot_dimension_numbers<[1], [0], [0], [1], [0, 0, 1, 1], [], []>} : vector<2x32xf32>, vector<32x32xf32>, vector<2x32xf32> -> vector<2x32xf32>
    %157 = arith.addf %155, %156 : vector<2x32xf32>
    %158 = math.tanh %157 : vector<2x32xf32>
    %cst_107 = arith.constant dense<0.000000e+00> : vector<2x3xf32>
    %159 = tpu.matmul %158, %13, %cst_107 {dimension_numbers = #tpu.dot_dimension_numbers<[1], [0], [0], [1], [0, 0, 1, 1], [], []>} : vector<2x32xf32>, vector<32x3xf32>, vector<2x3xf32> -> vector<2x3xf32>
    %160 = vector.broadcast %14 : vector<1x3xf32> to vector<2x3xf32>
    %161 = arith.addf %159, %160 : vector<2x3xf32>
    %162 = vector.extract_strided_slice %161 {offsets = [0, 0], sizes = [1, 3], strides = [1, 1]} : vector<2x3xf32> to vector<1x3xf32>
    %c0_108 = arith.constant 0 : index
    %c4_109 = arith.constant 4 : index
    %c0_110 = arith.constant 0 : index
    %163 = vector.load %arg7[%c0_108, %c4_109, %c0_110] : memref<2x8x3xf32, #tpu.memory_space<vmem>>, vector<1x1x3xf32>
    %164 = vector.shape_cast %163 : vector<1x1x3xf32> to vector<1x3xf32>
    %165 = vector.shape_cast %162 : vector<1x3xf32> to vector<1x1x3xf32>
    tpu.vector_store %arg7[%c0_108, %c4_109, %c0_110], %165 {strides = array<i32>} : memref<2x8x3xf32, #tpu.memory_space<vmem>>, vector<1x1x3xf32>,
    %166 = vector.extract_strided_slice %161 {offsets = [1, 0], sizes = [1, 3], strides = [1, 1]} : vector<2x3xf32> to vector<1x3xf32>
    %c1_111 = arith.constant 1 : index
    %c4_112 = arith.constant 4 : index
    %c0_113 = arith.constant 0 : index
    %167 = vector.load %arg7[%c1_111, %c4_112, %c0_113] : memref<2x8x3xf32, #tpu.memory_space<vmem>>, vector<1x1x3xf32>
    %168 = vector.shape_cast %167 : vector<1x1x3xf32> to vector<1x3xf32>
    %169 = vector.shape_cast %166 : vector<1x3xf32> to vector<1x1x3xf32>
    tpu.vector_store %arg7[%c1_111, %c4_112, %c0_113], %169 {strides = array<i32>} : memref<2x8x3xf32, #tpu.memory_space<vmem>>, vector<1x1x3xf32>,
    %c0_114 = arith.constant 0 : index
    %c6 = arith.constant 6 : index
    %c0_115 = arith.constant 0 : index
    %170 = vector.load %arg0[%c0_114, %c6, %c0_115] : memref<2x8x4xf32, #tpu.memory_space<vmem>>, vector<1x1x4xf32>
    %171 = vector.shape_cast %170 : vector<1x1x4xf32> to vector<1x4xf32>
    %c1_116 = arith.constant 1 : index
    %c6_117 = arith.constant 6 : index
    %c0_118 = arith.constant 0 : index
    %172 = vector.load %arg0[%c1_116, %c6_117, %c0_118] : memref<2x8x4xf32, #tpu.memory_space<vmem>>, vector<1x1x4xf32>
    %173 = vector.shape_cast %172 : vector<1x1x4xf32> to vector<1x4xf32>
    %174 = tpu.concatenate %171, %173 in 0 : vector<1x4xf32>, vector<1x4xf32> -> vector<2x4xf32>
    %cst_119 = arith.constant dense<0.000000e+00> : vector<2x32xf32>
    %175 = tpu.matmul %174, %4, %cst_119 {dimension_numbers = #tpu.dot_dimension_numbers<[1], [0], [0], [1], [0, 0, 1, 1], [], []>} : vector<2x4xf32>, vector<4x32xf32>, vector<2x32xf32> -> vector<2x32xf32>
    %176 = vector.broadcast %10 : vector<1x32xf32> to vector<2x32xf32>
    %177 = arith.addf %175, %176 : vector<2x32xf32>
    %cst_120 = arith.constant dense<0.000000e+00> : vector<2x32xf32>
    %178 = tpu.matmul %152, %6, %cst_120 {dimension_numbers = #tpu.dot_dimension_numbers<[1], [0], [0], [1], [0, 0, 1, 1], [], []>} : vector<2x32xf32>, vector<32x32xf32>, vector<2x32xf32> -> vector<2x32xf32>
    %179 = arith.addf %177, %178 : vector<2x32xf32>
    %180 = math.tanh %179 : vector<2x32xf32>
    %cst_121 = arith.constant dense<0.000000e+00> : vector<2x32xf32>
    %181 = tpu.matmul %152, %3, %cst_121 {dimension_numbers = #tpu.dot_dimension_numbers<[1], [0], [0], [1], [0, 0, 1, 1], [], []>} : vector<2x32xf32>, vector<32x32xf32>, vector<2x32xf32> -> vector<2x32xf32>
    %182 = vector.broadcast %12 : vector<1x32xf32> to vector<2x32xf32>
    %183 = arith.addf %181, %182 : vector<2x32xf32>
    %cst_122 = arith.constant dense<0.000000e+00> : vector<2x32xf32>
    %184 = tpu.matmul %158, %8, %cst_122 {dimension_numbers = #tpu.dot_dimension_numbers<[1], [0], [0], [1], [0, 0, 1, 1], [], []>} : vector<2x32xf32>, vector<32x32xf32>, vector<2x32xf32> -> vector<2x32xf32>
    %185 = arith.addf %183, %184 : vector<2x32xf32>
    %186 = math.tanh %185 : vector<2x32xf32>
    %cst_123 = arith.constant dense<0.000000e+00> : vector<2x3xf32>
    %187 = tpu.matmul %186, %13, %cst_123 {dimension_numbers = #tpu.dot_dimension_numbers<[1], [0], [0], [1], [0, 0, 1, 1], [], []>} : vector<2x32xf32>, vector<32x3xf32>, vector<2x3xf32> -> vector<2x3xf32>
    %188 = vector.broadcast %14 : vector<1x3xf32> to vector<2x3xf32>
    %189 = arith.addf %187, %188 : vector<2x3xf32>
    %190 = vector.extract_strided_slice %189 {offsets = [0, 0], sizes = [1, 3], strides = [1, 1]} : vector<2x3xf32> to vector<1x3xf32>
    %c0_124 = arith.constant 0 : index
    %c5_125 = arith.constant 5 : index
    %c0_126 = arith.constant 0 : index
    %191 = vector.load %arg7[%c0_124, %c5_125, %c0_126] : memref<2x8x3xf32, #tpu.memory_space<vmem>>, vector<1x1x3xf32>
    %192 = vector.shape_cast %191 : vector<1x1x3xf32> to vector<1x3xf32>
    %193 = vector.shape_cast %190 : vector<1x3xf32> to vector<1x1x3xf32>
    tpu.vector_store %arg7[%c0_124, %c5_125, %c0_126], %193 {strides = array<i32>} : memref<2x8x3xf32, #tpu.memory_space<vmem>>, vector<1x1x3xf32>,
    %194 = vector.extract_strided_slice %189 {offsets = [1, 0], sizes = [1, 3], strides = [1, 1]} : vector<2x3xf32> to vector<1x3xf32>
    %c1_127 = arith.constant 1 : index
    %c5_128 = arith.constant 5 : index
    %c0_129 = arith.constant 0 : index
    %195 = vector.load %arg7[%c1_127, %c5_128, %c0_129] : memref<2x8x3xf32, #tpu.memory_space<vmem>>, vector<1x1x3xf32>
    %196 = vector.shape_cast %195 : vector<1x1x3xf32> to vector<1x3xf32>
    %197 = vector.shape_cast %194 : vector<1x3xf32> to vector<1x1x3xf32>
    tpu.vector_store %arg7[%c1_127, %c5_128, %c0_129], %197 {strides = array<i32>} : memref<2x8x3xf32, #tpu.memory_space<vmem>>, vector<1x1x3xf32>,
    %c0_130 = arith.constant 0 : index
    %c7 = arith.constant 7 : index
    %c0_131 = arith.constant 0 : index
    %198 = vector.load %arg0[%c0_130, %c7, %c0_131] : memref<2x8x4xf32, #tpu.memory_space<vmem>>, vector<1x1x4xf32>
    %199 = vector.shape_cast %198 : vector<1x1x4xf32> to vector<1x4xf32>
    %c1_132 = arith.constant 1 : index
    %c7_133 = arith.constant 7 : index
    %c0_134 = arith.constant 0 : index
    %200 = vector.load %arg0[%c1_132, %c7_133, %c0_134] : memref<2x8x4xf32, #tpu.memory_space<vmem>>, vector<1x1x4xf32>
    %201 = vector.shape_cast %200 : vector<1x1x4xf32> to vector<1x4xf32>
    %202 = tpu.concatenate %199, %201 in 0 : vector<1x4xf32>, vector<1x4xf32> -> vector<2x4xf32>
    %cst_135 = arith.constant dense<0.000000e+00> : vector<2x32xf32>
    %203 = tpu.matmul %202, %4, %cst_135 {dimension_numbers = #tpu.dot_dimension_numbers<[1], [0], [0], [1], [0, 0, 1, 1], [], []>} : vector<2x4xf32>, vector<4x32xf32>, vector<2x32xf32> -> vector<2x32xf32>
    %204 = vector.broadcast %10 : vector<1x32xf32> to vector<2x32xf32>
    %205 = arith.addf %203, %204 : vector<2x32xf32>
    %cst_136 = arith.constant dense<0.000000e+00> : vector<2x32xf32>
    %206 = tpu.matmul %180, %6, %cst_136 {dimension_numbers = #tpu.dot_dimension_numbers<[1], [0], [0], [1], [0, 0, 1, 1], [], []>} : vector<2x32xf32>, vector<32x32xf32>, vector<2x32xf32> -> vector<2x32xf32>
    %207 = arith.addf %205, %206 : vector<2x32xf32>
    %208 = math.tanh %207 : vector<2x32xf32>
    %cst_137 = arith.constant dense<0.000000e+00> : vector<2x32xf32>
    %209 = tpu.matmul %180, %3, %cst_137 {dimension_numbers = #tpu.dot_dimension_numbers<[1], [0], [0], [1], [0, 0, 1, 1], [], []>} : vector<2x32xf32>, vector<32x32xf32>, vector<2x32xf32> -> vector<2x32xf32>
    %210 = vector.broadcast %12 : vector<1x32xf32> to vector<2x32xf32>
    %211 = arith.addf %209, %210 : vector<2x32xf32>
    %cst_138 = arith.constant dense<0.000000e+00> : vector<2x32xf32>
    %212 = tpu.matmul %186, %8, %cst_138 {dimension_numbers = #tpu.dot_dimension_numbers<[1], [0], [0], [1], [0, 0, 1, 1], [], []>} : vector<2x32xf32>, vector<32x32xf32>, vector<2x32xf32> -> vector<2x32xf32>
    %213 = arith.addf %211, %212 : vector<2x32xf32>
    %214 = math.tanh %213 : vector<2x32xf32>
    %cst_139 = arith.constant dense<0.000000e+00> : vector<2x3xf32>
    %215 = tpu.matmul %214, %13, %cst_139 {dimension_numbers = #tpu.dot_dimension_numbers<[1], [0], [0], [1], [0, 0, 1, 1], [], []>} : vector<2x32xf32>, vector<32x3xf32>, vector<2x3xf32> -> vector<2x3xf32>
    %216 = vector.broadcast %14 : vector<1x3xf32> to vector<2x3xf32>
    %217 = arith.addf %215, %216 : vector<2x3xf32>
    %218 = vector.extract_strided_slice %217 {offsets = [0, 0], sizes = [1, 3], strides = [1, 1]} : vector<2x3xf32> to vector<1x3xf32>
    %c0_140 = arith.constant 0 : index
    %c6_141 = arith.constant 6 : index
    %c0_142 = arith.constant 0 : index
    %219 = vector.load %arg7[%c0_140, %c6_141, %c0_142] : memref<2x8x3xf32, #tpu.memory_space<vmem>>, vector<1x1x3xf32>
    %220 = vector.shape_cast %219 : vector<1x1x3xf32> to vector<1x3xf32>
    %221 = vector.shape_cast %218 : vector<1x3xf32> to vector<1x1x3xf32>
    tpu.vector_store %arg7[%c0_140, %c6_141, %c0_142], %221 {strides = array<i32>} : memref<2x8x3xf32, #tpu.memory_space<vmem>>, vector<1x1x3xf32>,
    %222 = vector.extract_strided_slice %217 {offsets = [1, 0], sizes = [1, 3], strides = [1, 1]} : vector<2x3xf32> to vector<1x3xf32>
    %c1_143 = arith.constant 1 : index
    %c6_144 = arith.constant 6 : index
    %c0_145 = arith.constant 0 : index
    %223 = vector.load %arg7[%c1_143, %c6_144, %c0_145] : memref<2x8x3xf32, #tpu.memory_space<vmem>>, vector<1x1x3xf32>
    %224 = vector.shape_cast %223 : vector<1x1x3xf32> to vector<1x3xf32>
    %225 = vector.shape_cast %222 : vector<1x3xf32> to vector<1x1x3xf32>
    tpu.vector_store %arg7[%c1_143, %c6_144, %c0_145], %225 {strides = array<i32>} : memref<2x8x3xf32, #tpu.memory_space<vmem>>, vector<1x1x3xf32>,
    %cst_146 = arith.constant dense<0.000000e+00> : vector<2x32xf32>
    %226 = tpu.matmul %208, %3, %cst_146 {dimension_numbers = #tpu.dot_dimension_numbers<[1], [0], [0], [1], [0, 0, 1, 1], [], []>} : vector<2x32xf32>, vector<32x32xf32>, vector<2x32xf32> -> vector<2x32xf32>
    %227 = vector.broadcast %12 : vector<1x32xf32> to vector<2x32xf32>
    %228 = arith.addf %226, %227 : vector<2x32xf32>
    %cst_147 = arith.constant dense<0.000000e+00> : vector<2x32xf32>
    %229 = tpu.matmul %214, %8, %cst_147 {dimension_numbers = #tpu.dot_dimension_numbers<[1], [0], [0], [1], [0, 0, 1, 1], [], []>} : vector<2x32xf32>, vector<32x32xf32>, vector<2x32xf32> -> vector<2x32xf32>
    %230 = arith.addf %228, %229 : vector<2x32xf32>
    %231 = math.tanh %230 : vector<2x32xf32>
    %cst_148 = arith.constant dense<0.000000e+00> : vector<2x3xf32>
    %232 = tpu.matmul %231, %13, %cst_148 {dimension_numbers = #tpu.dot_dimension_numbers<[1], [0], [0], [1], [0, 0, 1, 1], [], []>} : vector<2x32xf32>, vector<32x3xf32>, vector<2x3xf32> -> vector<2x3xf32>
    %233 = vector.broadcast %14 : vector<1x3xf32> to vector<2x3xf32>
    %234 = arith.addf %232, %233 : vector<2x3xf32>
    %235 = vector.extract_strided_slice %234 {offsets = [0, 0], sizes = [1, 3], strides = [1, 1]} : vector<2x3xf32> to vector<1x3xf32>
    %c0_149 = arith.constant 0 : index
    %c7_150 = arith.constant 7 : index
    %c0_151 = arith.constant 0 : index
    %236 = vector.load %arg7[%c0_149, %c7_150, %c0_151] : memref<2x8x3xf32, #tpu.memory_space<vmem>>, vector<1x1x3xf32>
    %237 = vector.shape_cast %236 : vector<1x1x3xf32> to vector<1x3xf32>
    %238 = vector.shape_cast %235 : vector<1x3xf32> to vector<1x1x3xf32>
    tpu.vector_store %arg7[%c0_149, %c7_150, %c0_151], %238 {strides = array<i32>} : memref<2x8x3xf32, #tpu.memory_space<vmem>>, vector<1x1x3xf32>,
    %239 = vector.extract_strided_slice %234 {offsets = [1, 0], sizes = [1, 3], strides = [1, 1]} : vector<2x3xf32> to vector<1x3xf32>
    %c1_152 = arith.constant 1 : index
    %c7_153 = arith.constant 7 : index
    %c0_154 = arith.constant 0 : index
    %240 = vector.load %arg7[%c1_152, %c7_153, %c0_154] : memref<2x8x3xf32, #tpu.memory_space<vmem>>, vector<1x1x3xf32>
    %241 = vector.shape_cast %240 : vector<1x1x3xf32> to vector<1x3xf32>
    %242 = vector.shape_cast %239 : vector<1x3xf32> to vector<1x1x3xf32>
    tpu.vector_store %arg7[%c1_152, %c7_153, %c0_154], %242 {strides = array<i32>} : memref<2x8x3xf32, #tpu.memory_space<vmem>>, vector<1x1x3xf32>,
    %c0_155 = arith.constant 0 : index
    %c0_156 = arith.constant 0 : index
    %c0_157 = arith.constant 0 : index
    %243 = vector.load %arg8[%c0_155, %c0_156, %c0_157] : memref<2x2x32xf32, #tpu.memory_space<vmem>>, vector<1x2x32xf32>
    %244 = vector.shape_cast %243 : vector<1x2x32xf32> to vector<2x32xf32>
    %245 = vector.shape_cast %208 : vector<2x32xf32> to vector<1x2x32xf32>
    tpu.vector_store %arg8[%c0_155, %c0_156, %c0_157], %245 {strides = array<i32>} : memref<2x2x32xf32, #tpu.memory_space<vmem>>, vector<1x2x32xf32>,
    %c1_158 = arith.constant 1 : index
    %c0_159 = arith.constant 0 : index
    %c0_160 = arith.constant 0 : index
    %246 = vector.load %arg8[%c1_158, %c0_159, %c0_160] : memref<2x2x32xf32, #tpu.memory_space<vmem>>, vector<1x2x32xf32>
    %247 = vector.shape_cast %246 : vector<1x2x32xf32> to vector<2x32xf32>
    %248 = vector.shape_cast %231 : vector<2x32xf32> to vector<1x2x32xf32>
    tpu.vector_store %arg8[%c1_158, %c0_159, %c0_160], %248 {strides = array<i32>} : memref<2x2x32xf32, #tpu.memory_space<vmem>>, vector<1x2x32xf32>,
    return
  }
}

</mosaic_0001>

<llo_original>
// kernel: network_forward.1
$region0: #{network_forward.1}
  #allocation0 [shape = 'u32[]', space=smem, size = 0x4, offset = 0x4, fixed_abs, tag = 'smem constant byte address 0x4 - core index']
  #allocation1 [shape = 'u32[144,128]{1,0:T(1,128)}', space=vmem, size = 0x12000, scoped, tag = 'internal scratch']
  %s0 = inlined_call_operand.vmem [shape: f32[2,8,4], index: 0, kind: input, shape index: {}]
  %s1 = inlined_call_operand.vmem [shape: f32[2,2,32], index: 1, kind: input, shape index: {}]
  %s2 = inlined_call_operand.vmem [shape: f32[2,32,32], index: 2, kind: input, shape index: {}]
  %s3 = inlined_call_operand.hbm [shape: f32[2,32,32], index: 3, kind: input, shape index: {}]
  %s4 = inlined_call_operand.vmem [shape: f32[2,1,32], index: 4, kind: input, shape index: {}]
  %s5 = inlined_call_operand.vmem [shape: f32[32,3], index: 5, kind: input, shape index: {}]
  %s6 = inlined_call_operand.vmem [shape: f32[1,3], index: 6, kind: input, shape index: {}]
  %s7 = inlined_call_operand.vmem [shape: f32[2,8,3], index: 7, kind: output, shape index: {0}]
  %s8 = inlined_call_operand.hbm [shape: f32[2,2,32], index: 8, kind: output, shape index: {1}]
  %9 = xla_tuple %s7, %s8
  %s10 = sld [smem:[#allocation0]]
  $region50: #{network_forward.1} parent=0
    _
  %s12 = ssub.s32 1, %s10
  %s13 = scalar_select 0, %s12, %s10
  $region1: #{network_forward.1} parent=0
    #allocation2 [shape = 'u8[32768]{0}', space=vmem, size = 0x8000, scoped, tag = 'input window, operand 3, single buffered']
    #allocation3 [shape = 's32[1]{0}', space=sflag, size = 0x4, scoped, tag = 'scoped memory for network_forward.1']
    #allocation4 [shape = 's32[1]{0}', space=sflag, size = 0x4, scoped, tag = 'scoped memory for network_forward.1']
    #allocation5 [shape = 'u8[2048]{0}', space=vmem, size = 0x800, scoped, tag = 'output window, operand 1, single buffered']
    %14 = vsyncpa [#allocation3], 0
    %15 = vsyncpa [#allocation4], 0
    // Predicated region
    $region2: #{network_forward.1} parent=1 // pred_check
      _
    $region3: #{network_forward.1} parent=1 // pred_check_branch
      %17 = sbr.rel (0) target = $region5
    $region4: #{network_forward.1} parent=1 // pred_region
      _
    $region5: #{network_forward.1} parent=1 // pred_fallthru
      _
    // Predicated region
    $region6: #{network_forward.1} parent=1 // pred_check
      _
    $region7: #{network_forward.1} parent=1 // pred_check_branch
      %19 = sbr.rel (0) target = $region9
    $region8: #{network_forward.1} parent=1 // pred_region
      _
    $region9: #{network_forward.1} parent=1 // pred_fallthru
      _
    // Predicated region
    $region10: #{network_forward.1} parent=1 // pred_check
      _
    $region11: #{network_forward.1} parent=1 // pred_check_branch
      %21 = sbr.rel (0) target = $region13
    $region12: #{network_forward.1} parent=1 // pred_region
      _
    $region13: #{network_forward.1} parent=1 // pred_fallthru
      _
    // Predicated region
    $region14: #{network_forward.1} parent=1 // pred_check
      _
    $region15: #{network_forward.1} parent=1 // pred_check_branch
      %23 = sbr.rel (0) target = $region17
    $region16: #{network_forward.1} parent=1 // pred_region
      %s25 = ssub.s32 1024, 1024
      %26 = vsyncadd [#allocation3], %s25
      %s27 = sshll.u32 [#allocation2], 4
      %s28 = int_to_ptr.vmem [resolvable:$true] %s27
      %33 = dma.hbm_to_vmem [thread:$0]  %s3, 1024, %s28, [#allocation3], 128, 128, 8
    $region17: #{network_forward.1} parent=1 // pred_fallthru
      _
    // Predicated region
    $region18: #{network_forward.1} parent=1 // pred_check
      _
    $region19: #{network_forward.1} parent=1 // pred_check_branch
      %35 = sbr.rel (0) target = $region21
    $region20: #{network_forward.1} parent=1 // pred_region
      _
    $region21: #{network_forward.1} parent=1 // pred_fallthru
      _
    // Predicated region
    $region22: #{network_forward.1} parent=1 // pred_check
      _
    $region23: #{network_forward.1} parent=1 // pred_check_branch
      %37 = sbr.rel (0) target = $region25
    $region24: #{network_forward.1} parent=1 // pred_region
      _
    $region25: #{network_forward.1} parent=1 // pred_fallthru
      _
    // Predicated region
    $region26: #{network_forward.1} parent=1 // pred_check
      _
    $region27: #{network_forward.1} parent=1 // pred_check_branch
      %39 = sbr.rel (0) target = $region29
    $region28: #{network_forward.1} parent=1 // pred_region
      _
    $region29: #{network_forward.1} parent=1 // pred_fallthru
      _
    // Predicated region
    $region30: #{network_forward.1} parent=1 // pred_check
      _
    $region31: #{network_forward.1} parent=1 // pred_check_branch
      %41 = sbr.rel (0) target = $region33
    $region32: #{network_forward.1} parent=1 // pred_region
      %42 = dma.done [#allocation3], 1024
    $region33: #{network_forward.1} parent=1 // pred_fallthru
      _
    %v43 = vld [vmem:[%s2] sm:$0xff]
    %s44 = scalar_lea.vmem %s2, 32
    %v45 = vld [vmem:[%s44] sm:$0xff]
    %v46 = vld [vmem:[%s44 + $0x8] sm:$0xff]
    %v47 = vld [vmem:[%s44 + $0x10] sm:$0xff]
    %v48 = vld [vmem:[%s44 + $0x18] sm:$0xff]
    %v49 = vld [vmem:[#allocation2] sm:$0xff]
    %v50 = vld [vmem:[#allocation2 + $0x8] sm:$0xff]
    %v51 = vld [vmem:[#allocation2 + $0x10] sm:$0xff]
    %v52 = vld [vmem:[#allocation2 + $0x18] sm:$0xff]
    %s53 = scalar_lea.vmem [#allocation2], 32
    %v54 = vld [vmem:[%s53] sm:$0xff]
    %v55 = vld [vmem:[%s53 + $0x8] sm:$0xff]
    %v56 = vld [vmem:[%s53 + $0x10] sm:$0xff]
    %v57 = vld [vmem:[%s53 + $0x18] sm:$0xff]
    %v58 = vld [vmem:[%s4] sm:$0x1]
    %s59 = scalar_lea.vmem %s4, 1
    %v60 = vld [vmem:[%s59] sm:$0x1]
    %v61 = vld [vmem:[%s5] sm:$0xff]
    %v62 = vld [vmem:[%s5 + $0x8] sm:$0xff]
    %v63 = vld [vmem:[%s5 + $0x10] sm:$0xff]
    %v64 = vld [vmem:[%s5 + $0x18] sm:$0xff]
    %v65 = vld [vmem:[%s6] sm:$0x1]
    %v66 = vld [vmem:[%s1] sm:$0x3]
    %s67 = scalar_lea.vmem %s1, 2
    %v68 = vld [vmem:[%s67] sm:$0x3]
    %v69 = vld [vmem:[%s0] sm:$0x1]
    %s70 = scalar_lea.vmem %s0, 8
    %v71 = vld [vmem:[%s70] sm:$0x1]
    %v73 = vrot.slane %v71, 7
    %vm75 = vcmask 1040384
    %v76 = vsel %vm75, %v69, %v73
    %v78 = vlaneseq
    %v79 = vshrl.u32 %v78, 7
    %v80 = vsub.s32 0, %v79
    %v81 = vrot.slane %v58, %v80
    %vm83 = vcmask 31744
    %v85 = vsel %vm83, %v76, 0
    %vm87 = vcmask 1043456
    %v89 = vsel %vm87, %v43, 0
    %91 = vmatprep.subr.mxu0 0.0
    %92 = vmatpush1.msra.mxu0 %v89
    %93 = vmatprep.subr.mxu0 0.0
    %94 = vmatpush1.msra.mxu0 0.0
    %95 = vmatprep.subr.mxu0 0.0
    %96 = vmatpush1.msra.mxu0 0.0
    %97 = vmatprep.subr.mxu0 0.0
    %98 = vmatpush1.msra.mxu0 0.0
    %99 = vmatprep.subr.mxu0 0.0
    %100 = vmatpush1.msra.mxu0 0.0
    %101 = vmatprep.subr.mxu0 0.0
    %102 = vmatpush1.msra.mxu0 0.0
    %103 = vmatprep.subr.mxu0 0.0
    %104 = vmatpush1.msra.mxu0 0.0
    %105 = vmatprep.subr.mxu0 0.0
    %106 = vmatpush1.msra.mxu0 0.0
    %107 = vmatprep.subr.mxu0 0.0
    %108 = vmatpush1.msra.mxu0 0.0
    %109 = vmatprep.subr.mxu0 0.0
    %110 = vmatpush1.msra.mxu0 0.0
    %111 = vmatprep.subr.mxu0 0.0
    %112 = vmatpush1.msra.mxu0 0.0
    %113 = vmatprep.subr.mxu0 0.0
    %114 = vmatpush1.msra.mxu0 0.0
    %115 = vmatprep.subr.mxu0 0.0
    %116 = vmatpush1.msra.mxu0 0.0
    %117 = vmatprep.subr.mxu0 0.0
    %118 = vmatpush1.msra.mxu0 0.0
    %119 = vmatprep.subr.mxu0 0.0
    %120 = vmatpush1.msra.mxu0 0.0
    %121 = vmatprep.subr.mxu0 0.0
    %122 = vmatpush1.msra.mxu0 0.0
    %123 = vmatprep.subr.mxu0 0.0
    %124 = vmatpush1.msra.mxu0 0.0
    %125 = vmatprep.subr.mxu0 0.0
    %126 = vmatpush1.msra.mxu0 0.0
    %127 = vmatprep.subr.mxu0 0.0
    %128 = vmatpush1.msra.mxu0 0.0
    %129 = vmatprep.subr.mxu0 0.0
    %130 = vmatpush1.msra.mxu0 0.0
    %131 = vmatprep.subr.mxu0 0.0
    %132 = vmatpush1.msra.mxu0 0.0
    %133 = vmatprep.subr.mxu0 0.0
    %134 = vmatpush1.msra.mxu0 0.0
    %135 = vmatprep.subr.mxu0 0.0
    %136 = vmatpush1.msra.mxu0 0.0
    %137 = vmatprep.subr.mxu0 0.0
    %138 = vmatpush1.msra.mxu0 0.0
    %139 = vmatprep.subr.mxu0 0.0
    %140 = vmatpush1.msra.mxu0 0.0
    %141 = vmatprep.subr.mxu0 0.0
    %142 = vmatpush1.msra.mxu0 0.0
    %143 = vmatprep.subr.mxu0 0.0
    %144 = vmatpush1.msra.mxu0 0.0
    %145 = vmatprep.subr.mxu0 0.0
    %146 = vmatpush1.msra.mxu0 0.0
    %147 = vmatprep.subr.mxu0 0.0
    %148 = vmatpush1.msra.mxu0 0.0
    %149 = vmatprep.subr.mxu0 0.0
    %150 = vmatpush1.msra.mxu0 0.0
    %151 = vmatprep.subr.mxu0 0.0
    %152 = vmatpush1.msra.mxu0 0.0
    %153 = vmatprep.subr.mxu0 0.0
    %154 = vmatpush1.msra.mxu0 0.0
    %155 = vmatprep.mubr.f32.mxu0 0.0
    %156 = vmatmul.mubr.f32.gmra.mrb[0].mxu0 %v85
    %v157 = vpop.f32.mrb[0].mxu0
    %v158 = vadd.f32 %v81, %v157
    %v159 = vpop.f32.mrb[0].mxu0
    %160 = vdwg.mxu0
    %vm161 = vcmask 261120
    %v163 = vsel %vm161, %v66, 0
    %165 = vmatprep.subr.mxu0 0.0
    %166 = vmatpush1.msra.mxu0 %v49
    %167 = vmatprep.subr.mxu0 0.0
    %168 = vmatpush1.msra.mxu0 %v50
    %169 = vmatprep.subr.mxu0 0.0
    %170 = vmatpush1.msra.mxu0 %v51
    %171 = vmatprep.subr.mxu0 0.0
    %172 = vmatpush1.msra.mxu0 %v52
    %173 = vmatprep.subr.mxu0 0.0
    %174 = vmatpush1.msra.mxu0 0.0
    %175 = vmatprep.subr.mxu0 0.0
    %176 = vmatpush1.msra.mxu0 0.0
    %177 = vmatprep.subr.mxu0 0.0
    %178 = vmatpush1.msra.mxu0 0.0
    %179 = vmatprep.subr.mxu0 0.0
    %180 = vmatpush1.msra.mxu0 0.0
    %181 = vmatprep.subr.mxu0 0.0
    %182 = vmatpush1.msra.mxu0 0.0
    %183 = vmatprep.subr.mxu0 0.0
    %184 = vmatpush1.msra.mxu0 0.0
    %185 = vmatprep.subr.mxu0 0.0
    %186 = vmatpush1.msra.mxu0 0.0
    %187 = vmatprep.subr.mxu0 0.0
    %188 = vmatpush1.msra.mxu0 0.0
    %189 = vmatprep.subr.mxu0 0.0
    %190 = vmatpush1.msra.mxu0 0.0
    %191 = vmatprep.subr.mxu0 0.0
    %192 = vmatpush1.msra.mxu0 0.0
    %193 = vmatprep.subr.mxu0 0.0
    %194 = vmatpush1.msra.mxu0 0.0
    %195 = vmatprep.subr.mxu0 0.0
    %196 = vmatpush1.msra.mxu0 0.0
    %197 = vmatprep.subr.mxu0 0.0
    %198 = vmatpush1.msra.mxu0 0.0
    %199 = vmatprep.subr.mxu0 0.0
    %200 = vmatpush1.msra.mxu0 0.0
    %201 = vmatprep.subr.mxu0 0.0
    %202 = vmatpush1.msra.mxu0 0.0
    %203 = vmatprep.subr.mxu0 0.0
    %204 = vmatpush1.msra.mxu0 0.0
    %205 = vmatprep.subr.mxu0 0.0
    %206 = vmatpush1.msra.mxu0 0.0
    %207 = vmatprep.subr.mxu0 0.0
    %208 = vmatpush1.msra.mxu0 0.0
    %209 = vmatprep.subr.mxu0 0.0
    %210 = vmatpush1.msra.mxu0 0.0
    %211 = vmatprep.subr.mxu0 0.0
    %212 = vmatpush1.msra.mxu0 0.0
    %213 = vmatprep.subr.mxu0 0.0
    %214 = vmatpush1.msra.mxu0 0.0
    %215 = vmatprep.subr.mxu0 0.0
    %216 = vmatpush1.msra.mxu0 0.0
    %217 = vmatprep.subr.mxu0 0.0
    %218 = vmatpush1.msra.mxu0 0.0
    %219 = vmatprep.subr.mxu0 0.0
    %220 = vmatpush1.msra.mxu0 0.0
    %221 = vmatprep.subr.mxu0 0.0
    %222 = vmatpush1.msra.mxu0 0.0
    %223 = vmatprep.subr.mxu0 0.0
    %224 = vmatpush1.msra.mxu0 0.0
    %225 = vmatprep.subr.mxu0 0.0
    %226 = vmatpush1.msra.mxu0 0.0
    %227 = vmatprep.subr.mxu0 0.0
    %228 = vmatpush1.msra.mxu0 0.0
    %229 = vmatprep.mubr.f32.mxu0 0.0
    %230 = vmatmul.mubr.f32.gmra.mrb[0].mxu0 %v163
    %v231 = vpop.f32.mrb[0].mxu0
    %v232 = vadd.f32 0.0, %v231
    %v233 = vpop.f32.mrb[0].mxu0
    %234 = vdwg.mxu0
    %v235 = vadd.f32 %v158, %v232
    %v236 = vtanh.pop %v235
    %v237 = vld [vmem:[%s0 + $0x1] sm:$0x1]
    %v238 = vld [vmem:[%s70 + $0x1] sm:$0x1]
    %v240 = vrot.slane %v238, 7
    %v242 = vsel %vm75, %v237, %v240
    %v244 = vsel %vm83, %v242, 0
    %246 = vmatprep.subr.mxu0 0.0
    %247 = vmatpush1.msra.mxu0 %v89
    %248 = vmatprep.subr.mxu0 0.0
    %249 = vmatpush1.msra.mxu0 0.0
    %250 = vmatprep.subr.mxu0 0.0
    %251 = vmatpush1.msra.mxu0 0.0
    %252 = vmatprep.subr.mxu0 0.0
    %253 = vmatpush1.msra.mxu0 0.0
    %254 = vmatprep.subr.mxu0 0.0
    %255 = vmatpush1.msra.mxu0 0.0
    %256 = vmatprep.subr.mxu0 0.0
    %257 = vmatpush1.msra.mxu0 0.0
    %258 = vmatprep.subr.mxu0 0.0
    %259 = vmatpush1.msra.mxu0 0.0
    %260 = vmatprep.subr.mxu0 0.0
    %261 = vmatpush1.msra.mxu0 0.0
    %262 = vmatprep.subr.mxu0 0.0
    %263 = vmatpush1.msra.mxu0 0.0
    %264 = vmatprep.subr.mxu0 0.0
    %265 = vmatpush1.msra.mxu0 0.0
    %266 = vmatprep.subr.mxu0 0.0
    %267 = vmatpush1.msra.mxu0 0.0
    %268 = vmatprep.subr.mxu0 0.0
    %269 = vmatpush1.msra.mxu0 0.0
    %270 = vmatprep.subr.mxu0 0.0
    %271 = vmatpush1.msra.mxu0 0.0
    %272 = vmatprep.subr.mxu0 0.0
    %273 = vmatpush1.msra.mxu0 0.0
    %274 = vmatprep.subr.mxu0 0.0
    %275 = vmatpush1.msra.mxu0 0.0
    %276 = vmatprep.subr.mxu0 0.0
    %277 = vmatpush1.msra.mxu0 0.0
    %278 = vmatprep.subr.mxu0 0.0
    %279 = vmatpush1.msra.mxu0 0.0
    %280 = vmatprep.subr.mxu0 0.0
    %281 = vmatpush1.msra.mxu0 0.0
    %282 = vmatprep.subr.mxu0 0.0
    %283 = vmatpush1.msra.mxu0 0.0
    %284 = vmatprep.subr.mxu0 0.0
    %285 = vmatpush1.msra.mxu0 0.0
    %286 = vmatprep.subr.mxu0 0.0
    %287 = vmatpush1.msra.mxu0 0.0
    %288 = vmatprep.subr.mxu0 0.0
    %289 = vmatpush1.msra.mxu0 0.0
    %290 = vmatprep.subr.mxu0 0.0
    %291 = vmatpush1.msra.mxu0 0.0
    %292 = vmatprep.subr.mxu0 0.0
    %293 = vmatpush1.msra.mxu0 0.0
    %294 = vmatprep.subr.mxu0 0.0
    %295 = vmatpush1.msra.mxu0 0.0
    %296 = vmatprep.subr.mxu0 0.0
    %297 = vmatpush1.msra.mxu0 0.0
    %298 = vmatprep.subr.mxu0 0.0
    %299 = vmatpush1.msra.mxu0 0.0
    %300 = vmatprep.subr.mxu0 0.0
    %301 = vmatpush1.msra.mxu0 0.0
    %302 = vmatprep.subr.mxu0 0.0
    %303 = vmatpush1.msra.mxu0 0.0
    %304 = vmatprep.subr.mxu0 0.0
    %305 = vmatpush1.msra.mxu0 0.0
    %306 = vmatprep.subr.mxu0 0.0
    %307 = vmatpush1.msra.mxu0 0.0
    %308 = vmatprep.subr.mxu0 0.0
    %309 = vmatpush1.msra.mxu0 0.0
    %310 = vmatprep.mubr.f32.mxu0 0.0
    %311 = vmatmul.mubr.f32.gmra.mrb[0].mxu0 %v244
    %v312 = vpop.f32.mrb[0].mxu0
    %v313 = vadd.f32 %v81, %v312
    %v314 = vpop.f32.mrb[0].mxu0
    %315 = vdwg.mxu0
    %v317 = vsel %vm161, %v236, 0
    %319 = vmatprep.subr.mxu0 0.0
    %320 = vmatpush1.msra.mxu0 %v49
    %321 = vmatprep.subr.mxu0 0.0
    %322 = vmatpush1.msra.mxu0 %v50
    %323 = vmatprep.subr.mxu0 0.0
    %324 = vmatpush1.msra.mxu0 %v51
    %325 = vmatprep.subr.mxu0 0.0
    %326 = vmatpush1.msra.mxu0 %v52
    %327 = vmatprep.subr.mxu0 0.0
    %328 = vmatpush1.msra.mxu0 0.0
    %329 = vmatprep.subr.mxu0 0.0
    %330 = vmatpush1.msra.mxu0 0.0
    %331 = vmatprep.subr.mxu0 0.0
    %332 = vmatpush1.msra.mxu0 0.0
    %333 = vmatprep.subr.mxu0 0.0
    %334 = vmatpush1.msra.mxu0 0.0
    %335 = vmatprep.subr.mxu0 0.0
    %336 = vmatpush1.msra.mxu0 0.0
    %337 = vmatprep.subr.mxu0 0.0
    %338 = vmatpush1.msra.mxu0 0.0
    %339 = vmatprep.subr.mxu0 0.0
    %340 = vmatpush1.msra.mxu0 0.0
    %341 = vmatprep.subr.mxu0 0.0
    %342 = vmatpush1.msra.mxu0 0.0
    %343 = vmatprep.subr.mxu0 0.0
    %344 = vmatpush1.msra.mxu0 0.0
    %345 = vmatprep.subr.mxu0 0.0
    %346 = vmatpush1.msra.mxu0 0.0
    %347 = vmatprep.subr.mxu0 0.0
    %348 = vmatpush1.msra.mxu0 0.0
    %349 = vmatprep.subr.mxu0 0.0
    %350 = vmatpush1.msra.mxu0 0.0
    %351 = vmatprep.subr.mxu0 0.0
    %352 = vmatpush1.msra.mxu0 0.0
    %353 = vmatprep.subr.mxu0 0.0
    %354 = vmatpush1.msra.mxu0 0.0
    %355 = vmatprep.subr.mxu0 0.0
    %356 = vmatpush1.msra.mxu0 0.0
    %357 = vmatprep.subr.mxu0 0.0
    %358 = vmatpush1.msra.mxu0 0.0
    %359 = vmatprep.subr.mxu0 0.0
    %360 = vmatpush1.msra.mxu0 0.0
    %361 = vmatprep.subr.mxu0 0.0
    %362 = vmatpush1.msra.mxu0 0.0
    %363 = vmatprep.subr.mxu0 0.0
    %364 = vmatpush1.msra.mxu0 0.0
    %365 = vmatprep.subr.mxu0 0.0
    %366 = vmatpush1.msra.mxu0 0.0
    %367 = vmatprep.subr.mxu0 0.0
    %368 = vmatpush1.msra.mxu0 0.0
    %369 = vmatprep.subr.mxu0 0.0
    %370 = vmatpush1.msra.mxu0 0.0
    %371 = vmatprep.subr.mxu0 0.0
    %372 = vmatpush1.msra.mxu0 0.0
    %373 = vmatprep.subr.mxu0 0.0
    %374 = vmatpush1.msra.mxu0 0.0
    %375 = vmatprep.subr.mxu0 0.0
    %376 = vmatpush1.msra.mxu0 0.0
    %377 = vmatprep.subr.mxu0 0.0
    %378 = vmatpush1.msra.mxu0 0.0
    %379 = vmatprep.subr.mxu0 0.0
    %380 = vmatpush1.msra.mxu0 0.0
    %381 = vmatprep.subr.mxu0 0.0
    %382 = vmatpush1.msra.mxu0 0.0
    %383 = vmatprep.mubr.f32.mxu0 0.0
    %384 = vmatmul.mubr.f32.gmra.mrb[0].mxu0 %v317
    %v385 = vpop.f32.mrb[0].mxu0
    %v386 = vadd.f32 0.0, %v385
    %v387 = vpop.f32.mrb[0].mxu0
    %388 = vdwg.mxu0
    %v389 = vadd.f32 %v313, %v386
    %v390 = vtanh.pop %v389
    %v392 = vlaneseq
    %v393 = vshrl.u32 %v392, 7
    %v394 = vsub.s32 0, %v393
    %v395 = vrot.slane %v60, %v394
    %397 = vmatprep.subr.mxu0 0.0
    %398 = vmatpush1.msra.mxu0 %v45
    %399 = vmatprep.subr.mxu0 0.0
    %400 = vmatpush1.msra.mxu0 %v46
    %401 = vmatprep.subr.mxu0 0.0
    %402 = vmatpush1.msra.mxu0 %v47
    %403 = vmatprep.subr.mxu0 0.0
    %404 = vmatpush1.msra.mxu0 %v48
    %405 = vmatprep.subr.mxu0 0.0
    %406 = vmatpush1.msra.mxu0 0.0
    %407 = vmatprep.subr.mxu0 0.0
    %408 = vmatpush1.msra.mxu0 0.0
    %409 = vmatprep.subr.mxu0 0.0
    %410 = vmatpush1.msra.mxu0 0.0
    %411 = vmatprep.subr.mxu0 0.0
    %412 = vmatpush1.msra.mxu0 0.0
    %413 = vmatprep.subr.mxu0 0.0
    %414 = vmatpush1.msra.mxu0 0.0
    %415 = vmatprep.subr.mxu0 0.0
    %416 = vmatpush1.msra.mxu0 0.0
    %417 = vmatprep.subr.mxu0 0.0
    %418 = vmatpush1.msra.mxu0 0.0
    %419 = vmatprep.subr.mxu0 0.0
    %420 = vmatpush1.msra.mxu0 0.0
    %421 = vmatprep.subr.mxu0 0.0
    %422 = vmatpush1.msra.mxu0 0.0
    %423 = vmatprep.subr.mxu0 0.0
    %424 = vmatpush1.msra.mxu0 0.0
    %425 = vmatprep.subr.mxu0 0.0
    %426 = vmatpush1.msra.mxu0 0.0
    %427 = vmatprep.subr.mxu0 0.0
    %428 = vmatpush1.msra.mxu0 0.0
    %429 = vmatprep.subr.mxu0 0.0
    %430 = vmatpush1.msra.mxu0 0.0
    %431 = vmatprep.subr.mxu0 0.0
    %432 = vmatpush1.msra.mxu0 0.0
    %433 = vmatprep.subr.mxu0 0.0
    %434 = vmatpush1.msra.mxu0 0.0
    %435 = vmatprep.subr.mxu0 0.0
    %436 = vmatpush1.msra.mxu0 0.0
    %437 = vmatprep.subr.mxu0 0.0
    %438 = vmatpush1.msra.mxu0 0.0
    %439 = vmatprep.subr.mxu0 0.0
    %440 = vmatpush1.msra.mxu0 0.0
    %441 = vmatprep.subr.mxu0 0.0
    %442 = vmatpush1.msra.mxu0 0.0
    %443 = vmatprep.subr.mxu0 0.0
    %444 = vmatpush1.msra.mxu0 0.0
    %445 = vmatprep.subr.mxu0 0.0
    %446 = vmatpush1.msra.mxu0 0.0
    %447 = vmatprep.subr.mxu0 0.0
    %448 = vmatpush1.msra.mxu0 0.0
    %449 = vmatprep.subr.mxu0 0.0
    %450 = vmatpush1.msra.mxu0 0.0
    %451 = vmatprep.subr.mxu0 0.0
    %452 = vmatpush1.msra.mxu0 0.0
    %453 = vmatprep.subr.mxu0 0.0
    %454 = vmatpush1.msra.mxu0 0.0
    %455 = vmatprep.subr.mxu0 0.0
    %456 = vmatpush1.msra.mxu0 0.0
    %457 = vmatprep.subr.mxu0 0.0
    %458 = vmatpush1.msra.mxu0 0.0
    %459 = vmatprep.subr.mxu0 0.0
    %460 = vmatpush1.msra.mxu0 0.0
    %461 = vmatprep.mubr.f32.mxu0 0.0
    %462 = vmatmul.mubr.f32.gmra.mrb[0].mxu0 %v317
    %v463 = vpop.f32.mrb[0].mxu0
    %v464 = vadd.f32 %v395, %v463
    %v465 = vpop.f32.mrb[0].mxu0
    %466 = vdwg.mxu0
    %v468 = vsel %vm161, %v68, 0
    %470 = vmatprep.subr.mxu0 0.0
    %471 = vmatpush1.msra.mxu0 %v54
    %472 = vmatprep.subr.mxu0 0.0
    %473 = vmatpush1.msra.mxu0 %v55
    %474 = vmatprep.subr.mxu0 0.0
    %475 = vmatpush1.msra.mxu0 %v56
    %476 = vmatprep.subr.mxu0 0.0
    %477 = vmatpush1.msra.mxu0 %v57
    %478 = vmatprep.subr.mxu0 0.0
    %479 = vmatpush1.msra.mxu0 0.0
    %480 = vmatprep.subr.mxu0 0.0
    %481 = vmatpush1.msra.mxu0 0.0
    %482 = vmatprep.subr.mxu0 0.0
    %483 = vmatpush1.msra.mxu0 0.0
    %484 = vmatprep.subr.mxu0 0.0
    %485 = vmatpush1.msra.mxu0 0.0
    %486 = vmatprep.subr.mxu0 0.0
    %487 = vmatpush1.msra.mxu0 0.0
    %488 = vmatprep.subr.mxu0 0.0
    %489 = vmatpush1.msra.mxu0 0.0
    %490 = vmatprep.subr.mxu0 0.0
    %491 = vmatpush1.msra.mxu0 0.0
    %492 = vmatprep.subr.mxu0 0.0
    %493 = vmatpush1.msra.mxu0 0.0
    %494 = vmatprep.subr.mxu0 0.0
    %495 = vmatpush1.msra.mxu0 0.0
    %496 = vmatprep.subr.mxu0 0.0
    %497 = vmatpush1.msra.mxu0 0.0
    %498 = vmatprep.subr.mxu0 0.0
    %499 = vmatpush1.msra.mxu0 0.0
    %500 = vmatprep.subr.mxu0 0.0
    %501 = vmatpush1.msra.mxu0 0.0
    %502 = vmatprep.subr.mxu0 0.0
    %503 = vmatpush1.msra.mxu0 0.0
    %504 = vmatprep.subr.mxu0 0.0
    %505 = vmatpush1.msra.mxu0 0.0
    %506 = vmatprep.subr.mxu0 0.0
    %507 = vmatpush1.msra.mxu0 0.0
    %508 = vmatprep.subr.mxu0 0.0
    %509 = vmatpush1.msra.mxu0 0.0
    %510 = vmatprep.subr.mxu0 0.0
    %511 = vmatpush1.msra.mxu0 0.0
    %512 = vmatprep.subr.mxu0 0.0
    %513 = vmatpush1.msra.mxu0 0.0
    %514 = vmatprep.subr.mxu0 0.0
    %515 = vmatpush1.msra.mxu0 0.0
    %516 = vmatprep.subr.mxu0 0.0
    %517 = vmatpush1.msra.mxu0 0.0
    %518 = vmatprep.subr.mxu0 0.0
    %519 = vmatpush1.msra.mxu0 0.0
    %520 = vmatprep.subr.mxu0 0.0
    %521 = vmatpush1.msra.mxu0 0.0
    %522 = vmatprep.subr.mxu0 0.0
    %523 = vmatpush1.msra.mxu0 0.0
    %524 = vmatprep.subr.mxu0 0.0
    %525 = vmatpush1.msra.mxu0 0.0
    %526 = vmatprep.subr.mxu0 0.0
    %527 = vmatpush1.msra.mxu0 0.0
    %528 = vmatprep.subr.mxu0 0.0
    %529 = vmatpush1.msra.mxu0 0.0
    %530 = vmatprep.subr.mxu0 0.0
    %531 = vmatpush1.msra.mxu0 0.0
    %532 = vmatprep.subr.mxu0 0.0
    %533 = vmatpush1.msra.mxu0 0.0
    %534 = vmatprep.mubr.f32.mxu0 0.0
    %535 = vmatmul.mubr.f32.gmra.mrb[0].mxu0 %v468
    %v536 = vpop.f32.mrb[0].mxu0
    %v537 = vadd.f32 0.0, %v536
    %v538 = vpop.f32.mrb[0].mxu0
    %539 = vdwg.mxu0
    %v540 = vadd.f32 %v464, %v537
    %v541 = vtanh.pop %v540
    %v543 = vlaneseq
    %v544 = vshrl.u32 %v543, 7
    %v545 = vsub.s32 0, %v544
    %v546 = vrot.slane %v65, %v545
    %v549 = vsel %vm161, %v541, 0
    %551 = vmatprep.subr.mxu0 0.0
    %552 = vmatpush1.msra.mxu0 %v61
    %553 = vmatprep.subr.mxu0 0.0
    %554 = vmatpush1.msra.mxu0 %v62
    %555 = vmatprep.subr.mxu0 0.0
    %556 = vmatpush1.msra.mxu0 %v63
    %557 = vmatprep.subr.mxu0 0.0
    %558 = vmatpush1.msra.mxu0 %v64
    %559 = vmatprep.subr.mxu0 0.0
    %560 = vmatpush1.msra.mxu0 0.0
    %561 = vmatprep.subr.mxu0 0.0
    %562 = vmatpush1.msra.mxu0 0.0
    %563 = vmatprep.subr.mxu0 0.0
    %564 = vmatpush1.msra.mxu0 0.0
    %565 = vmatprep.subr.mxu0 0.0
    %566 = vmatpush1.msra.mxu0 0.0
    %567 = vmatprep.subr.mxu0 0.0
    %568 = vmatpush1.msra.mxu0 0.0
    %569 = vmatprep.subr.mxu0 0.0
    %570 = vmatpush1.msra.mxu0 0.0
    %571 = vmatprep.subr.mxu0 0.0
    %572 = vmatpush1.msra.mxu0 0.0
    %573 = vmatprep.subr.mxu0 0.0
    %574 = vmatpush1.msra.mxu0 0.0
    %575 = vmatprep.subr.mxu0 0.0
    %576 = vmatpush1.msra.mxu0 0.0
    %577 = vmatprep.subr.mxu0 0.0
    %578 = vmatpush1.msra.mxu0 0.0
    %579 = vmatprep.subr.mxu0 0.0
    %580 = vmatpush1.msra.mxu0 0.0
    %581 = vmatprep.subr.mxu0 0.0
    %582 = vmatpush1.msra.mxu0 0.0
    %583 = vmatprep.subr.mxu0 0.0
    %584 = vmatpush1.msra.mxu0 0.0
    %585 = vmatprep.subr.mxu0 0.0
    %586 = vmatpush1.msra.mxu0 0.0
    %587 = vmatprep.subr.mxu0 0.0
    %588 = vmatpush1.msra.mxu0 0.0
    %589 = vmatprep.subr.mxu0 0.0
    %590 = vmatpush1.msra.mxu0 0.0
    %591 = vmatprep.subr.mxu0 0.0
    %592 = vmatpush1.msra.mxu0 0.0
    %593 = vmatprep.subr.mxu0 0.0
    %594 = vmatpush1.msra.mxu0 0.0
    %595 = vmatprep.subr.mxu0 0.0
    %596 = vmatpush1.msra.mxu0 0.0
    %597 = vmatprep.subr.mxu0 0.0
    %598 = vmatpush1.msra.mxu0 0.0
    %599 = vmatprep.subr.mxu0 0.0
    %600 = vmatpush1.msra.mxu0 0.0
    %601 = vmatprep.subr.mxu0 0.0
    %602 = vmatpush1.msra.mxu0 0.0
    %603 = vmatprep.subr.mxu0 0.0
    %604 = vmatpush1.msra.mxu0 0.0
    %605 = vmatprep.subr.mxu0 0.0
    %606 = vmatpush1.msra.mxu0 0.0
    %607 = vmatprep.subr.mxu0 0.0
    %608 = vmatpush1.msra.mxu0 0.0
    %609 = vmatprep.subr.mxu0 0.0
    %610 = vmatpush1.msra.mxu0 0.0
    %611 = vmatprep.subr.mxu0 0.0
    %612 = vmatpush1.msra.mxu0 0.0
    %613 = vmatprep.subr.mxu0 0.0
    %614 = vmatpush1.msra.mxu0 0.0
    %615 = vmatprep.mubr.f32.mxu0 0.0
    %616 = vmatmul.mubr.f32.gmra.mrb[0].mxu0 %v549
    %v617 = vpop.f32.mrb[0].mxu0
    %v618 = vadd.f32 %v546, %v617
    %v619 = vpop.f32.mrb[0].mxu0
    %620 = vdwg.mxu0
    %vm621 = vcmask 16384
    %622 = vst.msk [vmem:[%s7] sm:$0x1] %vm621, %v618
    %s623 = scalar_lea.vmem %s7, 8
    %vm624 = vcmask 17409
    %625 = vst.msk [vmem:[%s623 - $0x1] sm:$0x2] %vm624, %v618
    %v626 = vld [vmem:[%s0 + $0x2] sm:$0x1]
    %v627 = vld [vmem:[%s70 + $0x2] sm:$0x1]
    %v629 = vrot.slane %v627, 7
    %v631 = vsel %vm75, %v626, %v629
    %v633 = vsel %vm83, %v631, 0
    %635 = vmatprep.subr.mxu0 0.0
    %636 = vmatpush1.msra.mxu0 %v89
    %637 = vmatprep.subr.mxu0 0.0
    %638 = vmatpush1.msra.mxu0 0.0
    %639 = vmatprep.subr.mxu0 0.0
    %640 = vmatpush1.msra.mxu0 0.0
    %641 = vmatprep.subr.mxu0 0.0
    %642 = vmatpush1.msra.mxu0 0.0
    %643 = vmatprep.subr.mxu0 0.0
    %644 = vmatpush1.msra.mxu0 0.0
    %645 = vmatprep.subr.mxu0 0.0
    %646 = vmatpush1.msra.mxu0 0.0
    %647 = vmatprep.subr.mxu0 0.0
    %648 = vmatpush1.msra.mxu0 0.0
    %649 = vmatprep.subr.mxu0 0.0
    %650 = vmatpush1.msra.mxu0 0.0
    %651 = vmatprep.subr.mxu0 0.0
    %652 = vmatpush1.msra.mxu0 0.0
    %653 = vmatprep.subr.mxu0 0.0
    %654 = vmatpush1.msra.mxu0 0.0
    %655 = vmatprep.subr.mxu0 0.0
    %656 = vmatpush1.msra.mxu0 0.0
    %657 = vmatprep.subr.mxu0 0.0
    %658 = vmatpush1.msra.mxu0 0.0
    %659 = vmatprep.subr.mxu0 0.0
    %660 = vmatpush1.msra.mxu0 0.0
    %661 = vmatprep.subr.mxu0 0.0
    %662 = vmatpush1.msra.mxu0 0.0
    %663 = vmatprep.subr.mxu0 0.0
    %664 = vmatpush1.msra.mxu0 0.0
    %665 = vmatprep.subr.mxu0 0.0
    %666 = vmatpush1.msra.mxu0 0.0
    %667 = vmatprep.subr.mxu0 0.0
    %668 = vmatpush1.msra.mxu0 0.0
    %669 = vmatprep.subr.mxu0 0.0
    %670 = vmatpush1.msra.mxu0 0.0
    %671 = vmatprep.subr.mxu0 0.0
    %672 = vmatpush1.msra.mxu0 0.0
    %673 = vmatprep.subr.mxu0 0.0
    %674 = vmatpush1.msra.mxu0 0.0
    %675 = vmatprep.subr.mxu0 0.0
    %676 = vmatpush1.msra.mxu0 0.0
    %677 = vmatprep.subr.mxu0 0.0
    %678 = vmatpush1.msra.mxu0 0.0
    %679 = vmatprep.subr.mxu0 0.0
    %680 = vmatpush1.msra.mxu0 0.0
    %681 = vmatprep.subr.mxu0 0.0
    %682 = vmatpush1.msra.mxu0 0.0
    %683 = vmatprep.subr.mxu0 0.0
    %684 = vmatpush1.msra.mxu0 0.0
    %685 = vmatprep.subr.mxu0 0.0
    %686 = vmatpush1.msra.mxu0 0.0
    %687 = vmatprep.subr.mxu0 0.0
    %688 = vmatpush1.msra.mxu0 0.0
    %689 = vmatprep.subr.mxu0 0.0
    %690 = vmatpush1.msra.mxu0 0.0
    %691 = vmatprep.subr.mxu0 0.0
    %692 = vmatpush1.msra.mxu0 0.0
    %693 = vmatprep.subr.mxu0 0.0
    %694 = vmatpush1.msra.mxu0 0.0
    %695 = vmatprep.subr.mxu0 0.0
    %696 = vmatpush1.msra.mxu0 0.0
    %697 = vmatprep.subr.mxu0 0.0
    %698 = vmatpush1.msra.mxu0 0.0
    %699 = vmatprep.mubr.f32.mxu0 0.0
    %700 = vmatmul.mubr.f32.gmra.mrb[0].mxu0 %v633
    %v701 = vpop.f32.mrb[0].mxu0
    %v702 = vadd.f32 %v81, %v701
    %v703 = vpop.f32.mrb[0].mxu0
    %704 = vdwg.mxu0
    %v706 = vsel %vm161, %v390, 0
    %708 = vmatprep.subr.mxu0 0.0
    %709 = vmatpush1.msra.mxu0 %v49
    %710 = vmatprep.subr.mxu0 0.0
    %711 = vmatpush1.msra.mxu0 %v50
    %712 = vmatprep.subr.mxu0 0.0
    %713 = vmatpush1.msra.mxu0 %v51
    %714 = vmatprep.subr.mxu0 0.0
    %715 = vmatpush1.msra.mxu0 %v52
    %716 = vmatprep.subr.mxu0 0.0
    %717 = vmatpush1.msra.mxu0 0.0
    %718 = vmatprep.subr.mxu0 0.0
    %719 = vmatpush1.msra.mxu0 0.0
    %720 = vmatprep.subr.mxu0 0.0
    %721 = vmatpush1.msra.mxu0 0.0
    %722 = vmatprep.subr.mxu0 0.0
    %723 = vmatpush1.msra.mxu0 0.0
    %724 = vmatprep.subr.mxu0 0.0
    %725 = vmatpush1.msra.mxu0 0.0
    %726 = vmatprep.subr.mxu0 0.0
    %727 = vmatpush1.msra.mxu0 0.0
    %728 = vmatprep.subr.mxu0 0.0
    %729 = vmatpush1.msra.mxu0 0.0
    %730 = vmatprep.subr.mxu0 0.0
    %731 = vmatpush1.msra.mxu0 0.0
    %732 = vmatprep.subr.mxu0 0.0
    %733 = vmatpush1.msra.mxu0 0.0
    %734 = vmatprep.subr.mxu0 0.0
    %735 = vmatpush1.msra.mxu0 0.0
    %736 = vmatprep.subr.mxu0 0.0
    %737 = vmatpush1.msra.mxu0 0.0
    %738 = vmatprep.subr.mxu0 0.0
    %739 = vmatpush1.msra.mxu0 0.0
    %740 = vmatprep.subr.mxu0 0.0
    %741 = vmatpush1.msra.mxu0 0.0
    %742 = vmatprep.subr.mxu0 0.0
    %743 = vmatpush1.msra.mxu0 0.0
    %744 = vmatprep.subr.mxu0 0.0
    %745 = vmatpush1.msra.mxu0 0.0
    %746 = vmatprep.subr.mxu0 0.0
    %747 = vmatpush1.msra.mxu0 0.0
    %748 = vmatprep.subr.mxu0 0.0
    %749 = vmatpush1.msra.mxu0 0.0
    %750 = vmatprep.subr.mxu0 0.0
    %751 = vmatpush1.msra.mxu0 0.0
    %752 = vmatprep.subr.mxu0 0.0
    %753 = vmatpush1.msra.mxu0 0.0
    %754 = vmatprep.subr.mxu0 0.0
    %755 = vmatpush1.msra.mxu0 0.0
    %756 = vmatprep.subr.mxu0 0.0
    %757 = vmatpush1.msra.mxu0 0.0
    %758 = vmatprep.subr.mxu0 0.0
    %759 = vmatpush1.msra.mxu0 0.0
    %760 = vmatprep.subr.mxu0 0.0
    %761 = vmatpush1.msra.mxu0 0.0
    %762 = vmatprep.subr.mxu0 0.0
    %763 = vmatpush1.msra.mxu0 0.0
    %764 = vmatprep.subr.mxu0 0.0
    %765 = vmatpush1.msra.mxu0 0.0
    %766 = vmatprep.subr.mxu0 0.0
    %767 = vmatpush1.msra.mxu0 0.0
    %768 = vmatprep.subr.mxu0 0.0
    %769 = vmatpush1.msra.mxu0 0.0
    %770 = vmatprep.subr.mxu0 0.0
    %771 = vmatpush1.msra.mxu0 0.0
    %772 = vmatprep.mubr.f32.mxu0 0.0
    %773 = vmatmul.mubr.f32.gmra.mrb[0].mxu0 %v706
    %v774 = vpop.f32.mrb[0].mxu0
    %v775 = vadd.f32 0.0, %v774
    %v776 = vpop.f32.mrb[0].mxu0
    %777 = vdwg.mxu0
    %v778 = vadd.f32 %v702, %v775
    %v779 = vtanh.pop %v778
    %780 = vmatprep.subr.mxu0 0.0
    %781 = vmatpush1.msra.mxu0 %v45
    %782 = vmatprep.subr.mxu0 0.0
    %783 = vmatpush1.msra.mxu0 %v46
    %784 = vmatprep.subr.mxu0 0.0
    %785 = vmatpush1.msra.mxu0 %v47
    %786 = vmatprep.subr.mxu0 0.0
    %787 = vmatpush1.msra.mxu0 %v48
    %788 = vmatprep.subr.mxu0 0.0
    %789 = vmatpush1.msra.mxu0 0.0
    %790 = vmatprep.subr.mxu0 0.0
    %791 = vmatpush1.msra.mxu0 0.0
    %792 = vmatprep.subr.mxu0 0.0
    %793 = vmatpush1.msra.mxu0 0.0
    %794 = vmatprep.subr.mxu0 0.0
    %795 = vmatpush1.msra.mxu0 0.0
    %796 = vmatprep.subr.mxu0 0.0
    %797 = vmatpush1.msra.mxu0 0.0
    %798 = vmatprep.subr.mxu0 0.0
    %799 = vmatpush1.msra.mxu0 0.0
    %800 = vmatprep.subr.mxu0 0.0
    %801 = vmatpush1.msra.mxu0 0.0
    %802 = vmatprep.subr.mxu0 0.0
    %803 = vmatpush1.msra.mxu0 0.0
    %804 = vmatprep.subr.mxu0 0.0
    %805 = vmatpush1.msra.mxu0 0.0
    %806 = vmatprep.subr.mxu0 0.0
    %807 = vmatpush1.msra.mxu0 0.0
    %808 = vmatprep.subr.mxu0 0.0
    %809 = vmatpush1.msra.mxu0 0.0
    %810 = vmatprep.subr.mxu0 0.0
    %811 = vmatpush1.msra.mxu0 0.0
    %812 = vmatprep.subr.mxu0 0.0
    %813 = vmatpush1.msra.mxu0 0.0
    %814 = vmatprep.subr.mxu0 0.0
    %815 = vmatpush1.msra.mxu0 0.0
    %816 = vmatprep.subr.mxu0 0.0
    %817 = vmatpush1.msra.mxu0 0.0
    %818 = vmatprep.subr.mxu0 0.0
    %819 = vmatpush1.msra.mxu0 0.0
    %820 = vmatprep.subr.mxu0 0.0
    %821 = vmatpush1.msra.mxu0 0.0
    %822 = vmatprep.subr.mxu0 0.0
    %823 = vmatpush1.msra.mxu0 0.0
    %824 = vmatprep.subr.mxu0 0.0
    %825 = vmatpush1.msra.mxu0 0.0
    %826 = vmatprep.subr.mxu0 0.0
    %827 = vmatpush1.msra.mxu0 0.0
    %828 = vmatprep.subr.mxu0 0.0
    %829 = vmatpush1.msra.mxu0 0.0
    %830 = vmatprep.subr.mxu0 0.0
    %831 = vmatpush1.msra.mxu0 0.0
    %832 = vmatprep.subr.mxu0 0.0
    %833 = vmatpush1.msra.mxu0 0.0
    %834 = vmatprep.subr.mxu0 0.0
    %835 = vmatpush1.msra.mxu0 0.0
    %836 = vmatprep.subr.mxu0 0.0
    %837 = vmatpush1.msra.mxu0 0.0
    %838 = vmatprep.subr.mxu0 0.0
    %839 = vmatpush1.msra.mxu0 0.0
    %840 = vmatprep.subr.mxu0 0.0
    %841 = vmatpush1.msra.mxu0 0.0
    %842 = vmatprep.subr.mxu0 0.0
    %843 = vmatpush1.msra.mxu0 0.0
    %844 = vmatprep.mubr.f32.mxu0 0.0
    %845 = vmatmul.mubr.f32.gmra.mrb[0].mxu0 %v706
    %v846 = vpop.f32.mrb[0].mxu0
    %v847 = vadd.f32 %v395, %v846
    %v848 = vpop.f32.mrb[0].mxu0
    %849 = vdwg.mxu0
    %850 = vmatprep.subr.mxu0 0.0
    %851 = vmatpush1.msra.mxu0 %v54
    %852 = vmatprep.subr.mxu0 0.0
    %853 = vmatpush1.msra.mxu0 %v55
    %854 = vmatprep.subr.mxu0 0.0
    %855 = vmatpush1.msra.mxu0 %v56
    %856 = vmatprep.subr.mxu0 0.0
    %857 = vmatpush1.msra.mxu0 %v57
    %858 = vmatprep.subr.mxu0 0.0
    %859 = vmatpush1.msra.mxu0 0.0
    %860 = vmatprep.subr.mxu0 0.0
    %861 = vmatpush1.msra.mxu0 0.0
    %862 = vmatprep.subr.mxu0 0.0
    %863 = vmatpush1.msra.mxu0 0.0
    %864 = vmatprep.subr.mxu0 0.0
    %865 = vmatpush1.msra.mxu0 0.0
    %866 = vmatprep.subr.mxu0 0.0
    %867 = vmatpush1.msra.mxu0 0.0
    %868 = vmatprep.subr.mxu0 0.0
    %869 = vmatpush1.msra.mxu0 0.0
    %870 = vmatprep.subr.mxu0 0.0
    %871 = vmatpush1.msra.mxu0 0.0
    %872 = vmatprep.subr.mxu0 0.0
    %873 = vmatpush1.msra.mxu0 0.0
    %874 = vmatprep.subr.mxu0 0.0
    %875 = vmatpush1.msra.mxu0 0.0
    %876 = vmatprep.subr.mxu0 0.0
    %877 = vmatpush1.msra.mxu0 0.0
    %878 = vmatprep.subr.mxu0 0.0
    %879 = vmatpush1.msra.mxu0 0.0
    %880 = vmatprep.subr.mxu0 0.0
    %881 = vmatpush1.msra.mxu0 0.0
    %882 = vmatprep.subr.mxu0 0.0
    %883 = vmatpush1.msra.mxu0 0.0
    %884 = vmatprep.subr.mxu0 0.0
    %885 = vmatpush1.msra.mxu0 0.0
    %886 = vmatprep.subr.mxu0 0.0
    %887 = vmatpush1.msra.mxu0 0.0
    %888 = vmatprep.subr.mxu0 0.0
    %889 = vmatpush1.msra.mxu0 0.0
    %890 = vmatprep.subr.mxu0 0.0
    %891 = vmatpush1.msra.mxu0 0.0
    %892 = vmatprep.subr.mxu0 0.0
    %893 = vmatpush1.msra.mxu0 0.0
    %894 = vmatprep.subr.mxu0 0.0
    %895 = vmatpush1.msra.mxu0 0.0
    %896 = vmatprep.subr.mxu0 0.0
    %897 = vmatpush1.msra.mxu0 0.0
    %898 = vmatprep.subr.mxu0 0.0
    %899 = vmatpush1.msra.mxu0 0.0
    %900 = vmatprep.subr.mxu0 0.0
    %901 = vmatpush1.msra.mxu0 0.0
    %902 = vmatprep.subr.mxu0 0.0
    %903 = vmatpush1.msra.mxu0 0.0
    %904 = vmatprep.subr.mxu0 0.0
    %905 = vmatpush1.msra.mxu0 0.0
    %906 = vmatprep.subr.mxu0 0.0
    %907 = vmatpush1.msra.mxu0 0.0
    %908 = vmatprep.subr.mxu0 0.0
    %909 = vmatpush1.msra.mxu0 0.0
    %910 = vmatprep.subr.mxu0 0.0
    %911 = vmatpush1.msra.mxu0 0.0
    %912 = vmatprep.subr.mxu0 0.0
    %913 = vmatpush1.msra.mxu0 0.0
    %914 = vmatprep.mubr.f32.mxu0 0.0
    %915 = vmatmul.mubr.f32.gmra.mrb[0].mxu0 %v549
    %v916 = vpop.f32.mrb[0].mxu0
    %v917 = vadd.f32 0.0, %v916
    %v918 = vpop.f32.mrb[0].mxu0
    %919 = vdwg.mxu0
    %v920 = vadd.f32 %v847, %v917
    %v921 = vtanh.pop %v920
    %v923 = vsel %vm161, %v921, 0
    %925 = vmatprep.subr.mxu0 0.0
    %926 = vmatpush1.msra.mxu0 %v61
    %927 = vmatprep.subr.mxu0 0.0
    %928 = vmatpush1.msra.mxu0 %v62
    %929 = vmatprep.subr.mxu0 0.0
    %930 = vmatpush1.msra.mxu0 %v63
    %931 = vmatprep.subr.mxu0 0.0
    %932 = vmatpush1.msra.mxu0 %v64
    %933 = vmatprep.subr.mxu0 0.0
    %934 = vmatpush1.msra.mxu0 0.0
    %935 = vmatprep.subr.mxu0 0.0
    %936 = vmatpush1.msra.mxu0 0.0
    %937 = vmatprep.subr.mxu0 0.0
    %938 = vmatpush1.msra.mxu0 0.0
    %939 = vmatprep.subr.mxu0 0.0
    %940 = vmatpush1.msra.mxu0 0.0
    %941 = vmatprep.subr.mxu0 0.0
    %942 = vmatpush1.msra.mxu0 0.0
    %943 = vmatprep.subr.mxu0 0.0
    %944 = vmatpush1.msra.mxu0 0.0
    %945 = vmatprep.subr.mxu0 0.0
    %946 = vmatpush1.msra.mxu0 0.0
    %947 = vmatprep.subr.mxu0 0.0
    %948 = vmatpush1.msra.mxu0 0.0
    %949 = vmatprep.subr.mxu0 0.0
    %950 = vmatpush1.msra.mxu0 0.0
    %951 = vmatprep.subr.mxu0 0.0
    %952 = vmatpush1.msra.mxu0 0.0
    %953 = vmatprep.subr.mxu0 0.0
    %954 = vmatpush1.msra.mxu0 0.0
    %955 = vmatprep.subr.mxu0 0.0
    %956 = vmatpush1.msra.mxu0 0.0
    %957 = vmatprep.subr.mxu0 0.0
    %958 = vmatpush1.msra.mxu0 0.0
    %959 = vmatprep.subr.mxu0 0.0
    %960 = vmatpush1.msra.mxu0 0.0
    %961 = vmatprep.subr.mxu0 0.0
    %962 = vmatpush1.msra.mxu0 0.0
    %963 = vmatprep.subr.mxu0 0.0
    %964 = vmatpush1.msra.mxu0 0.0
    %965 = vmatprep.subr.mxu0 0.0
    %966 = vmatpush1.msra.mxu0 0.0
    %967 = vmatprep.subr.mxu0 0.0
    %968 = vmatpush1.msra.mxu0 0.0
    %969 = vmatprep.subr.mxu0 0.0
    %970 = vmatpush1.msra.mxu0 0.0
    %971 = vmatprep.subr.mxu0 0.0
    %972 = vmatpush1.msra.mxu0 0.0
    %973 = vmatprep.subr.mxu0 0.0
    %974 = vmatpush1.msra.mxu0 0.0
    %975 = vmatprep.subr.mxu0 0.0
    %976 = vmatpush1.msra.mxu0 0.0
    %977 = vmatprep.subr.mxu0 0.0
    %978 = vmatpush1.msra.mxu0 0.0
    %979 = vmatprep.subr.mxu0 0.0
    %980 = vmatpush1.msra.mxu0 0.0
    %981 = vmatprep.subr.mxu0 0.0
    %982 = vmatpush1.msra.mxu0 0.0
    %983 = vmatprep.subr.mxu0 0.0
    %984 = vmatpush1.msra.mxu0 0.0
    %985 = vmatprep.subr.mxu0 0.0
    %986 = vmatpush1.msra.mxu0 0.0
    %987 = vmatprep.subr.mxu0 0.0
    %988 = vmatpush1.msra.mxu0 0.0
    %989 = vmatprep.mubr.f32.mxu0 0.0
    %990 = vmatmul.mubr.f32.gmra.mrb[0].mxu0 %v923
    %v991 = vpop.f32.mrb[0].mxu0
    %v992 = vadd.f32 %v546, %v991
    %v993 = vpop.f32.mrb[0].mxu0
    %994 = vdwg.mxu0
    %995 = vst.msk [vmem:[%s7 + $0x1] sm:$0x1] %vm621, %v992
    %996 = vst.msk [vmem:[%s623] sm:$0x2] %vm624, %v992
    %v997 = vld [vmem:[%s0 + $0x3] sm:$0x1]
    %v998 = vld [vmem:[%s70 + $0x3] sm:$0x1]
    %v1000 = vrot.slane %v998, 7
    %v1002 = vsel %vm75, %v997, %v1000
    %v1004 = vsel %vm83, %v1002, 0
    %1006 = vmatprep.subr.mxu0 0.0
    %1007 = vmatpush1.msra.mxu0 %v89
    %1008 = vmatprep.subr.mxu0 0.0
    %1009 = vmatpush1.msra.mxu0 0.0
    %1010 = vmatprep.subr.mxu0 0.0
    %1011 = vmatpush1.msra.mxu0 0.0
    %1012 = vmatprep.subr.mxu0 0.0
    %1013 = vmatpush1.msra.mxu0 0.0
    %1014 = vmatprep.subr.mxu0 0.0
    %1015 = vmatpush1.msra.mxu0 0.0
    %1016 = vmatprep.subr.mxu0 0.0
    %1017 = vmatpush1.msra.mxu0 0.0
    %1018 = vmatprep.subr.mxu0 0.0
    %1019 = vmatpush1.msra.mxu0 0.0
    %1020 = vmatprep.subr.mxu0 0.0
    %1021 = vmatpush1.msra.mxu0 0.0
    %1022 = vmatprep.subr.mxu0 0.0
    %1023 = vmatpush1.msra.mxu0 0.0
    %1024 = vmatprep.subr.mxu0 0.0
    %1025 = vmatpush1.msra.mxu0 0.0
    %1026 = vmatprep.subr.mxu0 0.0
    %1027 = vmatpush1.msra.mxu0 0.0
    %1028 = vmatprep.subr.mxu0 0.0
    %1029 = vmatpush1.msra.mxu0 0.0
    %1030 = vmatprep.subr.mxu0 0.0
    %1031 = vmatpush1.msra.mxu0 0.0
    %1032 = vmatprep.subr.mxu0 0.0
    %1033 = vmatpush1.msra.mxu0 0.0
    %1034 = vmatprep.subr.mxu0 0.0
    %1035 = vmatpush1.msra.mxu0 0.0
    %1036 = vmatprep.subr.mxu0 0.0
    %1037 = vmatpush1.msra.mxu0 0.0
    %1038 = vmatprep.subr.mxu0 0.0
    %1039 = vmatpush1.msra.mxu0 0.0
    %1040 = vmatprep.subr.mxu0 0.0
    %1041 = vmatpush1.msra.mxu0 0.0
    %1042 = vmatprep.subr.mxu0 0.0
    %1043 = vmatpush1.msra.mxu0 0.0
    %1044 = vmatprep.subr.mxu0 0.0
    %1045 = vmatpush1.msra.mxu0 0.0
    %1046 = vmatprep.subr.mxu0 0.0
    %1047 = vmatpush1.msra.mxu0 0.0
    %1048 = vmatprep.subr.mxu0 0.0
    %1049 = vmatpush1.msra.mxu0 0.0
    %1050 = vmatprep.subr.mxu0 0.0
    %1051 = vmatpush1.msra.mxu0 0.0
    %1052 = vmatprep.subr.mxu0 0.0
    %1053 = vmatpush1.msra.mxu0 0.0
    %1054 = vmatprep.subr.mxu0 0.0
    %1055 = vmatpush1.msra.mxu0 0.0
    %1056 = vmatprep.subr.mxu0 0.0
    %1057 = vmatpush1.msra.mxu0 0.0
    %1058 = vmatprep.subr.mxu0 0.0
    %1059 = vmatpush1.msra.mxu0 0.0
    %1060 = vmatprep.subr.mxu0 0.0
    %1061 = vmatpush1.msra.mxu0 0.0
    %1062 = vmatprep.subr.mxu0 0.0
    %1063 = vmatpush1.msra.mxu0 0.0
    %1064 = vmatprep.subr.mxu0 0.0
    %1065 = vmatpush1.msra.mxu0 0.0
    %1066 = vmatprep.subr.mxu0 0.0
    %1067 = vmatpush1.msra.mxu0 0.0
    %1068 = vmatprep.subr.mxu0 0.0
    %1069 = vmatpush1.msra.mxu0 0.0
    %1070 = vmatprep.mubr.f32.mxu0 0.0
    %1071 = vmatmul.mubr.f32.gmra.mrb[0].mxu0 %v1004
    %v1072 = vpop.f32.mrb[0].mxu0
    %v1073 = vadd.f32 %v81, %v1072
    %v1074 = vpop.f32.mrb[0].mxu0
    %1075 = vdwg.mxu0
    %v1077 = vsel %vm161, %v779, 0
    %1079 = vmatprep.subr.mxu0 0.0
    %1080 = vmatpush1.msra.mxu0 %v49
    %1081 = vmatprep.subr.mxu0 0.0
    %1082 = vmatpush1.msra.mxu0 %v50
    %1083 = vmatprep.subr.mxu0 0.0
    %1084 = vmatpush1.msra.mxu0 %v51
    %1085 = vmatprep.subr.mxu0 0.0
    %1086 = vmatpush1.msra.mxu0 %v52
    %1087 = vmatprep.subr.mxu0 0.0
    %1088 = vmatpush1.msra.mxu0 0.0
    %1089 = vmatprep.subr.mxu0 0.0
    %1090 = vmatpush1.msra.mxu0 0.0
    %1091 = vmatprep.subr.mxu0 0.0
    %1092 = vmatpush1.msra.mxu0 0.0
    %1093 = vmatprep.subr.mxu0 0.0
    %1094 = vmatpush1.msra.mxu0 0.0
    %1095 = vmatprep.subr.mxu0 0.0
    %1096 = vmatpush1.msra.mxu0 0.0
    %1097 = vmatprep.subr.mxu0 0.0
    %1098 = vmatpush1.msra.mxu0 0.0
    %1099 = vmatprep.subr.mxu0 0.0
    %1100 = vmatpush1.msra.mxu0 0.0
    %1101 = vmatprep.subr.mxu0 0.0
    %1102 = vmatpush1.msra.mxu0 0.0
    %1103 = vmatprep.subr.mxu0 0.0
    %1104 = vmatpush1.msra.mxu0 0.0
    %1105 = vmatprep.subr.mxu0 0.0
    %1106 = vmatpush1.msra.mxu0 0.0
    %1107 = vmatprep.subr.mxu0 0.0
    %1108 = vmatpush1.msra.mxu0 0.0
    %1109 = vmatprep.subr.mxu0 0.0
    %1110 = vmatpush1.msra.mxu0 0.0
    %1111 = vmatprep.subr.mxu0 0.0
    %1112 = vmatpush1.msra.mxu0 0.0
    %1113 = vmatprep.subr.mxu0 0.0
    %1114 = vmatpush1.msra.mxu0 0.0
    %1115 = vmatprep.subr.mxu0 0.0
    %1116 = vmatpush1.msra.mxu0 0.0
    %1117 = vmatprep.subr.mxu0 0.0
    %1118 = vmatpush1.msra.mxu0 0.0
    %1119 = vmatprep.subr.mxu0 0.0
    %1120 = vmatpush1.msra.mxu0 0.0
    %1121 = vmatprep.subr.mxu0 0.0
    %1122 = vmatpush1.msra.mxu0 0.0
    %1123 = vmatprep.subr.mxu0 0.0
    %1124 = vmatpush1.msra.mxu0 0.0
    %1125 = vmatprep.subr.mxu0 0.0
    %1126 = vmatpush1.msra.mxu0 0.0
    %1127 = vmatprep.subr.mxu0 0.0
    %1128 = vmatpush1.msra.mxu0 0.0
    %1129 = vmatprep.subr.mxu0 0.0
    %1130 = vmatpush1.msra.mxu0 0.0
    %1131 = vmatprep.subr.mxu0 0.0
    %1132 = vmatpush1.msra.mxu0 0.0
    %1133 = vmatprep.subr.mxu0 0.0
    %1134 = vmatpush1.msra.mxu0 0.0
    %1135 = vmatprep.subr.mxu0 0.0
    %1136 = vmatpush1.msra.mxu0 0.0
    %1137 = vmatprep.subr.mxu0 0.0
    %1138 = vmatpush1.msra.mxu0 0.0
    %1139 = vmatprep.subr.mxu0 0.0
    %1140 = vmatpush1.msra.mxu0 0.0
    %1141 = vmatprep.subr.mxu0 0.0
    %1142 = vmatpush1.msra.mxu0 0.0
    %1143 = vmatprep.mubr.f32.mxu0 0.0
    %1144 = vmatmul.mubr.f32.gmra.mrb[0].mxu0 %v1077
    %v1145 = vpop.f32.mrb[0].mxu0
    %v1146 = vadd.f32 0.0, %v1145
    %v1147 = vpop.f32.mrb[0].mxu0
    %1148 = vdwg.mxu0
    %v1149 = vadd.f32 %v1073, %v1146
    %v1150 = vtanh.pop %v1149
    %1151 = vmatprep.subr.mxu0 0.0
    %1152 = vmatpush1.msra.mxu0 %v45
    %1153 = vmatprep.subr.mxu0 0.0
    %1154 = vmatpush1.msra.mxu0 %v46
    %1155 = vmatprep.subr.mxu0 0.0
    %1156 = vmatpush1.msra.mxu0 %v47
    %1157 = vmatprep.subr.mxu0 0.0
    %1158 = vmatpush1.msra.mxu0 %v48
    %1159 = vmatprep.subr.mxu0 0.0
    %1160 = vmatpush1.msra.mxu0 0.0
    %1161 = vmatprep.subr.mxu0 0.0
    %1162 = vmatpush1.msra.mxu0 0.0
    %1163 = vmatprep.subr.mxu0 0.0
    %1164 = vmatpush1.msra.mxu0 0.0
    %1165 = vmatprep.subr.mxu0 0.0
    %1166 = vmatpush1.msra.mxu0 0.0
    %1167 = vmatprep.subr.mxu0 0.0
    %1168 = vmatpush1.msra.mxu0 0.0
    %1169 = vmatprep.subr.mxu0 0.0
    %1170 = vmatpush1.msra.mxu0 0.0
    %1171 = vmatprep.subr.mxu0 0.0
    %1172 = vmatpush1.msra.mxu0 0.0
    %1173 = vmatprep.subr.mxu0 0.0
    %1174 = vmatpush1.msra.mxu0 0.0
    %1175 = vmatprep.subr.mxu0 0.0
    %1176 = vmatpush1.msra.mxu0 0.0
    %1177 = vmatprep.subr.mxu0 0.0
    %1178 = vmatpush1.msra.mxu0 0.0
    %1179 = vmatprep.subr.mxu0 0.0
    %1180 = vmatpush1.msra.mxu0 0.0
    %1181 = vmatprep.subr.mxu0 0.0
    %1182 = vmatpush1.msra.mxu0 0.0
    %1183 = vmatprep.subr.mxu0 0.0
    %1184 = vmatpush1.msra.mxu0 0.0
    %1185 = vmatprep.subr.mxu0 0.0
    %1186 = vmatpush1.msra.mxu0 0.0
    %1187 = vmatprep.subr.mxu0 0.0
    %1188 = vmatpush1.msra.mxu0 0.0
    %1189 = vmatprep.subr.mxu0 0.0
    %1190 = vmatpush1.msra.mxu0 0.0
    %1191 = vmatprep.subr.mxu0 0.0
    %1192 = vmatpush1.msra.mxu0 0.0
    %1193 = vmatprep.subr.mxu0 0.0
    %1194 = vmatpush1.msra.mxu0 0.0
    %1195 = vmatprep.subr.mxu0 0.0
    %1196 = vmatpush1.msra.mxu0 0.0
    %1197 = vmatprep.subr.mxu0 0.0
    %1198 = vmatpush1.msra.mxu0 0.0
    %1199 = vmatprep.subr.mxu0 0.0
    %1200 = vmatpush1.msra.mxu0 0.0
    %1201 = vmatprep.subr.mxu0 0.0
    %1202 = vmatpush1.msra.mxu0 0.0
    %1203 = vmatprep.subr.mxu0 0.0
    %1204 = vmatpush1.msra.mxu0 0.0
    %1205 = vmatprep.subr.mxu0 0.0
    %1206 = vmatpush1.msra.mxu0 0.0
    %1207 = vmatprep.subr.mxu0 0.0
    %1208 = vmatpush1.msra.mxu0 0.0
    %1209 = vmatprep.subr.mxu0 0.0
    %1210 = vmatpush1.msra.mxu0 0.0
    %1211 = vmatprep.subr.mxu0 0.0
    %1212 = vmatpush1.msra.mxu0 0.0
    %1213 = vmatprep.subr.mxu0 0.0
    %1214 = vmatpush1.msra.mxu0 0.0
    %1215 = vmatprep.mubr.f32.mxu0 0.0
    %1216 = vmatmul.mubr.f32.gmra.mrb[0].mxu0 %v1077
    %v1217 = vpop.f32.mrb[0].mxu0
    %v1218 = vadd.f32 %v395, %v1217
    %v1219 = vpop.f32.mrb[0].mxu0
    %1220 = vdwg.mxu0
    %1221 = vmatprep.subr.mxu0 0.0
    %1222 = vmatpush1.msra.mxu0 %v54
    %1223 = vmatprep.subr.mxu0 0.0
    %1224 = vmatpush1.msra.mxu0 %v55
    %1225 = vmatprep.subr.mxu0 0.0
    %1226 = vmatpush1.msra.mxu0 %v56
    %1227 = vmatprep.subr.mxu0 0.0
    %1228 = vmatpush1.msra.mxu0 %v57
    %1229 = vmatprep.subr.mxu0 0.0
    %1230 = vmatpush1.msra.mxu0 0.0
    %1231 = vmatprep.subr.mxu0 0.0
    %1232 = vmatpush1.msra.mxu0 0.0
    %1233 = vmatprep.subr.mxu0 0.0
    %1234 = vmatpush1.msra.mxu0 0.0
    %1235 = vmatprep.subr.mxu0 0.0
    %1236 = vmatpush1.msra.mxu0 0.0
    %1237 = vmatprep.subr.mxu0 0.0
    %1238 = vmatpush1.msra.mxu0 0.0
    %1239 = vmatprep.subr.mxu0 0.0
    %1240 = vmatpush1.msra.mxu0 0.0
    %1241 = vmatprep.subr.mxu0 0.0
    %1242 = vmatpush1.msra.mxu0 0.0
    %1243 = vmatprep.subr.mxu0 0.0
    %1244 = vmatpush1.msra.mxu0 0.0
    %1245 = vmatprep.subr.mxu0 0.0
    %1246 = vmatpush1.msra.mxu0 0.0
    %1247 = vmatprep.subr.mxu0 0.0
    %1248 = vmatpush1.msra.mxu0 0.0
    %1249 = vmatprep.subr.mxu0 0.0
    %1250 = vmatpush1.msra.mxu0 0.0
    %1251 = vmatprep.subr.mxu0 0.0
    %1252 = vmatpush1.msra.mxu0 0.0
    %1253 = vmatprep.subr.mxu0 0.0
    %1254 = vmatpush1.msra.mxu0 0.0
    %1255 = vmatprep.subr.mxu0 0.0
    %1256 = vmatpush1.msra.mxu0 0.0
    %1257 = vmatprep.subr.mxu0 0.0
    %1258 = vmatpush1.msra.mxu0 0.0
    %1259 = vmatprep.subr.mxu0 0.0
    %1260 = vmatpush1.msra.mxu0 0.0
    %1261 = vmatprep.subr.mxu0 0.0
    %1262 = vmatpush1.msra.mxu0 0.0
    %1263 = vmatprep.subr.mxu0 0.0
    %1264 = vmatpush1.msra.mxu0 0.0
    %1265 = vmatprep.subr.mxu0 0.0
    %1266 = vmatpush1.msra.mxu0 0.0
    %1267 = vmatprep.subr.mxu0 0.0
    %1268 = vmatpush1.msra.mxu0 0.0
    %1269 = vmatprep.subr.mxu0 0.0
    %1270 = vmatpush1.msra.mxu0 0.0
    %1271 = vmatprep.subr.mxu0 0.0
    %1272 = vmatpush1.msra.mxu0 0.0
    %1273 = vmatprep.subr.mxu0 0.0
    %1274 = vmatpush1.msra.mxu0 0.0
    %1275 = vmatprep.subr.mxu0 0.0
    %1276 = vmatpush1.msra.mxu0 0.0
    %1277 = vmatprep.subr.mxu0 0.0
    %1278 = vmatpush1.msra.mxu0 0.0
    %1279 = vmatprep.subr.mxu0 0.0
    %1280 = vmatpush1.msra.mxu0 0.0
    %1281 = vmatprep.subr.mxu0 0.0
    %1282 = vmatpush1.msra.mxu0 0.0
    %1283 = vmatprep.subr.mxu0 0.0
    %1284 = vmatpush1.msra.mxu0 0.0
    %1285 = vmatprep.mubr.f32.mxu0 0.0
    %1286 = vmatmul.mubr.f32.gmra.mrb[0].mxu0 %v923
    %v1287 = vpop.f32.mrb[0].mxu0
    %v1288 = vadd.f32 0.0, %v1287
    %v1289 = vpop.f32.mrb[0].mxu0
    %1290 = vdwg.mxu0
    %v1291 = vadd.f32 %v1218, %v1288
    %v1292 = vtanh.pop %v1291
    %v1294 = vsel %vm161, %v1292, 0
    %1296 = vmatprep.subr.mxu0 0.0
    %1297 = vmatpush1.msra.mxu0 %v61
    %1298 = vmatprep.subr.mxu0 0.0
    %1299 = vmatpush1.msra.mxu0 %v62
    %1300 = vmatprep.subr.mxu0 0.0
    %1301 = vmatpush1.msra.mxu0 %v63
    %1302 = vmatprep.subr.mxu0 0.0
    %1303 = vmatpush1.msra.mxu0 %v64
    %1304 = vmatprep.subr.mxu0 0.0
    %1305 = vmatpush1.msra.mxu0 0.0
    %1306 = vmatprep.subr.mxu0 0.0
    %1307 = vmatpush1.msra.mxu0 0.0
    %1308 = vmatprep.subr.mxu0 0.0
    %1309 = vmatpush1.msra.mxu0 0.0
    %1310 = vmatprep.subr.mxu0 0.0
    %1311 = vmatpush1.msra.mxu0 0.0
    %1312 = vmatprep.subr.mxu0 0.0
    %1313 = vmatpush1.msra.mxu0 0.0
    %1314 = vmatprep.subr.mxu0 0.0
    %1315 = vmatpush1.msra.mxu0 0.0
    %1316 = vmatprep.subr.mxu0 0.0
    %1317 = vmatpush1.msra.mxu0 0.0
    %1318 = vmatprep.subr.mxu0 0.0
    %1319 = vmatpush1.msra.mxu0 0.0
    %1320 = vmatprep.subr.mxu0 0.0
    %1321 = vmatpush1.msra.mxu0 0.0
    %1322 = vmatprep.subr.mxu0 0.0
    %1323 = vmatpush1.msra.mxu0 0.0
    %1324 = vmatprep.subr.mxu0 0.0
    %1325 = vmatpush1.msra.mxu0 0.0
    %1326 = vmatprep.subr.mxu0 0.0
    %1327 = vmatpush1.msra.mxu0 0.0
    %1328 = vmatprep.subr.mxu0 0.0
    %1329 = vmatpush1.msra.mxu0 0.0
    %1330 = vmatprep.subr.mxu0 0.0
    %1331 = vmatpush1.msra.mxu0 0.0
    %1332 = vmatprep.subr.mxu0 0.0
    %1333 = vmatpush1.msra.mxu0 0.0
    %1334 = vmatprep.subr.mxu0 0.0
    %1335 = vmatpush1.msra.mxu0 0.0
    %1336 = vmatprep.subr.mxu0 0.0
    %1337 = vmatpush1.msra.mxu0 0.0
    %1338 = vmatprep.subr.mxu0 0.0
    %1339 = vmatpush1.msra.mxu0 0.0
    %1340 = vmatprep.subr.mxu0 0.0
    %1341 = vmatpush1.msra.mxu0 0.0
    %1342 = vmatprep.subr.mxu0 0.0
    %1343 = vmatpush1.msra.mxu0 0.0
    %1344 = vmatprep.subr.mxu0 0.0
    %1345 = vmatpush1.msra.mxu0 0.0
    %1346 = vmatprep.subr.mxu0 0.0
    %1347 = vmatpush1.msra.mxu0 0.0
    %1348 = vmatprep.subr.mxu0 0.0
    %1349 = vmatpush1.msra.mxu0 0.0
    %1350 = vmatprep.subr.mxu0 0.0
    %1351 = vmatpush1.msra.mxu0 0.0
    %1352 = vmatprep.subr.mxu0 0.0
    %1353 = vmatpush1.msra.mxu0 0.0
    %1354 = vmatprep.subr.mxu0 0.0
    %1355 = vmatpush1.msra.mxu0 0.0
    %1356 = vmatprep.subr.mxu0 0.0
    %1357 = vmatpush1.msra.mxu0 0.0
    %1358 = vmatprep.subr.mxu0 0.0
    %1359 = vmatpush1.msra.mxu0 0.0
    %1360 = vmatprep.mubr.f32.mxu0 0.0
    %1361 = vmatmul.mubr.f32.gmra.mrb[0].mxu0 %v1294
    %v1362 = vpop.f32.mrb[0].mxu0
    %v1363 = vadd.f32 %v546, %v1362
    %v1364 = vpop.f32.mrb[0].mxu0
    %1365 = vdwg.mxu0
    %1366 = vst.msk [vmem:[%s7 + $0x2] sm:$0x1] %vm621, %v1363
    %1367 = vst.msk [vmem:[%s623 + $0x1] sm:$0x2] %vm624, %v1363
    %v1368 = vld [vmem:[%s0 + $0x4] sm:$0x1]
    %v1369 = vld [vmem:[%s70 + $0x4] sm:$0x1]
    %v1371 = vrot.slane %v1369, 7
    %v1373 = vsel %vm75, %v1368, %v1371
    %v1375 = vsel %vm83, %v1373, 0
    %1377 = vmatprep.subr.mxu0 0.0
    %1378 = vmatpush1.msra.mxu0 %v89
    %1379 = vmatprep.subr.mxu0 0.0
    %1380 = vmatpush1.msra.mxu0 0.0
    %1381 = vmatprep.subr.mxu0 0.0
    %1382 = vmatpush1.msra.mxu0 0.0
    %1383 = vmatprep.subr.mxu0 0.0
    %1384 = vmatpush1.msra.mxu0 0.0
    %1385 = vmatprep.subr.mxu0 0.0
    %1386 = vmatpush1.msra.mxu0 0.0
    %1387 = vmatprep.subr.mxu0 0.0
    %1388 = vmatpush1.msra.mxu0 0.0
    %1389 = vmatprep.subr.mxu0 0.0
    %1390 = vmatpush1.msra.mxu0 0.0
    %1391 = vmatprep.subr.mxu0 0.0
    %1392 = vmatpush1.msra.mxu0 0.0
    %1393 = vmatprep.subr.mxu0 0.0
    %1394 = vmatpush1.msra.mxu0 0.0
    %1395 = vmatprep.subr.mxu0 0.0
    %1396 = vmatpush1.msra.mxu0 0.0
    %1397 = vmatprep.subr.mxu0 0.0
    %1398 = vmatpush1.msra.mxu0 0.0
    %1399 = vmatprep.subr.mxu0 0.0
    %1400 = vmatpush1.msra.mxu0 0.0
    %1401 = vmatprep.subr.mxu0 0.0
    %1402 = vmatpush1.msra.mxu0 0.0
    %1403 = vmatprep.subr.mxu0 0.0
    %1404 = vmatpush1.msra.mxu0 0.0
    %1405 = vmatprep.subr.mxu0 0.0
    %1406 = vmatpush1.msra.mxu0 0.0
    %1407 = vmatprep.subr.mxu0 0.0
    %1408 = vmatpush1.msra.mxu0 0.0
    %1409 = vmatprep.subr.mxu0 0.0
    %1410 = vmatpush1.msra.mxu0 0.0
    %1411 = vmatprep.subr.mxu0 0.0
    %1412 = vmatpush1.msra.mxu0 0.0
    %1413 = vmatprep.subr.mxu0 0.0
    %1414 = vmatpush1.msra.mxu0 0.0
    %1415 = vmatprep.subr.mxu0 0.0
    %1416 = vmatpush1.msra.mxu0 0.0
    %1417 = vmatprep.subr.mxu0 0.0
    %1418 = vmatpush1.msra.mxu0 0.0
    %1419 = vmatprep.subr.mxu0 0.0
    %1420 = vmatpush1.msra.mxu0 0.0
    %1421 = vmatprep.subr.mxu0 0.0
    %1422 = vmatpush1.msra.mxu0 0.0
    %1423 = vmatprep.subr.mxu0 0.0
    %1424 = vmatpush1.msra.mxu0 0.0
    %1425 = vmatprep.subr.mxu0 0.0
    %1426 = vmatpush1.msra.mxu0 0.0
    %1427 = vmatprep.subr.mxu0 0.0
    %1428 = vmatpush1.msra.mxu0 0.0
    %1429 = vmatprep.subr.mxu0 0.0
    %1430 = vmatpush1.msra.mxu0 0.0
    %1431 = vmatprep.subr.mxu0 0.0
    %1432 = vmatpush1.msra.mxu0 0.0
    %1433 = vmatprep.subr.mxu0 0.0
    %1434 = vmatpush1.msra.mxu0 0.0
    %1435 = vmatprep.subr.mxu0 0.0
    %1436 = vmatpush1.msra.mxu0 0.0
    %1437 = vmatprep.subr.mxu0 0.0
    %1438 = vmatpush1.msra.mxu0 0.0
    %1439 = vmatprep.subr.mxu0 0.0
    %1440 = vmatpush1.msra.mxu0 0.0
    %1441 = vmatprep.mubr.f32.mxu0 0.0
    %1442 = vmatmul.mubr.f32.gmra.mrb[0].mxu0 %v1375
    %v1443 = vpop.f32.mrb[0].mxu0
    %v1444 = vadd.f32 %v81, %v1443
    %v1445 = vpop.f32.mrb[0].mxu0
    %1446 = vdwg.mxu0
    %v1448 = vsel %vm161, %v1150, 0
    %1450 = vmatprep.subr.mxu0 0.0
    %1451 = vmatpush1.msra.mxu0 %v49
    %1452 = vmatprep.subr.mxu0 0.0
    %1453 = vmatpush1.msra.mxu0 %v50
    %1454 = vmatprep.subr.mxu0 0.0
    %1455 = vmatpush1.msra.mxu0 %v51
    %1456 = vmatprep.subr.mxu0 0.0
    %1457 = vmatpush1.msra.mxu0 %v52
    %1458 = vmatprep.subr.mxu0 0.0
    %1459 = vmatpush1.msra.mxu0 0.0
    %1460 = vmatprep.subr.mxu0 0.0
    %1461 = vmatpush1.msra.mxu0 0.0
    %1462 = vmatprep.subr.mxu0 0.0
    %1463 = vmatpush1.msra.mxu0 0.0
    %1464 = vmatprep.subr.mxu0 0.0
    %1465 = vmatpush1.msra.mxu0 0.0
    %1466 = vmatprep.subr.mxu0 0.0
    %1467 = vmatpush1.msra.mxu0 0.0
    %1468 = vmatprep.subr.mxu0 0.0
    %1469 = vmatpush1.msra.mxu0 0.0
    %1470 = vmatprep.subr.mxu0 0.0
    %1471 = vmatpush1.msra.mxu0 0.0
    %1472 = vmatprep.subr.mxu0 0.0
    %1473 = vmatpush1.msra.mxu0 0.0
    %1474 = vmatprep.subr.mxu0 0.0
    %1475 = vmatpush1.msra.mxu0 0.0
    %1476 = vmatprep.subr.mxu0 0.0
    %1477 = vmatpush1.msra.mxu0 0.0
    %1478 = vmatprep.subr.mxu0 0.0
    %1479 = vmatpush1.msra.mxu0 0.0
    %1480 = vmatprep.subr.mxu0 0.0
    %1481 = vmatpush1.msra.mxu0 0.0
    %1482 = vmatprep.subr.mxu0 0.0
    %1483 = vmatpush1.msra.mxu0 0.0
    %1484 = vmatprep.subr.mxu0 0.0
    %1485 = vmatpush1.msra.mxu0 0.0
    %1486 = vmatprep.subr.mxu0 0.0
    %1487 = vmatpush1.msra.mxu0 0.0
    %1488 = vmatprep.subr.mxu0 0.0
    %1489 = vmatpush1.msra.mxu0 0.0
    %1490 = vmatprep.subr.mxu0 0.0
    %1491 = vmatpush1.msra.mxu0 0.0
    %1492 = vmatprep.subr.mxu0 0.0
    %1493 = vmatpush1.msra.mxu0 0.0
    %1494 = vmatprep.subr.mxu0 0.0
    %1495 = vmatpush1.msra.mxu0 0.0
    %1496 = vmatprep.subr.mxu0 0.0
    %1497 = vmatpush1.msra.mxu0 0.0
    %1498 = vmatprep.subr.mxu0 0.0
    %1499 = vmatpush1.msra.mxu0 0.0
    %1500 = vmatprep.subr.mxu0 0.0
    %1501 = vmatpush1.msra.mxu0 0.0
    %1502 = vmatprep.subr.mxu0 0.0
    %1503 = vmatpush1.msra.mxu0 0.0
    %1504 = vmatprep.subr.mxu0 0.0
    %1505 = vmatpush1.msra.mxu0 0.0
    %1506 = vmatprep.subr.mxu0 0.0
    %1507 = vmatpush1.msra.mxu0 0.0
    %1508 = vmatprep.subr.mxu0 0.0
    %1509 = vmatpush1.msra.mxu0 0.0
    %1510 = vmatprep.subr.mxu0 0.0
    %1511 = vmatpush1.msra.mxu0 0.0
    %1512 = vmatprep.subr.mxu0 0.0
    %1513 = vmatpush1.msra.mxu0 0.0
    %1514 = vmatprep.mubr.f32.mxu0 0.0
    %1515 = vmatmul.mubr.f32.gmra.mrb[0].mxu0 %v1448
    %v1516 = vpop.f32.mrb[0].mxu0
    %v1517 = vadd.f32 0.0, %v1516
    %v1518 = vpop.f32.mrb[0].mxu0
    %1519 = vdwg.mxu0
    %v1520 = vadd.f32 %v1444, %v1517
    %v1521 = vtanh.pop %v1520
    %1522 = vmatprep.subr.mxu0 0.0
    %1523 = vmatpush1.msra.mxu0 %v45
    %1524 = vmatprep.subr.mxu0 0.0
    %1525 = vmatpush1.msra.mxu0 %v46
    %1526 = vmatprep.subr.mxu0 0.0
    %1527 = vmatpush1.msra.mxu0 %v47
    %1528 = vmatprep.subr.mxu0 0.0
    %1529 = vmatpush1.msra.mxu0 %v48
    %1530 = vmatprep.subr.mxu0 0.0
    %1531 = vmatpush1.msra.mxu0 0.0
    %1532 = vmatprep.subr.mxu0 0.0
    %1533 = vmatpush1.msra.mxu0 0.0
    %1534 = vmatprep.subr.mxu0 0.0
    %1535 = vmatpush1.msra.mxu0 0.0
    %1536 = vmatprep.subr.mxu0 0.0
    %1537 = vmatpush1.msra.mxu0 0.0
    %1538 = vmatprep.subr.mxu0 0.0
    %1539 = vmatpush1.msra.mxu0 0.0
    %1540 = vmatprep.subr.mxu0 0.0
    %1541 = vmatpush1.msra.mxu0 0.0
    %1542 = vmatprep.subr.mxu0 0.0
    %1543 = vmatpush1.msra.mxu0 0.0
    %1544 = vmatprep.subr.mxu0 0.0
    %1545 = vmatpush1.msra.mxu0 0.0
    %1546 = vmatprep.subr.mxu0 0.0
    %1547 = vmatpush1.msra.mxu0 0.0
    %1548 = vmatprep.subr.mxu0 0.0
    %1549 = vmatpush1.msra.mxu0 0.0
    %1550 = vmatprep.subr.mxu0 0.0
    %1551 = vmatpush1.msra.mxu0 0.0
    %1552 = vmatprep.subr.mxu0 0.0
    %1553 = vmatpush1.msra.mxu0 0.0
    %1554 = vmatprep.subr.mxu0 0.0
    %1555 = vmatpush1.msra.mxu0 0.0
    %1556 = vmatprep.subr.mxu0 0.0
    %1557 = vmatpush1.msra.mxu0 0.0
    %1558 = vmatprep.subr.mxu0 0.0
    %1559 = vmatpush1.msra.mxu0 0.0
    %1560 = vmatprep.subr.mxu0 0.0
    %1561 = vmatpush1.msra.mxu0 0.0
    %1562 = vmatprep.subr.mxu0 0.0
    %1563 = vmatpush1.msra.mxu0 0.0
    %1564 = vmatprep.subr.mxu0 0.0
    %1565 = vmatpush1.msra.mxu0 0.0
    %1566 = vmatprep.subr.mxu0 0.0
    %1567 = vmatpush1.msra.mxu0 0.0
    %1568 = vmatprep.subr.mxu0 0.0
    %1569 = vmatpush1.msra.mxu0 0.0
    %1570 = vmatprep.subr.mxu0 0.0
    %1571 = vmatpush1.msra.mxu0 0.0
    %1572 = vmatprep.subr.mxu0 0.0
    %1573 = vmatpush1.msra.mxu0 0.0
    %1574 = vmatprep.subr.mxu0 0.0
    %1575 = vmatpush1.msra.mxu0 0.0
    %1576 = vmatprep.subr.mxu0 0.0
    %1577 = vmatpush1.msra.mxu0 0.0
    %1578 = vmatprep.subr.mxu0 0.0
    %1579 = vmatpush1.msra.mxu0 0.0
    %1580 = vmatprep.subr.mxu0 0.0
    %1581 = vmatpush1.msra.mxu0 0.0
    %1582 = vmatprep.subr.mxu0 0.0
    %1583 = vmatpush1.msra.mxu0 0.0
    %1584 = vmatprep.subr.mxu0 0.0
    %1585 = vmatpush1.msra.mxu0 0.0
    %1586 = vmatprep.mubr.f32.mxu0 0.0
    %1587 = vmatmul.mubr.f32.gmra.mrb[0].mxu0 %v1448
    %v1588 = vpop.f32.mrb[0].mxu0
    %v1589 = vadd.f32 %v395, %v1588
    %v1590 = vpop.f32.mrb[0].mxu0
    %1591 = vdwg.mxu0
    %1592 = vmatprep.subr.mxu0 0.0
    %1593 = vmatpush1.msra.mxu0 %v54
    %1594 = vmatprep.subr.mxu0 0.0
    %1595 = vmatpush1.msra.mxu0 %v55
    %1596 = vmatprep.subr.mxu0 0.0
    %1597 = vmatpush1.msra.mxu0 %v56
    %1598 = vmatprep.subr.mxu0 0.0
    %1599 = vmatpush1.msra.mxu0 %v57
    %1600 = vmatprep.subr.mxu0 0.0
    %1601 = vmatpush1.msra.mxu0 0.0
    %1602 = vmatprep.subr.mxu0 0.0
    %1603 = vmatpush1.msra.mxu0 0.0
    %1604 = vmatprep.subr.mxu0 0.0
    %1605 = vmatpush1.msra.mxu0 0.0
    %1606 = vmatprep.subr.mxu0 0.0
    %1607 = vmatpush1.msra.mxu0 0.0
    %1608 = vmatprep.subr.mxu0 0.0
    %1609 = vmatpush1.msra.mxu0 0.0
    %1610 = vmatprep.subr.mxu0 0.0
    %1611 = vmatpush1.msra.mxu0 0.0
    %1612 = vmatprep.subr.mxu0 0.0
    %1613 = vmatpush1.msra.mxu0 0.0
    %1614 = vmatprep.subr.mxu0 0.0
    %1615 = vmatpush1.msra.mxu0 0.0
    %1616 = vmatprep.subr.mxu0 0.0
    %1617 = vmatpush1.msra.mxu0 0.0
    %1618 = vmatprep.subr.mxu0 0.0
    %1619 = vmatpush1.msra.mxu0 0.0
    %1620 = vmatprep.subr.mxu0 0.0
    %1621 = vmatpush1.msra.mxu0 0.0
    %1622 = vmatprep.subr.mxu0 0.0
    %1623 = vmatpush1.msra.mxu0 0.0
    %1624 = vmatprep.subr.mxu0 0.0
    %1625 = vmatpush1.msra.mxu0 0.0
    %1626 = vmatprep.subr.mxu0 0.0
    %1627 = vmatpush1.msra.mxu0 0.0
    %1628 = vmatprep.subr.mxu0 0.0
    %1629 = vmatpush1.msra.mxu0 0.0
    %1630 = vmatprep.subr.mxu0 0.0
    %1631 = vmatpush1.msra.mxu0 0.0
    %1632 = vmatprep.subr.mxu0 0.0
    %1633 = vmatpush1.msra.mxu0 0.0
    %1634 = vmatprep.subr.mxu0 0.0
    %1635 = vmatpush1.msra.mxu0 0.0
    %1636 = vmatprep.subr.mxu0 0.0
    %1637 = vmatpush1.msra.mxu0 0.0
    %1638 = vmatprep.subr.mxu0 0.0
    %1639 = vmatpush1.msra.mxu0 0.0
    %1640 = vmatprep.subr.mxu0 0.0
    %1641 = vmatpush1.msra.mxu0 0.0
    %1642 = vmatprep.subr.mxu0 0.0
    %1643 = vmatpush1.msra.mxu0 0.0
    %1644 = vmatprep.subr.mxu0 0.0
    %1645 = vmatpush1.msra.mxu0 0.0
    %1646 = vmatprep.subr.mxu0 0.0
    %1647 = vmatpush1.msra.mxu0 0.0
    %1648 = vmatprep.subr.mxu0 0.0
    %1649 = vmatpush1.msra.mxu0 0.0
    %1650 = vmatprep.subr.mxu0 0.0
    %1651 = vmatpush1.msra.mxu0 0.0
    %1652 = vmatprep.subr.mxu0 0.0
    %1653 = vmatpush1.msra.mxu0 0.0
    %1654 = vmatprep.subr.mxu0 0.0
    %1655 = vmatpush1.msra.mxu0 0.0
    %1656 = vmatprep.mubr.f32.mxu0 0.0
    %1657 = vmatmul.mubr.f32.gmra.mrb[0].mxu0 %v1294
    %v1658 = vpop.f32.mrb[0].mxu0
    %v1659 = vadd.f32 0.0, %v1658
    %v1660 = vpop.f32.mrb[0].mxu0
    %1661 = vdwg.mxu0
    %v1662 = vadd.f32 %v1589, %v1659
    %v1663 = vtanh.pop %v1662
    %v1665 = vsel %vm161, %v1663, 0
    %1667 = vmatprep.subr.mxu0 0.0
    %1668 = vmatpush1.msra.mxu0 %v61
    %1669 = vmatprep.subr.mxu0 0.0
    %1670 = vmatpush1.msra.mxu0 %v62
    %1671 = vmatprep.subr.mxu0 0.0
    %1672 = vmatpush1.msra.mxu0 %v63
    %1673 = vmatprep.subr.mxu0 0.0
    %1674 = vmatpush1.msra.mxu0 %v64
    %1675 = vmatprep.subr.mxu0 0.0
    %1676 = vmatpush1.msra.mxu0 0.0
    %1677 = vmatprep.subr.mxu0 0.0
    %1678 = vmatpush1.msra.mxu0 0.0
    %1679 = vmatprep.subr.mxu0 0.0
    %1680 = vmatpush1.msra.mxu0 0.0
    %1681 = vmatprep.subr.mxu0 0.0
    %1682 = vmatpush1.msra.mxu0 0.0
    %1683 = vmatprep.subr.mxu0 0.0
    %1684 = vmatpush1.msra.mxu0 0.0
    %1685 = vmatprep.subr.mxu0 0.0
    %1686 = vmatpush1.msra.mxu0 0.0
    %1687 = vmatprep.subr.mxu0 0.0
    %1688 = vmatpush1.msra.mxu0 0.0
    %1689 = vmatprep.subr.mxu0 0.0
    %1690 = vmatpush1.msra.mxu0 0.0
    %1691 = vmatprep.subr.mxu0 0.0
    %1692 = vmatpush1.msra.mxu0 0.0
    %1693 = vmatprep.subr.mxu0 0.0
    %1694 = vmatpush1.msra.mxu0 0.0
    %1695 = vmatprep.subr.mxu0 0.0
    %1696 = vmatpush1.msra.mxu0 0.0
    %1697 = vmatprep.subr.mxu0 0.0
    %1698 = vmatpush1.msra.mxu0 0.0
    %1699 = vmatprep.subr.mxu0 0.0
    %1700 = vmatpush1.msra.mxu0 0.0
    %1701 = vmatprep.subr.mxu0 0.0
    %1702 = vmatpush1.msra.mxu0 0.0
    %1703 = vmatprep.subr.mxu0 0.0
    %1704 = vmatpush1.msra.mxu0 0.0
    %1705 = vmatprep.subr.mxu0 0.0
    %1706 = vmatpush1.msra.mxu0 0.0
    %1707 = vmatprep.subr.mxu0 0.0
    %1708 = vmatpush1.msra.mxu0 0.0
    %1709 = vmatprep.subr.mxu0 0.0
    %1710 = vmatpush1.msra.mxu0 0.0
    %1711 = vmatprep.subr.mxu0 0.0
    %1712 = vmatpush1.msra.mxu0 0.0
    %1713 = vmatprep.subr.mxu0 0.0
    %1714 = vmatpush1.msra.mxu0 0.0
    %1715 = vmatprep.subr.mxu0 0.0
    %1716 = vmatpush1.msra.mxu0 0.0
    %1717 = vmatprep.subr.mxu0 0.0
    %1718 = vmatpush1.msra.mxu0 0.0
    %1719 = vmatprep.subr.mxu0 0.0
    %1720 = vmatpush1.msra.mxu0 0.0
    %1721 = vmatprep.subr.mxu0 0.0
    %1722 = vmatpush1.msra.mxu0 0.0
    %1723 = vmatprep.subr.mxu0 0.0
    %1724 = vmatpush1.msra.mxu0 0.0
    %1725 = vmatprep.subr.mxu0 0.0
    %1726 = vmatpush1.msra.mxu0 0.0
    %1727 = vmatprep.subr.mxu0 0.0
    %1728 = vmatpush1.msra.mxu0 0.0
    %1729 = vmatprep.subr.mxu0 0.0
    %1730 = vmatpush1.msra.mxu0 0.0
    %1731 = vmatprep.mubr.f32.mxu0 0.0
    %1732 = vmatmul.mubr.f32.gmra.mrb[0].mxu0 %v1665
    %v1733 = vpop.f32.mrb[0].mxu0
    %v1734 = vadd.f32 %v546, %v1733
    %v1735 = vpop.f32.mrb[0].mxu0
    %1736 = vdwg.mxu0
    %1737 = vst.msk [vmem:[%s7 + $0x3] sm:$0x1] %vm621, %v1734
    %1738 = vst.msk [vmem:[%s623 + $0x2] sm:$0x2] %vm624, %v1734
    %v1739 = vld [vmem:[%s0 + $0x5] sm:$0x1]
    %v1740 = vld [vmem:[%s70 + $0x5] sm:$0x1]
    %v1742 = vrot.slane %v1740, 7
    %v1744 = vsel %vm75, %v1739, %v1742
    %v1746 = vsel %vm83, %v1744, 0
    %1748 = vmatprep.subr.mxu0 0.0
    %1749 = vmatpush1.msra.mxu0 %v89
    %1750 = vmatprep.subr.mxu0 0.0
    %1751 = vmatpush1.msra.mxu0 0.0
    %1752 = vmatprep.subr.mxu0 0.0
    %1753 = vmatpush1.msra.mxu0 0.0
    %1754 = vmatprep.subr.mxu0 0.0
    %1755 = vmatpush1.msra.mxu0 0.0
    %1756 = vmatprep.subr.mxu0 0.0
    %1757 = vmatpush1.msra.mxu0 0.0
    %1758 = vmatprep.subr.mxu0 0.0
    %1759 = vmatpush1.msra.mxu0 0.0
    %1760 = vmatprep.subr.mxu0 0.0
    %1761 = vmatpush1.msra.mxu0 0.0
    %1762 = vmatprep.subr.mxu0 0.0
    %1763 = vmatpush1.msra.mxu0 0.0
    %1764 = vmatprep.subr.mxu0 0.0
    %1765 = vmatpush1.msra.mxu0 0.0
    %1766 = vmatprep.subr.mxu0 0.0
    %1767 = vmatpush1.msra.mxu0 0.0
    %1768 = vmatprep.subr.mxu0 0.0
    %1769 = vmatpush1.msra.mxu0 0.0
    %1770 = vmatprep.subr.mxu0 0.0
    %1771 = vmatpush1.msra.mxu0 0.0
    %1772 = vmatprep.subr.mxu0 0.0
    %1773 = vmatpush1.msra.mxu0 0.0
    %1774 = vmatprep.subr.mxu0 0.0
    %1775 = vmatpush1.msra.mxu0 0.0
    %1776 = vmatprep.subr.mxu0 0.0
    %1777 = vmatpush1.msra.mxu0 0.0
    %1778 = vmatprep.subr.mxu0 0.0
    %1779 = vmatpush1.msra.mxu0 0.0
    %1780 = vmatprep.subr.mxu0 0.0
    %1781 = vmatpush1.msra.mxu0 0.0
    %1782 = vmatprep.subr.mxu0 0.0
    %1783 = vmatpush1.msra.mxu0 0.0
    %1784 = vmatprep.subr.mxu0 0.0
    %1785 = vmatpush1.msra.mxu0 0.0
    %1786 = vmatprep.subr.mxu0 0.0
    %1787 = vmatpush1.msra.mxu0 0.0
    %1788 = vmatprep.subr.mxu0 0.0
    %1789 = vmatpush1.msra.mxu0 0.0
    %1790 = vmatprep.subr.mxu0 0.0
    %1791 = vmatpush1.msra.mxu0 0.0
    %1792 = vmatprep.subr.mxu0 0.0
    %1793 = vmatpush1.msra.mxu0 0.0
    %1794 = vmatprep.subr.mxu0 0.0
    %1795 = vmatpush1.msra.mxu0 0.0
    %1796 = vmatprep.subr.mxu0 0.0
    %1797 = vmatpush1.msra.mxu0 0.0
    %1798 = vmatprep.subr.mxu0 0.0
    %1799 = vmatpush1.msra.mxu0 0.0
    %1800 = vmatprep.subr.mxu0 0.0
    %1801 = vmatpush1.msra.mxu0 0.0
    %1802 = vmatprep.subr.mxu0 0.0
    %1803 = vmatpush1.msra.mxu0 0.0
    %1804 = vmatprep.subr.mxu0 0.0
    %1805 = vmatpush1.msra.mxu0 0.0
    %1806 = vmatprep.subr.mxu0 0.0
    %1807 = vmatpush1.msra.mxu0 0.0
    %1808 = vmatprep.subr.mxu0 0.0
    %1809 = vmatpush1.msra.mxu0 0.0
    %1810 = vmatprep.subr.mxu0 0.0
    %1811 = vmatpush1.msra.mxu0 0.0
    %1812 = vmatprep.mubr.f32.mxu0 0.0
    %1813 = vmatmul.mubr.f32.gmra.mrb[0].mxu0 %v1746
    %v1814 = vpop.f32.mrb[0].mxu0
    %v1815 = vadd.f32 %v81, %v1814
    %v1816 = vpop.f32.mrb[0].mxu0
    %1817 = vdwg.mxu0
    %v1819 = vsel %vm161, %v1521, 0
    %1821 = vmatprep.subr.mxu0 0.0
    %1822 = vmatpush1.msra.mxu0 %v49
    %1823 = vmatprep.subr.mxu0 0.0
    %1824 = vmatpush1.msra.mxu0 %v50
    %1825 = vmatprep.subr.mxu0 0.0
    %1826 = vmatpush1.msra.mxu0 %v51
    %1827 = vmatprep.subr.mxu0 0.0
    %1828 = vmatpush1.msra.mxu0 %v52
    %1829 = vmatprep.subr.mxu0 0.0
    %1830 = vmatpush1.msra.mxu0 0.0
    %1831 = vmatprep.subr.mxu0 0.0
    %1832 = vmatpush1.msra.mxu0 0.0
    %1833 = vmatprep.subr.mxu0 0.0
    %1834 = vmatpush1.msra.mxu0 0.0
    %1835 = vmatprep.subr.mxu0 0.0
    %1836 = vmatpush1.msra.mxu0 0.0
    %1837 = vmatprep.subr.mxu0 0.0
    %1838 = vmatpush1.msra.mxu0 0.0
    %1839 = vmatprep.subr.mxu0 0.0
    %1840 = vmatpush1.msra.mxu0 0.0
    %1841 = vmatprep.subr.mxu0 0.0
    %1842 = vmatpush1.msra.mxu0 0.0
    %1843 = vmatprep.subr.mxu0 0.0
    %1844 = vmatpush1.msra.mxu0 0.0
    %1845 = vmatprep.subr.mxu0 0.0
    %1846 = vmatpush1.msra.mxu0 0.0
    %1847 = vmatprep.subr.mxu0 0.0
    %1848 = vmatpush1.msra.mxu0 0.0
    %1849 = vmatprep.subr.mxu0 0.0
    %1850 = vmatpush1.msra.mxu0 0.0
    %1851 = vmatprep.subr.mxu0 0.0
    %1852 = vmatpush1.msra.mxu0 0.0
    %1853 = vmatprep.subr.mxu0 0.0
    %1854 = vmatpush1.msra.mxu0 0.0
    %1855 = vmatprep.subr.mxu0 0.0
    %1856 = vmatpush1.msra.mxu0 0.0
    %1857 = vmatprep.subr.mxu0 0.0
    %1858 = vmatpush1.msra.mxu0 0.0
    %1859 = vmatprep.subr.mxu0 0.0
    %1860 = vmatpush1.msra.mxu0 0.0
    %1861 = vmatprep.subr.mxu0 0.0
    %1862 = vmatpush1.msra.mxu0 0.0
    %1863 = vmatprep.subr.mxu0 0.0
    %1864 = vmatpush1.msra.mxu0 0.0
    %1865 = vmatprep.subr.mxu0 0.0
    %1866 = vmatpush1.msra.mxu0 0.0
    %1867 = vmatprep.subr.mxu0 0.0
    %1868 = vmatpush1.msra.mxu0 0.0
    %1869 = vmatprep.subr.mxu0 0.0
    %1870 = vmatpush1.msra.mxu0 0.0
    %1871 = vmatprep.subr.mxu0 0.0
    %1872 = vmatpush1.msra.mxu0 0.0
    %1873 = vmatprep.subr.mxu0 0.0
    %1874 = vmatpush1.msra.mxu0 0.0
    %1875 = vmatprep.subr.mxu0 0.0
    %1876 = vmatpush1.msra.mxu0 0.0
    %1877 = vmatprep.subr.mxu0 0.0
    %1878 = vmatpush1.msra.mxu0 0.0
    %1879 = vmatprep.subr.mxu0 0.0
    %1880 = vmatpush1.msra.mxu0 0.0
    %1881 = vmatprep.subr.mxu0 0.0
    %1882 = vmatpush1.msra.mxu0 0.0
    %1883 = vmatprep.subr.mxu0 0.0
    %1884 = vmatpush1.msra.mxu0 0.0
    %1885 = vmatprep.mubr.f32.mxu0 0.0
    %1886 = vmatmul.mubr.f32.gmra.mrb[0].mxu0 %v1819
    %v1887 = vpop.f32.mrb[0].mxu0
    %v1888 = vadd.f32 0.0, %v1887
    %v1889 = vpop.f32.mrb[0].mxu0
    %1890 = vdwg.mxu0
    %v1891 = vadd.f32 %v1815, %v1888
    %v1892 = vtanh.pop %v1891
    %1893 = vmatprep.subr.mxu0 0.0
    %1894 = vmatpush1.msra.mxu0 %v45
    %1895 = vmatprep.subr.mxu0 0.0
    %1896 = vmatpush1.msra.mxu0 %v46
    %1897 = vmatprep.subr.mxu0 0.0
    %1898 = vmatpush1.msra.mxu0 %v47
    %1899 = vmatprep.subr.mxu0 0.0
    %1900 = vmatpush1.msra.mxu0 %v48
    %1901 = vmatprep.subr.mxu0 0.0
    %1902 = vmatpush1.msra.mxu0 0.0
    %1903 = vmatprep.subr.mxu0 0.0
    %1904 = vmatpush1.msra.mxu0 0.0
    %1905 = vmatprep.subr.mxu0 0.0
    %1906 = vmatpush1.msra.mxu0 0.0
    %1907 = vmatprep.subr.mxu0 0.0
    %1908 = vmatpush1.msra.mxu0 0.0
    %1909 = vmatprep.subr.mxu0 0.0
    %1910 = vmatpush1.msra.mxu0 0.0
    %1911 = vmatprep.subr.mxu0 0.0
    %1912 = vmatpush1.msra.mxu0 0.0
    %1913 = vmatprep.subr.mxu0 0.0
    %1914 = vmatpush1.msra.mxu0 0.0
    %1915 = vmatprep.subr.mxu0 0.0
    %1916 = vmatpush1.msra.mxu0 0.0
    %1917 = vmatprep.subr.mxu0 0.0
    %1918 = vmatpush1.msra.mxu0 0.0
    %1919 = vmatprep.subr.mxu0 0.0
    %1920 = vmatpush1.msra.mxu0 0.0
    %1921 = vmatprep.subr.mxu0 0.0
    %1922 = vmatpush1.msra.mxu0 0.0
    %1923 = vmatprep.subr.mxu0 0.0
    %1924 = vmatpush1.msra.mxu0 0.0
    %1925 = vmatprep.subr.mxu0 0.0
    %1926 = vmatpush1.msra.mxu0 0.0
    %1927 = vmatprep.subr.mxu0 0.0
    %1928 = vmatpush1.msra.mxu0 0.0
    %1929 = vmatprep.subr.mxu0 0.0
    %1930 = vmatpush1.msra.mxu0 0.0
    %1931 = vmatprep.subr.mxu0 0.0
    %1932 = vmatpush1.msra.mxu0 0.0
    %1933 = vmatprep.subr.mxu0 0.0
    %1934 = vmatpush1.msra.mxu0 0.0
    %1935 = vmatprep.subr.mxu0 0.0
    %1936 = vmatpush1.msra.mxu0 0.0
    %1937 = vmatprep.subr.mxu0 0.0
    %1938 = vmatpush1.msra.mxu0 0.0
    %1939 = vmatprep.subr.mxu0 0.0
    %1940 = vmatpush1.msra.mxu0 0.0
    %1941 = vmatprep.subr.mxu0 0.0
    %1942 = vmatpush1.msra.mxu0 0.0
    %1943 = vmatprep.subr.mxu0 0.0
    %1944 = vmatpush1.msra.mxu0 0.0
    %1945 = vmatprep.subr.mxu0 0.0
    %1946 = vmatpush1.msra.mxu0 0.0
    %1947 = vmatprep.subr.mxu0 0.0
    %1948 = vmatpush1.msra.mxu0 0.0
    %1949 = vmatprep.subr.mxu0 0.0
    %1950 = vmatpush1.msra.mxu0 0.0
    %1951 = vmatprep.subr.mxu0 0.0
    %1952 = vmatpush1.msra.mxu0 0.0
    %1953 = vmatprep.subr.mxu0 0.0
    %1954 = vmatpush1.msra.mxu0 0.0
    %1955 = vmatprep.subr.mxu0 0.0
    %1956 = vmatpush1.msra.mxu0 0.0
    %1957 = vmatprep.mubr.f32.mxu0 0.0
    %1958 = vmatmul.mubr.f32.gmra.mrb[0].mxu0 %v1819
    %v1959 = vpop.f32.mrb[0].mxu0
    %v1960 = vadd.f32 %v395, %v1959
    %v1961 = vpop.f32.mrb[0].mxu0
    %1962 = vdwg.mxu0
    %1963 = vmatprep.subr.mxu0 0.0
    %1964 = vmatpush1.msra.mxu0 %v54
    %1965 = vmatprep.subr.mxu0 0.0
    %1966 = vmatpush1.msra.mxu0 %v55
    %1967 = vmatprep.subr.mxu0 0.0
    %1968 = vmatpush1.msra.mxu0 %v56
    %1969 = vmatprep.subr.mxu0 0.0
    %1970 = vmatpush1.msra.mxu0 %v57
    %1971 = vmatprep.subr.mxu0 0.0
    %1972 = vmatpush1.msra.mxu0 0.0
    %1973 = vmatprep.subr.mxu0 0.0
    %1974 = vmatpush1.msra.mxu0 0.0
    %1975 = vmatprep.subr.mxu0 0.0
    %1976 = vmatpush1.msra.mxu0 0.0
    %1977 = vmatprep.subr.mxu0 0.0
    %1978 = vmatpush1.msra.mxu0 0.0
    %1979 = vmatprep.subr.mxu0 0.0
    %1980 = vmatpush1.msra.mxu0 0.0
    %1981 = vmatprep.subr.mxu0 0.0
    %1982 = vmatpush1.msra.mxu0 0.0
    %1983 = vmatprep.subr.mxu0 0.0
    %1984 = vmatpush1.msra.mxu0 0.0
    %1985 = vmatprep.subr.mxu0 0.0
    %1986 = vmatpush1.msra.mxu0 0.0
    %1987 = vmatprep.subr.mxu0 0.0
    %1988 = vmatpush1.msra.mxu0 0.0
    %1989 = vmatprep.subr.mxu0 0.0
    %1990 = vmatpush1.msra.mxu0 0.0
    %1991 = vmatprep.subr.mxu0 0.0
    %1992 = vmatpush1.msra.mxu0 0.0
    %1993 = vmatprep.subr.mxu0 0.0
    %1994 = vmatpush1.msra.mxu0 0.0
    %1995 = vmatprep.subr.mxu0 0.0
    %1996 = vmatpush1.msra.mxu0 0.0
    %1997 = vmatprep.subr.mxu0 0.0
    %1998 = vmatpush1.msra.mxu0 0.0
    %1999 = vmatprep.subr.mxu0 0.0
    %2000 = vmatpush1.msra.mxu0 0.0
    %2001 = vmatprep.subr.mxu0 0.0
    %2002 = vmatpush1.msra.mxu0 0.0
    %2003 = vmatprep.subr.mxu0 0.0
    %2004 = vmatpush1.msra.mxu0 0.0
    %2005 = vmatprep.subr.mxu0 0.0
    %2006 = vmatpush1.msra.mxu0 0.0
    %2007 = vmatprep.subr.mxu0 0.0
    %2008 = vmatpush1.msra.mxu0 0.0
    %2009 = vmatprep.subr.mxu0 0.0
    %2010 = vmatpush1.msra.mxu0 0.0
    %2011 = vmatprep.subr.mxu0 0.0
    %2012 = vmatpush1.msra.mxu0 0.0
    %2013 = vmatprep.subr.mxu0 0.0
    %2014 = vmatpush1.msra.mxu0 0.0
    %2015 = vmatprep.subr.mxu0 0.0
    %2016 = vmatpush1.msra.mxu0 0.0
    %2017 = vmatprep.subr.mxu0 0.0
    %2018 = vmatpush1.msra.mxu0 0.0
    %2019 = vmatprep.subr.mxu0 0.0
    %2020 = vmatpush1.msra.mxu0 0.0
    %2021 = vmatprep.subr.mxu0 0.0
    %2022 = vmatpush1.msra.mxu0 0.0
    %2023 = vmatprep.subr.mxu0 0.0
    %2024 = vmatpush1.msra.mxu0 0.0
    %2025 = vmatprep.subr.mxu0 0.0
    %2026 = vmatpush1.msra.mxu0 0.0
    %2027 = vmatprep.mubr.f32.mxu0 0.0
    %2028 = vmatmul.mubr.f32.gmra.mrb[0].mxu0 %v1665
    %v2029 = vpop.f32.mrb[0].mxu0
    %v2030 = vadd.f32 0.0, %v2029
    %v2031 = vpop.f32.mrb[0].mxu0
    %2032 = vdwg.mxu0
    %v2033 = vadd.f32 %v1960, %v2030
    %v2034 = vtanh.pop %v2033
    %v2036 = vsel %vm161, %v2034, 0
    %2038 = vmatprep.subr.mxu0 0.0
    %2039 = vmatpush1.msra.mxu0 %v61
    %2040 = vmatprep.subr.mxu0 0.0
    %2041 = vmatpush1.msra.mxu0 %v62
    %2042 = vmatprep.subr.mxu0 0.0
    %2043 = vmatpush1.msra.mxu0 %v63
    %2044 = vmatprep.subr.mxu0 0.0
    %2045 = vmatpush1.msra.mxu0 %v64
    %2046 = vmatprep.subr.mxu0 0.0
    %2047 = vmatpush1.msra.mxu0 0.0
    %2048 = vmatprep.subr.mxu0 0.0
    %2049 = vmatpush1.msra.mxu0 0.0
    %2050 = vmatprep.subr.mxu0 0.0
    %2051 = vmatpush1.msra.mxu0 0.0
    %2052 = vmatprep.subr.mxu0 0.0
    %2053 = vmatpush1.msra.mxu0 0.0
    %2054 = vmatprep.subr.mxu0 0.0
    %2055 = vmatpush1.msra.mxu0 0.0
    %2056 = vmatprep.subr.mxu0 0.0
    %2057 = vmatpush1.msra.mxu0 0.0
    %2058 = vmatprep.subr.mxu0 0.0
    %2059 = vmatpush1.msra.mxu0 0.0
    %2060 = vmatprep.subr.mxu0 0.0
    %2061 = vmatpush1.msra.mxu0 0.0
    %2062 = vmatprep.subr.mxu0 0.0
    %2063 = vmatpush1.msra.mxu0 0.0
    %2064 = vmatprep.subr.mxu0 0.0
    %2065 = vmatpush1.msra.mxu0 0.0
    %2066 = vmatprep.subr.mxu0 0.0
    %2067 = vmatpush1.msra.mxu0 0.0
    %2068 = vmatprep.subr.mxu0 0.0
    %2069 = vmatpush1.msra.mxu0 0.0
    %2070 = vmatprep.subr.mxu0 0.0
    %2071 = vmatpush1.msra.mxu0 0.0
    %2072 = vmatprep.subr.mxu0 0.0
    %2073 = vmatpush1.msra.mxu0 0.0
    %2074 = vmatprep.subr.mxu0 0.0
    %2075 = vmatpush1.msra.mxu0 0.0
    %2076 = vmatprep.subr.mxu0 0.0
    %2077 = vmatpush1.msra.mxu0 0.0
    %2078 = vmatprep.subr.mxu0 0.0
    %2079 = vmatpush1.msra.mxu0 0.0
    %2080 = vmatprep.subr.mxu0 0.0
    %2081 = vmatpush1.msra.mxu0 0.0
    %2082 = vmatprep.subr.mxu0 0.0
    %2083 = vmatpush1.msra.mxu0 0.0
    %2084 = vmatprep.subr.mxu0 0.0
    %2085 = vmatpush1.msra.mxu0 0.0
    %2086 = vmatprep.subr.mxu0 0.0
    %2087 = vmatpush1.msra.mxu0 0.0
    %2088 = vmatprep.subr.mxu0 0.0
    %2089 = vmatpush1.msra.mxu0 0.0
    %2090 = vmatprep.subr.mxu0 0.0
    %2091 = vmatpush1.msra.mxu0 0.0
    %2092 = vmatprep.subr.mxu0 0.0
    %2093 = vmatpush1.msra.mxu0 0.0
    %2094 = vmatprep.subr.mxu0 0.0
    %2095 = vmatpush1.msra.mxu0 0.0
    %2096 = vmatprep.subr.mxu0 0.0
    %2097 = vmatpush1.msra.mxu0 0.0
    %2098 = vmatprep.subr.mxu0 0.0
    %2099 = vmatpush1.msra.mxu0 0.0
    %2100 = vmatprep.subr.mxu0 0.0
    %2101 = vmatpush1.msra.mxu0 0.0
    %2102 = vmatprep.mubr.f32.mxu0 0.0
    %2103 = vmatmul.mubr.f32.gmra.mrb[0].mxu0 %v2036
    %v2104 = vpop.f32.mrb[0].mxu0
    %v2105 = vadd.f32 %v546, %v2104
    %v2106 = vpop.f32.mrb[0].mxu0
    %2107 = vdwg.mxu0
    %2108 = vst.msk [vmem:[%s7 + $0x4] sm:$0x1] %vm621, %v2105
    %2109 = vst.msk [vmem:[%s623 + $0x3] sm:$0x2] %vm624, %v2105
    %v2110 = vld [vmem:[%s0 + $0x6] sm:$0x1]
    %v2111 = vld [vmem:[%s70 + $0x6] sm:$0x1]
    %v2113 = vrot.slane %v2111, 7
    %v2115 = vsel %vm75, %v2110, %v2113
    %v2117 = vsel %vm83, %v2115, 0
    %2119 = vmatprep.subr.mxu0 0.0
    %2120 = vmatpush1.msra.mxu0 %v89
    %2121 = vmatprep.subr.mxu0 0.0
    %2122 = vmatpush1.msra.mxu0 0.0
    %2123 = vmatprep.subr.mxu0 0.0
    %2124 = vmatpush1.msra.mxu0 0.0
    %2125 = vmatprep.subr.mxu0 0.0
    %2126 = vmatpush1.msra.mxu0 0.0
    %2127 = vmatprep.subr.mxu0 0.0
    %2128 = vmatpush1.msra.mxu0 0.0
    %2129 = vmatprep.subr.mxu0 0.0
    %2130 = vmatpush1.msra.mxu0 0.0
    %2131 = vmatprep.subr.mxu0 0.0
    %2132 = vmatpush1.msra.mxu0 0.0
    %2133 = vmatprep.subr.mxu0 0.0
    %2134 = vmatpush1.msra.mxu0 0.0
    %2135 = vmatprep.subr.mxu0 0.0
    %2136 = vmatpush1.msra.mxu0 0.0
    %2137 = vmatprep.subr.mxu0 0.0
    %2138 = vmatpush1.msra.mxu0 0.0
    %2139 = vmatprep.subr.mxu0 0.0
    %2140 = vmatpush1.msra.mxu0 0.0
    %2141 = vmatprep.subr.mxu0 0.0
    %2142 = vmatpush1.msra.mxu0 0.0
    %2143 = vmatprep.subr.mxu0 0.0
    %2144 = vmatpush1.msra.mxu0 0.0
    %2145 = vmatprep.subr.mxu0 0.0
    %2146 = vmatpush1.msra.mxu0 0.0
    %2147 = vmatprep.subr.mxu0 0.0
    %2148 = vmatpush1.msra.mxu0 0.0
    %2149 = vmatprep.subr.mxu0 0.0
    %2150 = vmatpush1.msra.mxu0 0.0
    %2151 = vmatprep.subr.mxu0 0.0
    %2152 = vmatpush1.msra.mxu0 0.0
    %2153 = vmatprep.subr.mxu0 0.0
    %2154 = vmatpush1.msra.mxu0 0.0
    %2155 = vmatprep.subr.mxu0 0.0
    %2156 = vmatpush1.msra.mxu0 0.0
    %2157 = vmatprep.subr.mxu0 0.0
    %2158 = vmatpush1.msra.mxu0 0.0
    %2159 = vmatprep.subr.mxu0 0.0
    %2160 = vmatpush1.msra.mxu0 0.0
    %2161 = vmatprep.subr.mxu0 0.0
    %2162 = vmatpush1.msra.mxu0 0.0
    %2163 = vmatprep.subr.mxu0 0.0
    %2164 = vmatpush1.msra.mxu0 0.0
    %2165 = vmatprep.subr.mxu0 0.0
    %2166 = vmatpush1.msra.mxu0 0.0
    %2167 = vmatprep.subr.mxu0 0.0
    %2168 = vmatpush1.msra.mxu0 0.0
    %2169 = vmatprep.subr.mxu0 0.0
    %2170 = vmatpush1.msra.mxu0 0.0
    %2171 = vmatprep.subr.mxu0 0.0
    %2172 = vmatpush1.msra.mxu0 0.0
    %2173 = vmatprep.subr.mxu0 0.0
    %2174 = vmatpush1.msra.mxu0 0.0
    %2175 = vmatprep.subr.mxu0 0.0
    %2176 = vmatpush1.msra.mxu0 0.0
    %2177 = vmatprep.subr.mxu0 0.0
    %2178 = vmatpush1.msra.mxu0 0.0
    %2179 = vmatprep.subr.mxu0 0.0
    %2180 = vmatpush1.msra.mxu0 0.0
    %2181 = vmatprep.subr.mxu0 0.0
    %2182 = vmatpush1.msra.mxu0 0.0
    %2183 = vmatprep.mubr.f32.mxu0 0.0
    %2184 = vmatmul.mubr.f32.gmra.mrb[0].mxu0 %v2117
    %v2185 = vpop.f32.mrb[0].mxu0
    %v2186 = vadd.f32 %v81, %v2185
    %v2187 = vpop.f32.mrb[0].mxu0
    %2188 = vdwg.mxu0
    %v2190 = vsel %vm161, %v1892, 0
    %2192 = vmatprep.subr.mxu0 0.0
    %2193 = vmatpush1.msra.mxu0 %v49
    %2194 = vmatprep.subr.mxu0 0.0
    %2195 = vmatpush1.msra.mxu0 %v50
    %2196 = vmatprep.subr.mxu0 0.0
    %2197 = vmatpush1.msra.mxu0 %v51
    %2198 = vmatprep.subr.mxu0 0.0
    %2199 = vmatpush1.msra.mxu0 %v52
    %2200 = vmatprep.subr.mxu0 0.0
    %2201 = vmatpush1.msra.mxu0 0.0
    %2202 = vmatprep.subr.mxu0 0.0
    %2203 = vmatpush1.msra.mxu0 0.0
    %2204 = vmatprep.subr.mxu0 0.0
    %2205 = vmatpush1.msra.mxu0 0.0
    %2206 = vmatprep.subr.mxu0 0.0
    %2207 = vmatpush1.msra.mxu0 0.0
    %2208 = vmatprep.subr.mxu0 0.0
    %2209 = vmatpush1.msra.mxu0 0.0
    %2210 = vmatprep.subr.mxu0 0.0
    %2211 = vmatpush1.msra.mxu0 0.0
    %2212 = vmatprep.subr.mxu0 0.0
    %2213 = vmatpush1.msra.mxu0 0.0
    %2214 = vmatprep.subr.mxu0 0.0
    %2215 = vmatpush1.msra.mxu0 0.0
    %2216 = vmatprep.subr.mxu0 0.0
    %2217 = vmatpush1.msra.mxu0 0.0
    %2218 = vmatprep.subr.mxu0 0.0
    %2219 = vmatpush1.msra.mxu0 0.0
    %2220 = vmatprep.subr.mxu0 0.0
    %2221 = vmatpush1.msra.mxu0 0.0
    %2222 = vmatprep.subr.mxu0 0.0
    %2223 = vmatpush1.msra.mxu0 0.0
    %2224 = vmatprep.subr.mxu0 0.0
    %2225 = vmatpush1.msra.mxu0 0.0
    %2226 = vmatprep.subr.mxu0 0.0
    %2227 = vmatpush1.msra.mxu0 0.0
    %2228 = vmatprep.subr.mxu0 0.0
    %2229 = vmatpush1.msra.mxu0 0.0
    %2230 = vmatprep.subr.mxu0 0.0
    %2231 = vmatpush1.msra.mxu0 0.0
    %2232 = vmatprep.subr.mxu0 0.0
    %2233 = vmatpush1.msra.mxu0 0.0
    %2234 = vmatprep.subr.mxu0 0.0
    %2235 = vmatpush1.msra.mxu0 0.0
    %2236 = vmatprep.subr.mxu0 0.0
    %2237 = vmatpush1.msra.mxu0 0.0
    %2238 = vmatprep.subr.mxu0 0.0
    %2239 = vmatpush1.msra.mxu0 0.0
    %2240 = vmatprep.subr.mxu0 0.0
    %2241 = vmatpush1.msra.mxu0 0.0
    %2242 = vmatprep.subr.mxu0 0.0
    %2243 = vmatpush1.msra.mxu0 0.0
    %2244 = vmatprep.subr.mxu0 0.0
    %2245 = vmatpush1.msra.mxu0 0.0
    %2246 = vmatprep.subr.mxu0 0.0
    %2247 = vmatpush1.msra.mxu0 0.0
    %2248 = vmatprep.subr.mxu0 0.0
    %2249 = vmatpush1.msra.mxu0 0.0
    %2250 = vmatprep.subr.mxu0 0.0
    %2251 = vmatpush1.msra.mxu0 0.0
    %2252 = vmatprep.subr.mxu0 0.0
    %2253 = vmatpush1.msra.mxu0 0.0
    %2254 = vmatprep.subr.mxu0 0.0
    %2255 = vmatpush1.msra.mxu0 0.0
    %2256 = vmatprep.mubr.f32.mxu0 0.0
    %2257 = vmatmul.mubr.f32.gmra.mrb[0].mxu0 %v2190
    %v2258 = vpop.f32.mrb[0].mxu0
    %v2259 = vadd.f32 0.0, %v2258
    %v2260 = vpop.f32.mrb[0].mxu0
    %2261 = vdwg.mxu0
    %v2262 = vadd.f32 %v2186, %v2259
    %v2263 = vtanh.pop %v2262
    %2264 = vmatprep.subr.mxu0 0.0
    %2265 = vmatpush1.msra.mxu0 %v45
    %2266 = vmatprep.subr.mxu0 0.0
    %2267 = vmatpush1.msra.mxu0 %v46
    %2268 = vmatprep.subr.mxu0 0.0
    %2269 = vmatpush1.msra.mxu0 %v47
    %2270 = vmatprep.subr.mxu0 0.0
    %2271 = vmatpush1.msra.mxu0 %v48
    %2272 = vmatprep.subr.mxu0 0.0
    %2273 = vmatpush1.msra.mxu0 0.0
    %2274 = vmatprep.subr.mxu0 0.0
    %2275 = vmatpush1.msra.mxu0 0.0
    %2276 = vmatprep.subr.mxu0 0.0
    %2277 = vmatpush1.msra.mxu0 0.0
    %2278 = vmatprep.subr.mxu0 0.0
    %2279 = vmatpush1.msra.mxu0 0.0
    %2280 = vmatprep.subr.mxu0 0.0
    %2281 = vmatpush1.msra.mxu0 0.0
    %2282 = vmatprep.subr.mxu0 0.0
    %2283 = vmatpush1.msra.mxu0 0.0
    %2284 = vmatprep.subr.mxu0 0.0
    %2285 = vmatpush1.msra.mxu0 0.0
    %2286 = vmatprep.subr.mxu0 0.0
    %2287 = vmatpush1.msra.mxu0 0.0
    %2288 = vmatprep.subr.mxu0 0.0
    %2289 = vmatpush1.msra.mxu0 0.0
    %2290 = vmatprep.subr.mxu0 0.0
    %2291 = vmatpush1.msra.mxu0 0.0
    %2292 = vmatprep.subr.mxu0 0.0
    %2293 = vmatpush1.msra.mxu0 0.0
    %2294 = vmatprep.subr.mxu0 0.0
    %2295 = vmatpush1.msra.mxu0 0.0
    %2296 = vmatprep.subr.mxu0 0.0
    %2297 = vmatpush1.msra.mxu0 0.0
    %2298 = vmatprep.subr.mxu0 0.0
    %2299 = vmatpush1.msra.mxu0 0.0
    %2300 = vmatprep.subr.mxu0 0.0
    %2301 = vmatpush1.msra.mxu0 0.0
    %2302 = vmatprep.subr.mxu0 0.0
    %2303 = vmatpush1.msra.mxu0 0.0
    %2304 = vmatprep.subr.mxu0 0.0
    %2305 = vmatpush1.msra.mxu0 0.0
    %2306 = vmatprep.subr.mxu0 0.0
    %2307 = vmatpush1.msra.mxu0 0.0
    %2308 = vmatprep.subr.mxu0 0.0
    %2309 = vmatpush1.msra.mxu0 0.0
    %2310 = vmatprep.subr.mxu0 0.0
    %2311 = vmatpush1.msra.mxu0 0.0
    %2312 = vmatprep.subr.mxu0 0.0
    %2313 = vmatpush1.msra.mxu0 0.0
    %2314 = vmatprep.subr.mxu0 0.0
    %2315 = vmatpush1.msra.mxu0 0.0
    %2316 = vmatprep.subr.mxu0 0.0
    %2317 = vmatpush1.msra.mxu0 0.0
    %2318 = vmatprep.subr.mxu0 0.0
    %2319 = vmatpush1.msra.mxu0 0.0
    %2320 = vmatprep.subr.mxu0 0.0
    %2321 = vmatpush1.msra.mxu0 0.0
    %2322 = vmatprep.subr.mxu0 0.0
    %2323 = vmatpush1.msra.mxu0 0.0
    %2324 = vmatprep.subr.mxu0 0.0
    %2325 = vmatpush1.msra.mxu0 0.0
    %2326 = vmatprep.subr.mxu0 0.0
    %2327 = vmatpush1.msra.mxu0 0.0
    %2328 = vmatprep.mubr.f32.mxu0 0.0
    %2329 = vmatmul.mubr.f32.gmra.mrb[0].mxu0 %v2190
    %v2330 = vpop.f32.mrb[0].mxu0
    %v2331 = vadd.f32 %v395, %v2330
    %v2332 = vpop.f32.mrb[0].mxu0
    %2333 = vdwg.mxu0
    %2334 = vmatprep.subr.mxu0 0.0
    %2335 = vmatpush1.msra.mxu0 %v54
    %2336 = vmatprep.subr.mxu0 0.0
    %2337 = vmatpush1.msra.mxu0 %v55
    %2338 = vmatprep.subr.mxu0 0.0
    %2339 = vmatpush1.msra.mxu0 %v56
    %2340 = vmatprep.subr.mxu0 0.0
    %2341 = vmatpush1.msra.mxu0 %v57
    %2342 = vmatprep.subr.mxu0 0.0
    %2343 = vmatpush1.msra.mxu0 0.0
    %2344 = vmatprep.subr.mxu0 0.0
    %2345 = vmatpush1.msra.mxu0 0.0
    %2346 = vmatprep.subr.mxu0 0.0
    %2347 = vmatpush1.msra.mxu0 0.0
    %2348 = vmatprep.subr.mxu0 0.0
    %2349 = vmatpush1.msra.mxu0 0.0
    %2350 = vmatprep.subr.mxu0 0.0
    %2351 = vmatpush1.msra.mxu0 0.0
    %2352 = vmatprep.subr.mxu0 0.0
    %2353 = vmatpush1.msra.mxu0 0.0
    %2354 = vmatprep.subr.mxu0 0.0
    %2355 = vmatpush1.msra.mxu0 0.0
    %2356 = vmatprep.subr.mxu0 0.0
    %2357 = vmatpush1.msra.mxu0 0.0
    %2358 = vmatprep.subr.mxu0 0.0
    %2359 = vmatpush1.msra.mxu0 0.0
    %2360 = vmatprep.subr.mxu0 0.0
    %2361 = vmatpush1.msra.mxu0 0.0
    %2362 = vmatprep.subr.mxu0 0.0
    %2363 = vmatpush1.msra.mxu0 0.0
    %2364 = vmatprep.subr.mxu0 0.0
    %2365 = vmatpush1.msra.mxu0 0.0
    %2366 = vmatprep.subr.mxu0 0.0
    %2367 = vmatpush1.msra.mxu0 0.0
    %2368 = vmatprep.subr.mxu0 0.0
    %2369 = vmatpush1.msra.mxu0 0.0
    %2370 = vmatprep.subr.mxu0 0.0
    %2371 = vmatpush1.msra.mxu0 0.0
    %2372 = vmatprep.subr.mxu0 0.0
    %2373 = vmatpush1.msra.mxu0 0.0
    %2374 = vmatprep.subr.mxu0 0.0
    %2375 = vmatpush1.msra.mxu0 0.0
    %2376 = vmatprep.subr.mxu0 0.0
    %2377 = vmatpush1.msra.mxu0 0.0
    %2378 = vmatprep.subr.mxu0 0.0
    %2379 = vmatpush1.msra.mxu0 0.0
    %2380 = vmatprep.subr.mxu0 0.0
    %2381 = vmatpush1.msra.mxu0 0.0
    %2382 = vmatprep.subr.mxu0 0.0
    %2383 = vmatpush1.msra.mxu0 0.0
    %2384 = vmatprep.subr.mxu0 0.0
    %2385 = vmatpush1.msra.mxu0 0.0
    %2386 = vmatprep.subr.mxu0 0.0
    %2387 = vmatpush1.msra.mxu0 0.0
    %2388 = vmatprep.subr.mxu0 0.0
    %2389 = vmatpush1.msra.mxu0 0.0
    %2390 = vmatprep.subr.mxu0 0.0
    %2391 = vmatpush1.msra.mxu0 0.0
    %2392 = vmatprep.subr.mxu0 0.0
    %2393 = vmatpush1.msra.mxu0 0.0
    %2394 = vmatprep.subr.mxu0 0.0
    %2395 = vmatpush1.msra.mxu0 0.0
    %2396 = vmatprep.subr.mxu0 0.0
    %2397 = vmatpush1.msra.mxu0 0.0
    %2398 = vmatprep.mubr.f32.mxu0 0.0
    %2399 = vmatmul.mubr.f32.gmra.mrb[0].mxu0 %v2036
    %v2400 = vpop.f32.mrb[0].mxu0
    %v2401 = vadd.f32 0.0, %v2400
    %v2402 = vpop.f32.mrb[0].mxu0
    %2403 = vdwg.mxu0
    %v2404 = vadd.f32 %v2331, %v2401
    %v2405 = vtanh.pop %v2404
    %v2407 = vsel %vm161, %v2405, 0
    %2409 = vmatprep.subr.mxu0 0.0
    %2410 = vmatpush1.msra.mxu0 %v61
    %2411 = vmatprep.subr.mxu0 0.0
    %2412 = vmatpush1.msra.mxu0 %v62
    %2413 = vmatprep.subr.mxu0 0.0
    %2414 = vmatpush1.msra.mxu0 %v63
    %2415 = vmatprep.subr.mxu0 0.0
    %2416 = vmatpush1.msra.mxu0 %v64
    %2417 = vmatprep.subr.mxu0 0.0
    %2418 = vmatpush1.msra.mxu0 0.0
    %2419 = vmatprep.subr.mxu0 0.0
    %2420 = vmatpush1.msra.mxu0 0.0
    %2421 = vmatprep.subr.mxu0 0.0
    %2422 = vmatpush1.msra.mxu0 0.0
    %2423 = vmatprep.subr.mxu0 0.0
    %2424 = vmatpush1.msra.mxu0 0.0
    %2425 = vmatprep.subr.mxu0 0.0
    %2426 = vmatpush1.msra.mxu0 0.0
    %2427 = vmatprep.subr.mxu0 0.0
    %2428 = vmatpush1.msra.mxu0 0.0
    %2429 = vmatprep.subr.mxu0 0.0
    %2430 = vmatpush1.msra.mxu0 0.0
    %2431 = vmatprep.subr.mxu0 0.0
    %2432 = vmatpush1.msra.mxu0 0.0
    %2433 = vmatprep.subr.mxu0 0.0
    %2434 = vmatpush1.msra.mxu0 0.0
    %2435 = vmatprep.subr.mxu0 0.0
    %2436 = vmatpush1.msra.mxu0 0.0
    %2437 = vmatprep.subr.mxu0 0.0
    %2438 = vmatpush1.msra.mxu0 0.0
    %2439 = vmatprep.subr.mxu0 0.0
    %2440 = vmatpush1.msra.mxu0 0.0
    %2441 = vmatprep.subr.mxu0 0.0
    %2442 = vmatpush1.msra.mxu0 0.0
    %2443 = vmatprep.subr.mxu0 0.0
    %2444 = vmatpush1.msra.mxu0 0.0
    %2445 = vmatprep.subr.mxu0 0.0
    %2446 = vmatpush1.msra.mxu0 0.0
    %2447 = vmatprep.subr.mxu0 0.0
    %2448 = vmatpush1.msra.mxu0 0.0
    %2449 = vmatprep.subr.mxu0 0.0
    %2450 = vmatpush1.msra.mxu0 0.0
    %2451 = vmatprep.subr.mxu0 0.0
    %2452 = vmatpush1.msra.mxu0 0.0
    %2453 = vmatprep.subr.mxu0 0.0
    %2454 = vmatpush1.msra.mxu0 0.0
    %2455 = vmatprep.subr.mxu0 0.0
    %2456 = vmatpush1.msra.mxu0 0.0
    %2457 = vmatprep.subr.mxu0 0.0
    %2458 = vmatpush1.msra.mxu0 0.0
    %2459 = vmatprep.subr.mxu0 0.0
    %2460 = vmatpush1.msra.mxu0 0.0
    %2461 = vmatprep.subr.mxu0 0.0
    %2462 = vmatpush1.msra.mxu0 0.0
    %2463 = vmatprep.subr.mxu0 0.0
    %2464 = vmatpush1.msra.mxu0 0.0
    %2465 = vmatprep.subr.mxu0 0.0
    %2466 = vmatpush1.msra.mxu0 0.0
    %2467 = vmatprep.subr.mxu0 0.0
    %2468 = vmatpush1.msra.mxu0 0.0
    %2469 = vmatprep.subr.mxu0 0.0
    %2470 = vmatpush1.msra.mxu0 0.0
    %2471 = vmatprep.subr.mxu0 0.0
    %2472 = vmatpush1.msra.mxu0 0.0
    %2473 = vmatprep.mubr.f32.mxu0 0.0
    %2474 = vmatmul.mubr.f32.gmra.mrb[0].mxu0 %v2407
    %v2475 = vpop.f32.mrb[0].mxu0
    %v2476 = vadd.f32 %v546, %v2475
    %v2477 = vpop.f32.mrb[0].mxu0
    %2478 = vdwg.mxu0
    %2479 = vst.msk [vmem:[%s7 + $0x5] sm:$0x1] %vm621, %v2476
    %2480 = vst.msk [vmem:[%s623 + $0x4] sm:$0x2] %vm624, %v2476
    %v2481 = vld [vmem:[%s0 + $0x7] sm:$0x1]
    %v2482 = vld [vmem:[%s70 + $0x7] sm:$0x1]
    %v2484 = vrot.slane %v2482, 7
    %v2486 = vsel %vm75, %v2481, %v2484
    %v2488 = vsel %vm83, %v2486, 0
    %2490 = vmatprep.subr.mxu0 0.0
    %2491 = vmatpush1.msra.mxu0 %v89
    %2492 = vmatprep.subr.mxu0 0.0
    %2493 = vmatpush1.msra.mxu0 0.0
    %2494 = vmatprep.subr.mxu0 0.0
    %2495 = vmatpush1.msra.mxu0 0.0
    %2496 = vmatprep.subr.mxu0 0.0
    %2497 = vmatpush1.msra.mxu0 0.0
    %2498 = vmatprep.subr.mxu0 0.0
    %2499 = vmatpush1.msra.mxu0 0.0
    %2500 = vmatprep.subr.mxu0 0.0
    %2501 = vmatpush1.msra.mxu0 0.0
    %2502 = vmatprep.subr.mxu0 0.0
    %2503 = vmatpush1.msra.mxu0 0.0
    %2504 = vmatprep.subr.mxu0 0.0
    %2505 = vmatpush1.msra.mxu0 0.0
    %2506 = vmatprep.subr.mxu0 0.0
    %2507 = vmatpush1.msra.mxu0 0.0
    %2508 = vmatprep.subr.mxu0 0.0
    %2509 = vmatpush1.msra.mxu0 0.0
    %2510 = vmatprep.subr.mxu0 0.0
    %2511 = vmatpush1.msra.mxu0 0.0
    %2512 = vmatprep.subr.mxu0 0.0
    %2513 = vmatpush1.msra.mxu0 0.0
    %2514 = vmatprep.subr.mxu0 0.0
    %2515 = vmatpush1.msra.mxu0 0.0
    %2516 = vmatprep.subr.mxu0 0.0
    %2517 = vmatpush1.msra.mxu0 0.0
    %2518 = vmatprep.subr.mxu0 0.0
    %2519 = vmatpush1.msra.mxu0 0.0
    %2520 = vmatprep.subr.mxu0 0.0
    %2521 = vmatpush1.msra.mxu0 0.0
    %2522 = vmatprep.subr.mxu0 0.0
    %2523 = vmatpush1.msra.mxu0 0.0
    %2524 = vmatprep.subr.mxu0 0.0
    %2525 = vmatpush1.msra.mxu0 0.0
    %2526 = vmatprep.subr.mxu0 0.0
    %2527 = vmatpush1.msra.mxu0 0.0
    %2528 = vmatprep.subr.mxu0 0.0
    %2529 = vmatpush1.msra.mxu0 0.0
    %2530 = vmatprep.subr.mxu0 0.0
    %2531 = vmatpush1.msra.mxu0 0.0
    %2532 = vmatprep.subr.mxu0 0.0
    %2533 = vmatpush1.msra.mxu0 0.0
    %2534 = vmatprep.subr.mxu0 0.0
    %2535 = vmatpush1.msra.mxu0 0.0
    %2536 = vmatprep.subr.mxu0 0.0
    %2537 = vmatpush1.msra.mxu0 0.0
    %2538 = vmatprep.subr.mxu0 0.0
    %2539 = vmatpush1.msra.mxu0 0.0
    %2540 = vmatprep.subr.mxu0 0.0
    %2541 = vmatpush1.msra.mxu0 0.0
    %2542 = vmatprep.subr.mxu0 0.0
    %2543 = vmatpush1.msra.mxu0 0.0
    %2544 = vmatprep.subr.mxu0 0.0
    %2545 = vmatpush1.msra.mxu0 0.0
    %2546 = vmatprep.subr.mxu0 0.0
    %2547 = vmatpush1.msra.mxu0 0.0
    %2548 = vmatprep.subr.mxu0 0.0
    %2549 = vmatpush1.msra.mxu0 0.0
    %2550 = vmatprep.subr.mxu0 0.0
    %2551 = vmatpush1.msra.mxu0 0.0
    %2552 = vmatprep.subr.mxu0 0.0
    %2553 = vmatpush1.msra.mxu0 0.0
    %2554 = vmatprep.mubr.f32.mxu0 0.0
    %2555 = vmatmul.mubr.f32.gmra.mrb[0].mxu0 %v2488
    %v2556 = vpop.f32.mrb[0].mxu0
    %v2557 = vadd.f32 %v81, %v2556
    %v2558 = vpop.f32.mrb[0].mxu0
    %2559 = vdwg.mxu0
    %v2561 = vsel %vm161, %v2263, 0
    %2563 = vmatprep.subr.mxu0 0.0
    %2564 = vmatpush1.msra.mxu0 %v49
    %2565 = vmatprep.subr.mxu0 0.0
    %2566 = vmatpush1.msra.mxu0 %v50
    %2567 = vmatprep.subr.mxu0 0.0
    %2568 = vmatpush1.msra.mxu0 %v51
    %2569 = vmatprep.subr.mxu0 0.0
    %2570 = vmatpush1.msra.mxu0 %v52
    %2571 = vmatprep.subr.mxu0 0.0
    %2572 = vmatpush1.msra.mxu0 0.0
    %2573 = vmatprep.subr.mxu0 0.0
    %2574 = vmatpush1.msra.mxu0 0.0
    %2575 = vmatprep.subr.mxu0 0.0
    %2576 = vmatpush1.msra.mxu0 0.0
    %2577 = vmatprep.subr.mxu0 0.0
    %2578 = vmatpush1.msra.mxu0 0.0
    %2579 = vmatprep.subr.mxu0 0.0
    %2580 = vmatpush1.msra.mxu0 0.0
    %2581 = vmatprep.subr.mxu0 0.0
    %2582 = vmatpush1.msra.mxu0 0.0
    %2583 = vmatprep.subr.mxu0 0.0
    %2584 = vmatpush1.msra.mxu0 0.0
    %2585 = vmatprep.subr.mxu0 0.0
    %2586 = vmatpush1.msra.mxu0 0.0
    %2587 = vmatprep.subr.mxu0 0.0
    %2588 = vmatpush1.msra.mxu0 0.0
    %2589 = vmatprep.subr.mxu0 0.0
    %2590 = vmatpush1.msra.mxu0 0.0
    %2591 = vmatprep.subr.mxu0 0.0
    %2592 = vmatpush1.msra.mxu0 0.0
    %2593 = vmatprep.subr.mxu0 0.0
    %2594 = vmatpush1.msra.mxu0 0.0
    %2595 = vmatprep.subr.mxu0 0.0
    %2596 = vmatpush1.msra.mxu0 0.0
    %2597 = vmatprep.subr.mxu0 0.0
    %2598 = vmatpush1.msra.mxu0 0.0
    %2599 = vmatprep.subr.mxu0 0.0
    %2600 = vmatpush1.msra.mxu0 0.0
    %2601 = vmatprep.subr.mxu0 0.0
    %2602 = vmatpush1.msra.mxu0 0.0
    %2603 = vmatprep.subr.mxu0 0.0
    %2604 = vmatpush1.msra.mxu0 0.0
    %2605 = vmatprep.subr.mxu0 0.0
    %2606 = vmatpush1.msra.mxu0 0.0
    %2607 = vmatprep.subr.mxu0 0.0
    %2608 = vmatpush1.msra.mxu0 0.0
    %2609 = vmatprep.subr.mxu0 0.0
    %2610 = vmatpush1.msra.mxu0 0.0
    %2611 = vmatprep.subr.mxu0 0.0
    %2612 = vmatpush1.msra.mxu0 0.0
    %2613 = vmatprep.subr.mxu0 0.0
    %2614 = vmatpush1.msra.mxu0 0.0
    %2615 = vmatprep.subr.mxu0 0.0
    %2616 = vmatpush1.msra.mxu0 0.0
    %2617 = vmatprep.subr.mxu0 0.0
    %2618 = vmatpush1.msra.mxu0 0.0
    %2619 = vmatprep.subr.mxu0 0.0
    %2620 = vmatpush1.msra.mxu0 0.0
    %2621 = vmatprep.subr.mxu0 0.0
    %2622 = vmatpush1.msra.mxu0 0.0
    %2623 = vmatprep.subr.mxu0 0.0
    %2624 = vmatpush1.msra.mxu0 0.0
    %2625 = vmatprep.subr.mxu0 0.0
    %2626 = vmatpush1.msra.mxu0 0.0
    %2627 = vmatprep.mubr.f32.mxu0 0.0
    %2628 = vmatmul.mubr.f32.gmra.mrb[0].mxu0 %v2561
    %v2629 = vpop.f32.mrb[0].mxu0
    %v2630 = vadd.f32 0.0, %v2629
    %v2631 = vpop.f32.mrb[0].mxu0
    %2632 = vdwg.mxu0
    %v2633 = vadd.f32 %v2557, %v2630
    %v2634 = vtanh.pop %v2633
    %2635 = vmatprep.subr.mxu0 0.0
    %2636 = vmatpush1.msra.mxu0 %v45
    %2637 = vmatprep.subr.mxu0 0.0
    %2638 = vmatpush1.msra.mxu0 %v46
    %2639 = vmatprep.subr.mxu0 0.0
    %2640 = vmatpush1.msra.mxu0 %v47
    %2641 = vmatprep.subr.mxu0 0.0
    %2642 = vmatpush1.msra.mxu0 %v48
    %2643 = vmatprep.subr.mxu0 0.0
    %2644 = vmatpush1.msra.mxu0 0.0
    %2645 = vmatprep.subr.mxu0 0.0
    %2646 = vmatpush1.msra.mxu0 0.0
    %2647 = vmatprep.subr.mxu0 0.0
    %2648 = vmatpush1.msra.mxu0 0.0
    %2649 = vmatprep.subr.mxu0 0.0
    %2650 = vmatpush1.msra.mxu0 0.0
    %2651 = vmatprep.subr.mxu0 0.0
    %2652 = vmatpush1.msra.mxu0 0.0
    %2653 = vmatprep.subr.mxu0 0.0
    %2654 = vmatpush1.msra.mxu0 0.0
    %2655 = vmatprep.subr.mxu0 0.0
    %2656 = vmatpush1.msra.mxu0 0.0
    %2657 = vmatprep.subr.mxu0 0.0
    %2658 = vmatpush1.msra.mxu0 0.0
    %2659 = vmatprep.subr.mxu0 0.0
    %2660 = vmatpush1.msra.mxu0 0.0
    %2661 = vmatprep.subr.mxu0 0.0
    %2662 = vmatpush1.msra.mxu0 0.0
    %2663 = vmatprep.subr.mxu0 0.0
    %2664 = vmatpush1.msra.mxu0 0.0
    %2665 = vmatprep.subr.mxu0 0.0
    %2666 = vmatpush1.msra.mxu0 0.0
    %2667 = vmatprep.subr.mxu0 0.0
    %2668 = vmatpush1.msra.mxu0 0.0
    %2669 = vmatprep.subr.mxu0 0.0
    %2670 = vmatpush1.msra.mxu0 0.0
    %2671 = vmatprep.subr.mxu0 0.0
    %2672 = vmatpush1.msra.mxu0 0.0
    %2673 = vmatprep.subr.mxu0 0.0
    %2674 = vmatpush1.msra.mxu0 0.0
    %2675 = vmatprep.subr.mxu0 0.0
    %2676 = vmatpush1.msra.mxu0 0.0
    %2677 = vmatprep.subr.mxu0 0.0
    %2678 = vmatpush1.msra.mxu0 0.0
    %2679 = vmatprep.subr.mxu0 0.0
    %2680 = vmatpush1.msra.mxu0 0.0
    %2681 = vmatprep.subr.mxu0 0.0
    %2682 = vmatpush1.msra.mxu0 0.0
    %2683 = vmatprep.subr.mxu0 0.0
    %2684 = vmatpush1.msra.mxu0 0.0
    %2685 = vmatprep.subr.mxu0 0.0
    %2686 = vmatpush1.msra.mxu0 0.0
    %2687 = vmatprep.subr.mxu0 0.0
    %2688 = vmatpush1.msra.mxu0 0.0
    %2689 = vmatprep.subr.mxu0 0.0
    %2690 = vmatpush1.msra.mxu0 0.0
    %2691 = vmatprep.subr.mxu0 0.0
    %2692 = vmatpush1.msra.mxu0 0.0
    %2693 = vmatprep.subr.mxu0 0.0
    %2694 = vmatpush1.msra.mxu0 0.0
    %2695 = vmatprep.subr.mxu0 0.0
    %2696 = vmatpush1.msra.mxu0 0.0
    %2697 = vmatprep.subr.mxu0 0.0
    %2698 = vmatpush1.msra.mxu0 0.0
    %2699 = vmatprep.mubr.f32.mxu0 0.0
    %2700 = vmatmul.mubr.f32.gmra.mrb[0].mxu0 %v2561
    %v2701 = vpop.f32.mrb[0].mxu0
    %v2702 = vadd.f32 %v395, %v2701
    %v2703 = vpop.f32.mrb[0].mxu0
    %2704 = vdwg.mxu0
    %2705 = vmatprep.subr.mxu0 0.0
    %2706 = vmatpush1.msra.mxu0 %v54
    %2707 = vmatprep.subr.mxu0 0.0
    %2708 = vmatpush1.msra.mxu0 %v55
    %2709 = vmatprep.subr.mxu0 0.0
    %2710 = vmatpush1.msra.mxu0 %v56
    %2711 = vmatprep.subr.mxu0 0.0
    %2712 = vmatpush1.msra.mxu0 %v57
    %2713 = vmatprep.subr.mxu0 0.0
    %2714 = vmatpush1.msra.mxu0 0.0
    %2715 = vmatprep.subr.mxu0 0.0
    %2716 = vmatpush1.msra.mxu0 0.0
    %2717 = vmatprep.subr.mxu0 0.0
    %2718 = vmatpush1.msra.mxu0 0.0
    %2719 = vmatprep.subr.mxu0 0.0
    %2720 = vmatpush1.msra.mxu0 0.0
    %2721 = vmatprep.subr.mxu0 0.0
    %2722 = vmatpush1.msra.mxu0 0.0
    %2723 = vmatprep.subr.mxu0 0.0
    %2724 = vmatpush1.msra.mxu0 0.0
    %2725 = vmatprep.subr.mxu0 0.0
    %2726 = vmatpush1.msra.mxu0 0.0
    %2727 = vmatprep.subr.mxu0 0.0
    %2728 = vmatpush1.msra.mxu0 0.0
    %2729 = vmatprep.subr.mxu0 0.0
    %2730 = vmatpush1.msra.mxu0 0.0
    %2731 = vmatprep.subr.mxu0 0.0
    %2732 = vmatpush1.msra.mxu0 0.0
    %2733 = vmatprep.subr.mxu0 0.0
    %2734 = vmatpush1.msra.mxu0 0.0
    %2735 = vmatprep.subr.mxu0 0.0
    %2736 = vmatpush1.msra.mxu0 0.0
    %2737 = vmatprep.subr.mxu0 0.0
    %2738 = vmatpush1.msra.mxu0 0.0
    %2739 = vmatprep.subr.mxu0 0.0
    %2740 = vmatpush1.msra.mxu0 0.0
    %2741 = vmatprep.subr.mxu0 0.0
    %2742 = vmatpush1.msra.mxu0 0.0
    %2743 = vmatprep.subr.mxu0 0.0
    %2744 = vmatpush1.msra.mxu0 0.0
    %2745 = vmatprep.subr.mxu0 0.0
    %2746 = vmatpush1.msra.mxu0 0.0
    %2747 = vmatprep.subr.mxu0 0.0
    %2748 = vmatpush1.msra.mxu0 0.0
    %2749 = vmatprep.subr.mxu0 0.0
    %2750 = vmatpush1.msra.mxu0 0.0
    %2751 = vmatprep.subr.mxu0 0.0
    %2752 = vmatpush1.msra.mxu0 0.0
    %2753 = vmatprep.subr.mxu0 0.0
    %2754 = vmatpush1.msra.mxu0 0.0
    %2755 = vmatprep.subr.mxu0 0.0
    %2756 = vmatpush1.msra.mxu0 0.0
    %2757 = vmatprep.subr.mxu0 0.0
    %2758 = vmatpush1.msra.mxu0 0.0
    %2759 = vmatprep.subr.mxu0 0.0
    %2760 = vmatpush1.msra.mxu0 0.0
    %2761 = vmatprep.subr.mxu0 0.0
    %2762 = vmatpush1.msra.mxu0 0.0
    %2763 = vmatprep.subr.mxu0 0.0
    %2764 = vmatpush1.msra.mxu0 0.0
    %2765 = vmatprep.subr.mxu0 0.0
    %2766 = vmatpush1.msra.mxu0 0.0
    %2767 = vmatprep.subr.mxu0 0.0
    %2768 = vmatpush1.msra.mxu0 0.0
    %2769 = vmatprep.mubr.f32.mxu0 0.0
    %2770 = vmatmul.mubr.f32.gmra.mrb[0].mxu0 %v2407
    %v2771 = vpop.f32.mrb[0].mxu0
    %v2772 = vadd.f32 0.0, %v2771
    %v2773 = vpop.f32.mrb[0].mxu0
    %2774 = vdwg.mxu0
    %v2775 = vadd.f32 %v2702, %v2772
    %v2776 = vtanh.pop %v2775
    %v2778 = vsel %vm161, %v2776, 0
    %2780 = vmatprep.subr.mxu0 0.0
    %2781 = vmatpush1.msra.mxu0 %v61
    %2782 = vmatprep.subr.mxu0 0.0
    %2783 = vmatpush1.msra.mxu0 %v62
    %2784 = vmatprep.subr.mxu0 0.0
    %2785 = vmatpush1.msra.mxu0 %v63
    %2786 = vmatprep.subr.mxu0 0.0
    %2787 = vmatpush1.msra.mxu0 %v64
    %2788 = vmatprep.subr.mxu0 0.0
    %2789 = vmatpush1.msra.mxu0 0.0
    %2790 = vmatprep.subr.mxu0 0.0
    %2791 = vmatpush1.msra.mxu0 0.0
    %2792 = vmatprep.subr.mxu0 0.0
    %2793 = vmatpush1.msra.mxu0 0.0
    %2794 = vmatprep.subr.mxu0 0.0
    %2795 = vmatpush1.msra.mxu0 0.0
    %2796 = vmatprep.subr.mxu0 0.0
    %2797 = vmatpush1.msra.mxu0 0.0
    %2798 = vmatprep.subr.mxu0 0.0
    %2799 = vmatpush1.msra.mxu0 0.0
    %2800 = vmatprep.subr.mxu0 0.0
    %2801 = vmatpush1.msra.mxu0 0.0
    %2802 = vmatprep.subr.mxu0 0.0
    %2803 = vmatpush1.msra.mxu0 0.0
    %2804 = vmatprep.subr.mxu0 0.0
    %2805 = vmatpush1.msra.mxu0 0.0
    %2806 = vmatprep.subr.mxu0 0.0
    %2807 = vmatpush1.msra.mxu0 0.0
    %2808 = vmatprep.subr.mxu0 0.0
    %2809 = vmatpush1.msra.mxu0 0.0
    %2810 = vmatprep.subr.mxu0 0.0
    %2811 = vmatpush1.msra.mxu0 0.0
    %2812 = vmatprep.subr.mxu0 0.0
    %2813 = vmatpush1.msra.mxu0 0.0
    %2814 = vmatprep.subr.mxu0 0.0
    %2815 = vmatpush1.msra.mxu0 0.0
    %2816 = vmatprep.subr.mxu0 0.0
    %2817 = vmatpush1.msra.mxu0 0.0
    %2818 = vmatprep.subr.mxu0 0.0
    %2819 = vmatpush1.msra.mxu0 0.0
    %2820 = vmatprep.subr.mxu0 0.0
    %2821 = vmatpush1.msra.mxu0 0.0
    %2822 = vmatprep.subr.mxu0 0.0
    %2823 = vmatpush1.msra.mxu0 0.0
    %2824 = vmatprep.subr.mxu0 0.0
    %2825 = vmatpush1.msra.mxu0 0.0
    %2826 = vmatprep.subr.mxu0 0.0
    %2827 = vmatpush1.msra.mxu0 0.0
    %2828 = vmatprep.subr.mxu0 0.0
    %2829 = vmatpush1.msra.mxu0 0.0
    %2830 = vmatprep.subr.mxu0 0.0
    %2831 = vmatpush1.msra.mxu0 0.0
    %2832 = vmatprep.subr.mxu0 0.0
    %2833 = vmatpush1.msra.mxu0 0.0
    %2834 = vmatprep.subr.mxu0 0.0
    %2835 = vmatpush1.msra.mxu0 0.0
    %2836 = vmatprep.subr.mxu0 0.0
    %2837 = vmatpush1.msra.mxu0 0.0
    %2838 = vmatprep.subr.mxu0 0.0
    %2839 = vmatpush1.msra.mxu0 0.0
    %2840 = vmatprep.subr.mxu0 0.0
    %2841 = vmatpush1.msra.mxu0 0.0
    %2842 = vmatprep.subr.mxu0 0.0
    %2843 = vmatpush1.msra.mxu0 0.0
    %2844 = vmatprep.mubr.f32.mxu0 0.0
    %2845 = vmatmul.mubr.f32.gmra.mrb[0].mxu0 %v2778
    %v2846 = vpop.f32.mrb[0].mxu0
    %v2847 = vadd.f32 %v546, %v2846
    %v2848 = vpop.f32.mrb[0].mxu0
    %2849 = vdwg.mxu0
    %2850 = vst.msk [vmem:[%s7 + $0x6] sm:$0x1] %vm621, %v2847
    %2851 = vst.msk [vmem:[%s623 + $0x5] sm:$0x2] %vm624, %v2847
    %v2853 = vsel %vm161, %v2634, 0
    %2855 = vmatprep.subr.mxu0 0.0
    %2856 = vmatpush1.msra.mxu0 %v45
    %2857 = vmatprep.subr.mxu0 0.0
    %2858 = vmatpush1.msra.mxu0 %v46
    %2859 = vmatprep.subr.mxu0 0.0
    %2860 = vmatpush1.msra.mxu0 %v47
    %2861 = vmatprep.subr.mxu0 0.0
    %2862 = vmatpush1.msra.mxu0 %v48
    %2863 = vmatprep.subr.mxu0 0.0
    %2864 = vmatpush1.msra.mxu0 0.0
    %2865 = vmatprep.subr.mxu0 0.0
    %2866 = vmatpush1.msra.mxu0 0.0
    %2867 = vmatprep.subr.mxu0 0.0
    %2868 = vmatpush1.msra.mxu0 0.0
    %2869 = vmatprep.subr.mxu0 0.0
    %2870 = vmatpush1.msra.mxu0 0.0
    %2871 = vmatprep.subr.mxu0 0.0
    %2872 = vmatpush1.msra.mxu0 0.0
    %2873 = vmatprep.subr.mxu0 0.0
    %2874 = vmatpush1.msra.mxu0 0.0
    %2875 = vmatprep.subr.mxu0 0.0
    %2876 = vmatpush1.msra.mxu0 0.0
    %2877 = vmatprep.subr.mxu0 0.0
    %2878 = vmatpush1.msra.mxu0 0.0
    %2879 = vmatprep.subr.mxu0 0.0
    %2880 = vmatpush1.msra.mxu0 0.0
    %2881 = vmatprep.subr.mxu0 0.0
    %2882 = vmatpush1.msra.mxu0 0.0
    %2883 = vmatprep.subr.mxu0 0.0
    %2884 = vmatpush1.msra.mxu0 0.0
    %2885 = vmatprep.subr.mxu0 0.0
    %2886 = vmatpush1.msra.mxu0 0.0
    %2887 = vmatprep.subr.mxu0 0.0
    %2888 = vmatpush1.msra.mxu0 0.0
    %2889 = vmatprep.subr.mxu0 0.0
    %2890 = vmatpush1.msra.mxu0 0.0
    %2891 = vmatprep.subr.mxu0 0.0
    %2892 = vmatpush1.msra.mxu0 0.0
    %2893 = vmatprep.subr.mxu0 0.0
    %2894 = vmatpush1.msra.mxu0 0.0
    %2895 = vmatprep.subr.mxu0 0.0
    %2896 = vmatpush1.msra.mxu0 0.0
    %2897 = vmatprep.subr.mxu0 0.0
    %2898 = vmatpush1.msra.mxu0 0.0
    %2899 = vmatprep.subr.mxu0 0.0
    %2900 = vmatpush1.msra.mxu0 0.0
    %2901 = vmatprep.subr.mxu0 0.0
    %2902 = vmatpush1.msra.mxu0 0.0
    %2903 = vmatprep.subr.mxu0 0.0
    %2904 = vmatpush1.msra.mxu0 0.0
    %2905 = vmatprep.subr.mxu0 0.0
    %2906 = vmatpush1.msra.mxu0 0.0
    %2907 = vmatprep.subr.mxu0 0.0
    %2908 = vmatpush1.msra.mxu0 0.0
    %2909 = vmatprep.subr.mxu0 0.0
    %2910 = vmatpush1.msra.mxu0 0.0
    %2911 = vmatprep.subr.mxu0 0.0
    %2912 = vmatpush1.msra.mxu0 0.0
    %2913 = vmatprep.subr.mxu0 0.0
    %2914 = vmatpush1.msra.mxu0 0.0
    %2915 = vmatprep.subr.mxu0 0.0
    %2916 = vmatpush1.msra.mxu0 0.0
    %2917 = vmatprep.subr.mxu0 0.0
    %2918 = vmatpush1.msra.mxu0 0.0
    %2919 = vmatprep.mubr.f32.mxu0 0.0
    %2920 = vmatmul.mubr.f32.gmra.mrb[0].mxu0 %v2853
    %v2921 = vpop.f32.mrb[0].mxu0
    %v2922 = vadd.f32 %v395, %v2921
    %v2923 = vpop.f32.mrb[0].mxu0
    %2924 = vdwg.mxu0
    %2925 = vmatprep.subr.mxu0 0.0
    %2926 = vmatpush1.msra.mxu0 %v54
    %2927 = vmatprep.subr.mxu0 0.0
    %2928 = vmatpush1.msra.mxu0 %v55
    %2929 = vmatprep.subr.mxu0 0.0
    %2930 = vmatpush1.msra.mxu0 %v56
    %2931 = vmatprep.subr.mxu0 0.0
    %2932 = vmatpush1.msra.mxu0 %v57
    %2933 = vmatprep.subr.mxu0 0.0
    %2934 = vmatpush1.msra.mxu0 0.0
    %2935 = vmatprep.subr.mxu0 0.0
    %2936 = vmatpush1.msra.mxu0 0.0
    %2937 = vmatprep.subr.mxu0 0.0
    %2938 = vmatpush1.msra.mxu0 0.0
    %2939 = vmatprep.subr.mxu0 0.0
    %2940 = vmatpush1.msra.mxu0 0.0
    %2941 = vmatprep.subr.mxu0 0.0
    %2942 = vmatpush1.msra.mxu0 0.0
    %2943 = vmatprep.subr.mxu0 0.0
    %2944 = vmatpush1.msra.mxu0 0.0
    %2945 = vmatprep.subr.mxu0 0.0
    %2946 = vmatpush1.msra.mxu0 0.0
    %2947 = vmatprep.subr.mxu0 0.0
    %2948 = vmatpush1.msra.mxu0 0.0
    %2949 = vmatprep.subr.mxu0 0.0
    %2950 = vmatpush1.msra.mxu0 0.0
    %2951 = vmatprep.subr.mxu0 0.0
    %2952 = vmatpush1.msra.mxu0 0.0
    %2953 = vmatprep.subr.mxu0 0.0
    %2954 = vmatpush1.msra.mxu0 0.0
    %2955 = vmatprep.subr.mxu0 0.0
    %2956 = vmatpush1.msra.mxu0 0.0
    %2957 = vmatprep.subr.mxu0 0.0
    %2958 = vmatpush1.msra.mxu0 0.0
    %2959 = vmatprep.subr.mxu0 0.0
    %2960 = vmatpush1.msra.mxu0 0.0
    %2961 = vmatprep.subr.mxu0 0.0
    %2962 = vmatpush1.msra.mxu0 0.0
    %2963 = vmatprep.subr.mxu0 0.0
    %2964 = vmatpush1.msra.mxu0 0.0
    %2965 = vmatprep.subr.mxu0 0.0
    %2966 = vmatpush1.msra.mxu0 0.0
    %2967 = vmatprep.subr.mxu0 0.0
    %2968 = vmatpush1.msra.mxu0 0.0
    %2969 = vmatprep.subr.mxu0 0.0
    %2970 = vmatpush1.msra.mxu0 0.0
    %2971 = vmatprep.subr.mxu0 0.0
    %2972 = vmatpush1.msra.mxu0 0.0
    %2973 = vmatprep.subr.mxu0 0.0
    %2974 = vmatpush1.msra.mxu0 0.0
    %2975 = vmatprep.subr.mxu0 0.0
    %2976 = vmatpush1.msra.mxu0 0.0
    %2977 = vmatprep.subr.mxu0 0.0
    %2978 = vmatpush1.msra.mxu0 0.0
    %2979 = vmatprep.subr.mxu0 0.0
    %2980 = vmatpush1.msra.mxu0 0.0
    %2981 = vmatprep.subr.mxu0 0.0
    %2982 = vmatpush1.msra.mxu0 0.0
    %2983 = vmatprep.subr.mxu0 0.0
    %2984 = vmatpush1.msra.mxu0 0.0
    %2985 = vmatprep.subr.mxu0 0.0
    %2986 = vmatpush1.msra.mxu0 0.0
    %2987 = vmatprep.subr.mxu0 0.0
    %2988 = vmatpush1.msra.mxu0 0.0
    %2989 = vmatprep.mubr.f32.mxu0 0.0
    %2990 = vmatmul.mubr.f32.gmra.mrb[0].mxu0 %v2778
    %v2991 = vpop.f32.mrb[0].mxu0
    %v2992 = vadd.f32 0.0, %v2991
    %v2993 = vpop.f32.mrb[0].mxu0
    %2994 = vdwg.mxu0
    %v2995 = vadd.f32 %v2922, %v2992
    %v2996 = vtanh.pop %v2995
    %v2998 = vsel %vm161, %v2996, 0
    %3000 = vmatprep.subr.mxu0 0.0
    %3001 = vmatpush1.msra.mxu0 %v61
    %3002 = vmatprep.subr.mxu0 0.0
    %3003 = vmatpush1.msra.mxu0 %v62
    %3004 = vmatprep.subr.mxu0 0.0
    %3005 = vmatpush1.msra.mxu0 %v63
    %3006 = vmatprep.subr.mxu0 0.0
    %3007 = vmatpush1.msra.mxu0 %v64
    %3008 = vmatprep.subr.mxu0 0.0
    %3009 = vmatpush1.msra.mxu0 0.0
    %3010 = vmatprep.subr.mxu0 0.0
    %3011 = vmatpush1.msra.mxu0 0.0
    %3012 = vmatprep.subr.mxu0 0.0
    %3013 = vmatpush1.msra.mxu0 0.0
    %3014 = vmatprep.subr.mxu0 0.0
    %3015 = vmatpush1.msra.mxu0 0.0
    %3016 = vmatprep.subr.mxu0 0.0
    %3017 = vmatpush1.msra.mxu0 0.0
    %3018 = vmatprep.subr.mxu0 0.0
    %3019 = vmatpush1.msra.mxu0 0.0
    %3020 = vmatprep.subr.mxu0 0.0
    %3021 = vmatpush1.msra.mxu0 0.0
    %3022 = vmatprep.subr.mxu0 0.0
    %3023 = vmatpush1.msra.mxu0 0.0
    %3024 = vmatprep.subr.mxu0 0.0
    %3025 = vmatpush1.msra.mxu0 0.0
    %3026 = vmatprep.subr.mxu0 0.0
    %3027 = vmatpush1.msra.mxu0 0.0
    %3028 = vmatprep.subr.mxu0 0.0
    %3029 = vmatpush1.msra.mxu0 0.0
    %3030 = vmatprep.subr.mxu0 0.0
    %3031 = vmatpush1.msra.mxu0 0.0
    %3032 = vmatprep.subr.mxu0 0.0
    %3033 = vmatpush1.msra.mxu0 0.0
    %3034 = vmatprep.subr.mxu0 0.0
    %3035 = vmatpush1.msra.mxu0 0.0
    %3036 = vmatprep.subr.mxu0 0.0
    %3037 = vmatpush1.msra.mxu0 0.0
    %3038 = vmatprep.subr.mxu0 0.0
    %3039 = vmatpush1.msra.mxu0 0.0
    %3040 = vmatprep.subr.mxu0 0.0
    %3041 = vmatpush1.msra.mxu0 0.0
    %3042 = vmatprep.subr.mxu0 0.0
    %3043 = vmatpush1.msra.mxu0 0.0
    %3044 = vmatprep.subr.mxu0 0.0
    %3045 = vmatpush1.msra.mxu0 0.0
    %3046 = vmatprep.subr.mxu0 0.0
    %3047 = vmatpush1.msra.mxu0 0.0
    %3048 = vmatprep.subr.mxu0 0.0
    %3049 = vmatpush1.msra.mxu0 0.0
    %3050 = vmatprep.subr.mxu0 0.0
    %3051 = vmatpush1.msra.mxu0 0.0
    %3052 = vmatprep.subr.mxu0 0.0
    %3053 = vmatpush1.msra.mxu0 0.0
    %3054 = vmatprep.subr.mxu0 0.0
    %3055 = vmatpush1.msra.mxu0 0.0
    %3056 = vmatprep.subr.mxu0 0.0
    %3057 = vmatpush1.msra.mxu0 0.0
    %3058 = vmatprep.subr.mxu0 0.0
    %3059 = vmatpush1.msra.mxu0 0.0
    %3060 = vmatprep.subr.mxu0 0.0
    %3061 = vmatpush1.msra.mxu0 0.0
    %3062 = vmatprep.subr.mxu0 0.0
    %3063 = vmatpush1.msra.mxu0 0.0
    %3064 = vmatprep.mubr.f32.mxu0 0.0
    %3065 = vmatmul.mubr.f32.gmra.mrb[0].mxu0 %v2998
    %v3066 = vpop.f32.mrb[0].mxu0
    %v3067 = vadd.f32 %v546, %v3066
    %v3068 = vpop.f32.mrb[0].mxu0
    %3069 = vdwg.mxu0
    %3070 = vst.msk [vmem:[%s7 + $0x7] sm:$0x1] %vm621, %v3067
    %3071 = vst.msk [vmem:[%s623 + $0x6] sm:$0x2] %vm624, %v3067
    %vm3072 = vcmask 254976
    %3073 = vst.msk [vmem:[#allocation5] sm:$0x3] %vm3072, %v2634
    %s3074 = scalar_lea.vmem [#allocation5], 2
    %3075 = vst.msk [vmem:[%s3074] sm:$0x3] %vm3072, %v2996
    // Predicated region
    $region34: #{network_forward.1} parent=1 // pred_check
      _
    $region35: #{network_forward.1} parent=1 // pred_check_branch
      %3077 = sbr.rel (0) target = $region37
    $region36: #{network_forward.1} parent=1 // pred_region
      _
    $region37: #{network_forward.1} parent=1 // pred_fallthru
      _
    // Predicated region
    $region38: #{network_forward.1} parent=1 // pred_check
      _
    $region39: #{network_forward.1} parent=1 // pred_check_branch
      %3079 = sbr.rel (0) target = $region41
    $region40: #{network_forward.1} parent=1 // pred_region
      %s3081 = ssub.s32 64, 64
      %3082 = vsyncadd [#allocation4], %s3081
      %s3083 = sshll.u32 [#allocation5], 4
      %s3084 = int_to_ptr.vmem [resolvable:$true] %s3083
      %3089 = dma.vmem_to_hbm [thread:$0]  %s3084, 64, %s8, [#allocation4], 32, 32, 2
    $region41: #{network_forward.1} parent=1 // pred_fallthru
      _
    // Predicated region
    $region42: #{network_forward.1} parent=1 // pred_check
      _
    $region43: #{network_forward.1} parent=1 // pred_check_branch
      %3091 = sbr.rel (0) target = $region45
    $region44: #{network_forward.1} parent=1 // pred_region
      _
    $region45: #{network_forward.1} parent=1 // pred_fallthru
      _
    // Predicated region
    $region46: #{network_forward.1} parent=1 // pred_check
      _
    $region47: #{network_forward.1} parent=1 // pred_check_branch
      %3093 = sbr.rel (0) target = $region49
    $region48: #{network_forward.1} parent=1 // pred_region
      %3094 = dma.done [#allocation4], 64
    $region49: #{network_forward.1} parent=1 // pred_fallthru
      _
    %3095 = vsyncpa [#allocation3], 1
    %3096 = vsyncpa [#allocation4], 1

</llo_original>
